<compile_context>
chip_gen: v7x
topology: tpu7x:2x2x1
jax: 0.10.0
libtpu: 0.0.40
codegen_flags: <defaults>
</compile_context>

<pallas_src>
import math
from itertools import product

import numpy as np
import jax
import jax.numpy as jnp
from jax import lax
from jax.experimental import pallas as pl
from jax.experimental.pallas import tpu as pltpu

# MultiBoxLoss(2, 0.45, True, 0, True, 7, 0.35, False)
OVERLAP_THRESH = 0.45
NEGPOS_RATIO = 7.0
VAR0, VAR1 = 0.1, 0.2            # variances used by encode()

BBLK = 8                         # images per grid step (sublane axis).
                                 # v5e/v6e (128 MiB VMEM): can be raised to
                                 # 16-32 for large batches; keep 8 on v7x.
N_BISECT = 32                    # bisection rounds (covers the full f32 range)

CFG = {
    'min_sizes': [[16, 32], [64, 128], [256, 512]],
    'steps': [8, 16, 32],
    'clip': False,
    'loc_weight': 2.0,
}


def make_priors(cfg, image_size):
    """PriorBox.forward() -> [P, 4] center-form anchors (cx, cy, w, h)."""
    anchors = []
    fmaps = [[math.ceil(image_size[0] / s), math.ceil(image_size[1] / s)]
             for s in cfg['steps']]
    for k, f in enumerate(fmaps):
        for i, j in product(range(f[0]), range(f[1])):
            for min_size in cfg['min_sizes'][k]:
                s_kx = min_size / image_size[1]
                s_ky = min_size / image_size[0]
                cx = (j + 0.5) * cfg['steps'][k] / image_size[1]
                cy = (i + 0.5) * cfg['steps'][k] / image_size[0]
                anchors.append([cx, cy, s_kx, s_ky])
    out = np.array(anchors, dtype=np.float32)
    if cfg['clip']:
        out = np.clip(out, 0.0, 1.0)
    return out


def _make_multibox_kernel(p_real, gmax):
    """Build the kernel; p_real (un-padded prior count) is a static constant."""

    def kernel(priors_ref, loc_ref, conf_ref, gt_ref, out_ref):
        Ppad = priors_ref.shape[1]
        Bblk = out_ref.shape[0]

        # ---- priors (center form) + validity lane mask ----------------------
        pri = priors_ref[...]                       # [8, Ppad]
        pcx, pcy = pri[0:1, :], pri[1:2, :]
        pw, ph = pri[2:3, :], pri[3:4, :]
        lane_valid = pri[4:5, :] > 0.0              # [1, Ppad]

        px1 = pcx - 0.5 * pw
        py1 = pcy - 0.5 * ph
        px2 = pcx + 0.5 * pw
        py2 = pcy + 0.5 * ph
        area_p = (px2 - px1) * (py2 - py1)          # [1, Ppad]

        p_iota = lax.broadcasted_iota(jnp.int32, (1, Ppad), 1)

        # ---- match(): static loop over the (small) gt slots, dense tiles ----
        bto = jnp.full((Bblk, Ppad), -2.0, jnp.float32)   # best gt overlap/prior
        bti = jnp.zeros((Bblk, Ppad), jnp.int32)          # best gt idx/prior
        ov_idx = jnp.full((Bblk, Ppad), -1, jnp.int32)    # forced-match override
        fill2 = jnp.zeros((Bblk, Ppad), jnp.float32)      # lanes forced to 2.0
        num_valid = jnp.zeros((Bblk, 1), jnp.float32)
        gt_rows = []

        for g in range(gmax):
            row = gt_ref[g]                          # [Bblk, 8]
            tx1, ty1 = row[:, 0:1], row[:, 1:2]
            tx2, ty2 = row[:, 2:3], row[:, 3:4]
            lab = row[:, 4:5]
            gvalid = row[:, 5:6] > 0.0               # [Bblk, 1]
            gt_rows.append((tx1, ty1, tx2, ty2, lab))

            iw = jnp.maximum(jnp.minimum(tx2, px2) - jnp.maximum(tx1, px1), 0.0)
            ih = jnp.maximum(jnp.minimum(ty2, py2) - jnp.maximum(ty1, py1), 0.0)
            inter = iw * ih                                           # [Bblk,Ppad]
            area_t = (tx2 - tx1) * (ty2 - ty1)                        # [Bblk,1]
            # EUP reciprocal instead of a VALU divide (union area is > 0).
            ov = inter * pl.reciprocal(area_t + area_p - inter, approx=True)
            ov = jnp.where(jnp.logical_and(gvalid, lane_valid), ov, -1.0)

            # running argmax over gts (first occurrence wins on ties)
            upd = ov > bto
            bti = jnp.where(upd, g, bti)
            bto = jnp.where(upd, ov, bto)

            # best prior for this gt
            bpo = jnp.max(ov, axis=1, keepdims=True)                  # [Bblk,1]
            bpi = jnp.min(jnp.where(ov == bpo, p_iota, Ppad),
                          axis=1, keepdims=True)                      # [Bblk,1]
            sel = p_iota == bpi                                       # [Bblk,Ppad]
            valid_g = jnp.logical_and(gvalid, bpo >= 0.2)             # [Bblk,1]

            # best_truth_overlap.index_fill_(0, best_prior_idx_filter, 2)
            fill2 = jnp.maximum(
                fill2, jnp.where(jnp.logical_and(sel, valid_g), 1.0, 0.0))
            # best_truth_idx[best_prior_idx[j]] = j   (sequential; later j wins)
            ov_idx = jnp.where(jnp.logical_and(sel, gvalid), g, ov_idx)
            num_valid = num_valid + jnp.where(valid_g, 1.0, 0.0)

        bto = jnp.where(fill2 > 0.5, 2.0, bto)
        bti = jnp.where(ov_idx >= 0, ov_idx, bti)
        all_invalid = num_valid < 0.5                                 # [Bblk,1]

        # gather matched gt boxes / labels with the final assignment
        mx1 = jnp.zeros((Bblk, Ppad), jnp.float32)
        my1 = jnp.zeros_like(mx1)
        mx2 = jnp.zeros_like(mx1)
        my2 = jnp.zeros_like(mx1)
        conf = jnp.zeros_like(mx1)
        for g in range(gmax):
            tx1, ty1, tx2, ty2, lab = gt_rows[g]
            m = bti == g
            mx1 = jnp.where(m, tx1, mx1)
            my1 = jnp.where(m, ty1, my1)
            mx2 = jnp.where(m, tx2, mx2)
            my2 = jnp.where(m, ty2, my2)
            conf = jnp.where(m, lab, conf)

        conf = jnp.where(bto < OVERLAP_THRESH, 0.0, conf)
        conf = jnp.where(all_invalid, 0.0, conf)
        conf = jnp.where(lane_valid, conf, 0.0)     # padded priors never positive
        pos = conf != 0.0                           # [Bblk, Ppad]

        # ---- localization loss: smooth L1 on encode() targets ---------------
        g_cx = ((mx1 + mx2) * 0.5 - pcx) / (VAR0 * pw)
        g_cy = ((my1 + my2) * 0.5 - pcy) / (VAR0 * ph)
        # clamp log args so unmatched (masked) lanes never produce -inf
        g_w = jnp.log(jnp.maximum((mx2 - mx1) / pw, 1e-12)) / VAR1
        g_h = jnp.log(jnp.maximum((my2 - my1) / ph, 1e-12)) / VAR1

        lx, ly = loc_ref[0], loc_ref[1]             # [Bblk, Ppad]
        lw, lh = loc_ref[2], loc_ref[3]

        def smooth_l1(d):
            a = jnp.abs(d)
            return jnp.where(a < 1.0, 0.5 * a * a, a - 0.5)

        loc_row = (smooth_l1(lx - g_cx) + smooth_l1(ly - g_cy)
                   + smooth_l1(lw - g_w) + smooth_l1(lh - g_h))
        loss_l_img = jnp.sum(jnp.where(pos, loc_row, 0.0),
                             axis=1, keepdims=True)                   # [Bblk,1]

        # ---- per-prior cross entropy (conf_t in {0,1} after conf_t[pos]=1) --
        c0, c1 = conf_ref[0], conf_ref[1]           # [Bblk, Ppad]
        cmax = jnp.maximum(c0, c1)
        lse = jnp.log(jnp.exp(c0 - cmax) + jnp.exp(c1 - cmax)) + cmax
        ce = lse - jnp.where(pos, c1, c0)           # >= 0, finite

        # ---- hard negative mining via bit-exact threshold bisection ---------
        # mining values: ce on negatives, 0 on positives, -1 on padded lanes.
        # Real values are all >= 0, so their f32 bit patterns order identically
        # as signed int32; the -1.0 pads map to a negative bit pattern and sit
        # below every threshold >= 0, i.e. they can never be selected.
        mining = jnp.where(pos, 0.0, ce)
        mining = jnp.where(lane_valid, mining, -1.0)
        mining_bits = pltpu.bitcast(mining, jnp.int32)        # [Bblk, Ppad]

        num_pos = jnp.sum(jnp.where(pos, 1.0, 0.0), axis=1, keepdims=True)
        num_neg = jnp.minimum(NEGPOS_RATIO * num_pos, float(p_real - 1))

        def bisect_body(_, carry):
            lo, hi = carry                                    # [Bblk,1] int32
            mid = lo + jnp.right_shift(hi - lo, 1)
            cnt = jnp.sum((mining_bits >= mid).astype(jnp.float32),
                          axis=1, keepdims=True)
            go_up = cnt >= num_neg                            # keep f(lo) >= k
            return (jnp.where(go_up, mid, lo), jnp.where(go_up, hi, mid))

        lo0 = jnp.zeros((Bblk, 1), jnp.int32)                 # f(0) = #real >= k
        hi0 = jnp.full((Bblk, 1), 0x7F000000, jnp.int32)      # huge finite float
        lo, _ = lax.fori_loop(0, N_BISECT, bisect_body, (lo0, hi0))
        tau = pltpu.bitcast(lo, jnp.float32)      # exact num_neg-th largest value

        gt_mask = mining > tau
        c_gt = jnp.sum(gt_mask.astype(jnp.float32), axis=1, keepdims=True)
        sum_gt = jnp.sum(jnp.where(gt_mask, mining, 0.0), axis=1, keepdims=True)
        # sum of the top-num_neg mining values (tie-break invariant, == torch's
        # sum of ce over the selected negatives; positives contribute 0 here).
        neg_contrib = sum_gt + (num_neg - c_gt) * tau

        pos_ce = jnp.sum(jnp.where(pos, ce, 0.0), axis=1, keepdims=True)
        loss_c_img = pos_ce + neg_contrib                                 # [Bblk,1]

        # ---- per-image partial sums into a lane-dense output ----------------
        lane = lax.broadcasted_iota(jnp.int32, (Bblk, out_ref.shape[1]), 1)
        out_ref[...] = (jnp.where(lane == 0, loss_l_img, 0.0)
                        + jnp.where(lane == 1, loss_c_img, 0.0)
                        + jnp.where(lane == 2, num_pos, 0.0))

    return kernel


def detection_loss(cfg, image_size, predictions, targets, gmax=8, bblk=BBLK):
    """Equivalent of DetectionLoss.forward(predictions, targets)."""
    loc_data, conf_data, _landm_data = predictions   # landm loss is discarded
    B, P, _ = loc_data.shape

    priors = make_priors(cfg, image_size)            # [P, 4] center form
    assert priors.shape[0] == P, (priors.shape, P)

    Bpad = ((B + bblk - 1) // bblk) * bblk
    Ppad = ((P + 127) // 128) * 128
    nblk = Bpad // bblk                              # v7x: pick bblk so nblk >= 2
                                                     # when B > bblk (2 TCs/chip)

    # priors: [8, Ppad] = (cx, cy, w, h, valid, 0, 0, 0); padded priors get
    # w = h = 1 so nothing on masked lanes generates inf/NaN.
    pri = np.zeros((8, Ppad), np.float32)
    pri[0:4, :P] = priors.T
    pri[2:4, P:] = 1.0
    pri[4, :P] = 1.0

    # predictions: coordinate-major, batch on the sublane axis, lane-padded P.
    loc_cm = jnp.zeros((4, Bpad, Ppad), jnp.float32)
    loc_cm = loc_cm.at[:, :B, :P].set(
        jnp.transpose(jnp.asarray(loc_data, jnp.float32), (2, 0, 1)))
    conf_cm = jnp.zeros((2, Bpad, Ppad), jnp.float32)
    conf_cm = conf_cm.at[:, :B, :P].set(
        jnp.transpose(jnp.asarray(conf_data, jnp.float32), (2, 0, 1)))

    # fused ground truth: [gmax, Bpad, 8] = (x1, y1, x2, y2, label, valid, 0, 0)
    gt = np.zeros((gmax, Bpad, 8), np.float32)
    for i, t in enumerate(targets):
        t = np.asarray(t, np.float32)
        g = min(t.shape[0], gmax)
        gt[:g, i, 0:4] = t[:g, :4]
        gt[:g, i, 4] = t[:g, -1]
        gt[:g, i, 5] = 1.0

    kernel = _make_multibox_kernel(P, gmax)
    grid_spec = pltpu.PrefetchScalarGridSpec(
        num_scalar_prefetch=0,
        grid=(nblk,),
        in_specs=[
            pl.BlockSpec((8, Ppad), lambda g: (0, 0)),
            pl.BlockSpec((4, bblk, Ppad), lambda g: (0, g, 0)),
            pl.BlockSpec((2, bblk, Ppad), lambda g: (0, g, 0)),
            pl.BlockSpec((gmax, bblk, 8), lambda g: (0, g, 0)),
        ],
        out_specs=pl.BlockSpec((bblk, 128), lambda g: (g, 0)),
    )
    out = pl.pallas_call(
        kernel,
        grid_spec=grid_spec,
        out_shape=jax.ShapeDtypeStruct((Bpad, 128), jnp.float32),
        compiler_params=pltpu.CompilerParams(
            dimension_semantics=("parallel",),
            vmem_limit_bytes=48 * 1024 * 1024),
    )(jnp.asarray(pri), loc_cm, conf_cm, jnp.asarray(gt))

    loss_l_sum = jnp.sum(out[:, 0])
    loss_c_sum = jnp.sum(out[:, 1])
    n = jnp.maximum(jnp.sum(out[:, 2]), 1.0)
    return cfg['loc_weight'] * (loss_l_sum / n) + loss_c_sum / n


if __name__ == "__main__":
    image_size = (64, 64)                       # small synthetic image size
    priors_np = make_priors(CFG, image_size)
    P = priors_np.shape[0]                      # 168 priors
    B = 2

    key = jax.random.PRNGKey(0)
    k_loc, k_conf, k_landm, k_t0, k_t1 = jax.random.split(key, 5)

    loc_data = 0.1 * jax.random.normal(k_loc, (B, P, 4), jnp.float32)
    conf_data = jax.random.normal(k_conf, (B, P, 2), jnp.float32)
    landm_data = jax.random.normal(k_landm, (B, P, 10), jnp.float32)

    def make_target(k, g):
        kxy, kwh, klm = jax.random.split(k, 3)
        xy = jax.random.uniform(kxy, (g, 2), minval=0.05, maxval=0.55)
        wh = jax.random.uniform(kwh, (g, 2), minval=0.15, maxval=0.35)
        boxes = jnp.concatenate([xy, xy + wh], axis=1)          # x1,y1,x2,y2
        landms = jax.random.uniform(klm, (g, 10))
        labs = jnp.ones((g, 1), jnp.float32)
        return jnp.concatenate([boxes, landms, labs], axis=1)   # [g, 15]

    t0 = make_target(k_t0, 3)
    t1 = make_target(k_t1, 2)
    t1 = t1.at[1, 14].set(-1.0)   # a face with no landmarks (label = -1)
    targets = [t0, t1]

    loss = detection_loss(CFG, image_size, (loc_data, conf_data, landm_data),
                          targets)
    loss = jax.block_until_ready(loss)
    assert jnp.isfinite(loss)
    print("KERNEL_OK")
</pallas_src>

<mosaic_0001>
module attributes {stable_mosaic.version = 11 : i64} {
  func.func @kernel(%arg0: i32, %arg1: memref<8x256xf32, #tpu.memory_space<vmem>>, %arg2: memref<4x8x256xf32, #tpu.memory_space<vmem>>, %arg3: memref<2x8x256xf32, #tpu.memory_space<vmem>>, %arg4: memref<8x8x8xf32, #tpu.memory_space<vmem>>, %arg5: memref<8x128xf32, #tpu.memory_space<vmem>>) attributes {dimension_semantics = [#tpu.dimension_semantics<parallel>], iteration_bounds = array<i64: 1>, scalar_prefetch = 0 : i64, scratch_operands = 0 : i64, tpu.core_type = #tpu.core_type<tc>, window_params = [{pipeline_mode = #tpu.pipeline_mode<synchronous>, transform_indices = @transform_0, window_bounds = array<i64: 8, 256>}, {transform_indices = @transform_1, window_bounds = array<i64: 4, 8, 256>}, {transform_indices = @transform_2, window_bounds = array<i64: 2, 8, 256>}, {transform_indices = @transform_3, window_bounds = array<i64: 8, 8, 8>}, {transform_indices = @transform_4, window_bounds = array<i64: 8, 128>}]} {
    %c0 = arith.constant 0 : index
    %c0_0 = arith.constant 0 : index
    %0 = vector.load %arg1[%c0, %c0_0] : memref<8x256xf32, #tpu.memory_space<vmem>>, vector<8x256xf32>
    %1 = vector.extract_strided_slice %0 {offsets = [0, 0], sizes = [1, 256], strides = [1, 1]} : vector<8x256xf32> to vector<1x256xf32>
    %2 = vector.extract_strided_slice %0 {offsets = [1, 0], sizes = [1, 256], strides = [1, 1]} : vector<8x256xf32> to vector<1x256xf32>
    %3 = vector.extract_strided_slice %0 {offsets = [2, 0], sizes = [1, 256], strides = [1, 1]} : vector<8x256xf32> to vector<1x256xf32>
    %4 = vector.extract_strided_slice %0 {offsets = [3, 0], sizes = [1, 256], strides = [1, 1]} : vector<8x256xf32> to vector<1x256xf32>
    %5 = vector.extract_strided_slice %0 {offsets = [4, 0], sizes = [1, 256], strides = [1, 1]} : vector<8x256xf32> to vector<1x256xf32>
    %cst = arith.constant 0.000000e+00 : f32
    %6 = vector.broadcast %cst : f32 to vector<1x256xf32>
    %7 = arith.cmpf ogt, %5, %6 : vector<1x256xf32>
    %cst_1 = arith.constant 5.000000e-01 : f32
    %8 = vector.broadcast %cst_1 : f32 to vector<1x256xf32>
    %9 = arith.mulf %8, %3 : vector<1x256xf32>
    %10 = arith.subf %1, %9 : vector<1x256xf32>
    %cst_2 = arith.constant 5.000000e-01 : f32
    %11 = vector.broadcast %cst_2 : f32 to vector<1x256xf32>
    %12 = arith.mulf %11, %4 : vector<1x256xf32>
    %13 = arith.subf %2, %12 : vector<1x256xf32>
    %cst_3 = arith.constant 5.000000e-01 : f32
    %14 = vector.broadcast %cst_3 : f32 to vector<1x256xf32>
    %15 = arith.mulf %14, %3 : vector<1x256xf32>
    %16 = arith.addf %1, %15 : vector<1x256xf32>
    %cst_4 = arith.constant 5.000000e-01 : f32
    %17 = vector.broadcast %cst_4 : f32 to vector<1x256xf32>
    %18 = arith.mulf %17, %4 : vector<1x256xf32>
    %19 = arith.addf %2, %18 : vector<1x256xf32>
    %20 = arith.subf %16, %10 : vector<1x256xf32>
    %21 = arith.subf %19, %13 : vector<1x256xf32>
    %22 = arith.mulf %20, %21 : vector<1x256xf32>
    %23 = tpu.iota {dimensions = array<i32: 1>} : vector<1x256xi32>
    %cst_5 = arith.constant -2.000000e+00 : f32
    %24 = vector.broadcast %cst_5 : f32 to vector<8x256xf32>
    %c0_i32 = arith.constant 0 : i32
    %25 = vector.broadcast %c0_i32 : i32 to vector<8x256xi32>
    %c-1_i32 = arith.constant -1 : i32
    %26 = vector.broadcast %c-1_i32 : i32 to vector<8x256xi32>
    %cst_6 = arith.constant 0.000000e+00 : f32
    %27 = vector.broadcast %cst_6 : f32 to vector<8x256xf32>
    %cst_7 = arith.constant 0.000000e+00 : f32
    %28 = vector.broadcast %cst_7 : f32 to vector<8x1xf32>
    %c0_8 = arith.constant 0 : index
    %c0_9 = arith.constant 0 : index
    %c0_10 = arith.constant 0 : index
    %29 = vector.load %arg4[%c0_8, %c0_9, %c0_10] : memref<8x8x8xf32, #tpu.memory_space<vmem>>, vector<1x8x8xf32>
    %30 = vector.shape_cast %29 : vector<1x8x8xf32> to vector<8x8xf32>
    %31 = vector.extract_strided_slice %30 {offsets = [0, 0], sizes = [8, 1], strides = [1, 1]} : vector<8x8xf32> to vector<8x1xf32>
    %32 = vector.extract_strided_slice %30 {offsets = [0, 1], sizes = [8, 1], strides = [1, 1]} : vector<8x8xf32> to vector<8x1xf32>
    %33 = vector.extract_strided_slice %30 {offsets = [0, 2], sizes = [8, 1], strides = [1, 1]} : vector<8x8xf32> to vector<8x1xf32>
    %34 = vector.extract_strided_slice %30 {offsets = [0, 3], sizes = [8, 1], strides = [1, 1]} : vector<8x8xf32> to vector<8x1xf32>
    %35 = vector.extract_strided_slice %30 {offsets = [0, 4], sizes = [8, 1], strides = [1, 1]} : vector<8x8xf32> to vector<8x1xf32>
    %36 = vector.extract_strided_slice %30 {offsets = [0, 5], sizes = [8, 1], strides = [1, 1]} : vector<8x8xf32> to vector<8x1xf32>
    %cst_11 = arith.constant 0.000000e+00 : f32
    %37 = vector.broadcast %cst_11 : f32 to vector<8x1xf32>
    %38 = arith.cmpf ogt, %36, %37 : vector<8x1xf32>
    %39 = vector.broadcast %33 : vector<8x1xf32> to vector<8x256xf32>
    %40 = vector.broadcast %16 : vector<1x256xf32> to vector<8x256xf32>
    %41 = arith.minimumf %39, %40 : vector<8x256xf32>
    %42 = vector.broadcast %31 : vector<8x1xf32> to vector<8x256xf32>
    %43 = vector.broadcast %10 : vector<1x256xf32> to vector<8x256xf32>
    %44 = arith.maximumf %42, %43 : vector<8x256xf32>
    %45 = arith.subf %41, %44 : vector<8x256xf32>
    %cst_12 = arith.constant 0.000000e+00 : f32
    %46 = vector.broadcast %cst_12 : f32 to vector<8x256xf32>
    %47 = arith.maximumf %45, %46 : vector<8x256xf32>
    %48 = vector.broadcast %34 : vector<8x1xf32> to vector<8x256xf32>
    %49 = vector.broadcast %19 : vector<1x256xf32> to vector<8x256xf32>
    %50 = arith.minimumf %48, %49 : vector<8x256xf32>
    %51 = vector.broadcast %32 : vector<8x1xf32> to vector<8x256xf32>
    %52 = vector.broadcast %13 : vector<1x256xf32> to vector<8x256xf32>
    %53 = arith.maximumf %51, %52 : vector<8x256xf32>
    %54 = arith.subf %50, %53 : vector<8x256xf32>
    %cst_13 = arith.constant 0.000000e+00 : f32
    %55 = vector.broadcast %cst_13 : f32 to vector<8x256xf32>
    %56 = arith.maximumf %54, %55 : vector<8x256xf32>
    %57 = arith.mulf %47, %56 : vector<8x256xf32>
    %58 = arith.subf %33, %31 : vector<8x1xf32>
    %59 = arith.subf %34, %32 : vector<8x1xf32>
    %60 = arith.mulf %58, %59 : vector<8x1xf32>
    %61 = vector.broadcast %60 : vector<8x1xf32> to vector<8x256xf32>
    %62 = vector.broadcast %22 : vector<1x256xf32> to vector<8x256xf32>
    %63 = arith.addf %61, %62 : vector<8x256xf32>
    %64 = arith.subf %63, %57 : vector<8x256xf32>
    %65 = tpu.reciprocal %64 {approx = true} : vector<8x256xf32> -> vector<8x256xf32>
    %66 = arith.mulf %57, %65 : vector<8x256xf32>
    %67 = vector.broadcast %38 : vector<8x1xi1> to vector<8x256xi1>
    %68 = vector.broadcast %7 : vector<1x256xi1> to vector<8x256xi1>
    %69 = arith.andi %67, %68 : vector<8x256xi1>
    %cst_14 = arith.constant -1.000000e+00 : f32
    %70 = vector.broadcast %cst_14 : f32 to vector<8x256xf32>
    %71 = arith.select %69, %66, %70 : vector<8x256xi1>, vector<8x256xf32>
    %72 = arith.cmpf ogt, %71, %24 : vector<8x256xf32>
    %c0_i32_15 = arith.constant 0 : i32
    %73 = vector.broadcast %c0_i32_15 : i32 to vector<8x256xi32>
    %74 = arith.select %72, %73, %25 : vector<8x256xi1>, vector<8x256xi32>
    %75 = arith.select %72, %71, %24 : vector<8x256xi1>, vector<8x256xf32>
    %cst_16 = arith.constant dense<0xFF800000> : vector<8xf32>
    %76 = vector.multi_reduction <maximumf>, %71, %cst_16 [1] : vector<8x256xf32> to vector<8xf32>
    %77 = vector.shape_cast %76 : vector<8xf32> to vector<8x1xf32>
    %78 = vector.broadcast %77 : vector<8x1xf32> to vector<8x256xf32>
    %79 = arith.cmpf oeq, %71, %78 : vector<8x256xf32>
    %c256_i32 = arith.constant 256 : i32
    %80 = vector.shape_cast %23 : vector<1x256xi32> to vector<1x256xi32>
    %81 = vector.broadcast %80 : vector<1x256xi32> to vector<8x256xi32>
    %82 = vector.broadcast %c256_i32 : i32 to vector<8x256xi32>
    %83 = arith.select %79, %81, %82 : vector<8x256xi1>, vector<8x256xi32>
    %cst_17 = arith.constant dense<2147483647> : vector<8xi32>
    %84 = vector.multi_reduction <minsi>, %83, %cst_17 [1] : vector<8x256xi32> to vector<8xi32>
    %85 = vector.shape_cast %84 : vector<8xi32> to vector<8x1xi32>
    %86 = vector.broadcast %23 : vector<1x256xi32> to vector<8x256xi32>
    %87 = vector.broadcast %85 : vector<8x1xi32> to vector<8x256xi32>
    %88 = arith.cmpi eq, %86, %87 : vector<8x256xi32>
    %cst_18 = arith.constant 2.000000e-01 : f32
    %89 = vector.broadcast %cst_18 : f32 to vector<8x1xf32>
    %90 = arith.cmpf oge, %77, %89 : vector<8x1xf32>
    %91 = arith.andi %38, %90 : vector<8x1xi1>
    %92 = vector.broadcast %91 : vector<8x1xi1> to vector<8x256xi1>
    %93 = arith.andi %88, %92 : vector<8x256xi1>
    %cst_19 = arith.constant 1.000000e+00 : f32
    %cst_20 = arith.constant 0.000000e+00 : f32
    %94 = vector.broadcast %cst_19 : f32 to vector<8x256xf32>
    %95 = vector.broadcast %cst_20 : f32 to vector<8x256xf32>
    %96 = arith.select %93, %94, %95 : vector<8x256xi1>, vector<8x256xf32>
    %97 = arith.maximumf %27, %96 : vector<8x256xf32>
    %98 = vector.broadcast %38 : vector<8x1xi1> to vector<8x256xi1>
    %99 = arith.andi %88, %98 : vector<8x256xi1>
    %c0_i32_21 = arith.constant 0 : i32
    %100 = vector.broadcast %c0_i32_21 : i32 to vector<8x256xi32>
    %101 = arith.select %99, %100, %26 : vector<8x256xi1>, vector<8x256xi32>
    %cst_22 = arith.constant 1.000000e+00 : f32
    %cst_23 = arith.constant 0.000000e+00 : f32
    %102 = vector.broadcast %cst_22 : f32 to vector<8x1xf32>
    %103 = vector.broadcast %cst_23 : f32 to vector<8x1xf32>
    %104 = arith.select %91, %102, %103 : vector<8x1xi1>, vector<8x1xf32>
    %105 = arith.addf %28, %104 : vector<8x1xf32>
    %c1 = arith.constant 1 : index
    %c0_24 = arith.constant 0 : index
    %c0_25 = arith.constant 0 : index
    %106 = vector.load %arg4[%c1, %c0_24, %c0_25] : memref<8x8x8xf32, #tpu.memory_space<vmem>>, vector<1x8x8xf32>
    %107 = vector.shape_cast %106 : vector<1x8x8xf32> to vector<8x8xf32>
    %108 = vector.extract_strided_slice %107 {offsets = [0, 0], sizes = [8, 1], strides = [1, 1]} : vector<8x8xf32> to vector<8x1xf32>
    %109 = vector.extract_strided_slice %107 {offsets = [0, 1], sizes = [8, 1], strides = [1, 1]} : vector<8x8xf32> to vector<8x1xf32>
    %110 = vector.extract_strided_slice %107 {offsets = [0, 2], sizes = [8, 1], strides = [1, 1]} : vector<8x8xf32> to vector<8x1xf32>
    %111 = vector.extract_strided_slice %107 {offsets = [0, 3], sizes = [8, 1], strides = [1, 1]} : vector<8x8xf32> to vector<8x1xf32>
    %112 = vector.extract_strided_slice %107 {offsets = [0, 4], sizes = [8, 1], strides = [1, 1]} : vector<8x8xf32> to vector<8x1xf32>
    %113 = vector.extract_strided_slice %107 {offsets = [0, 5], sizes = [8, 1], strides = [1, 1]} : vector<8x8xf32> to vector<8x1xf32>
    %cst_26 = arith.constant 0.000000e+00 : f32
    %114 = vector.broadcast %cst_26 : f32 to vector<8x1xf32>
    %115 = arith.cmpf ogt, %113, %114 : vector<8x1xf32>
    %116 = vector.broadcast %110 : vector<8x1xf32> to vector<8x256xf32>
    %117 = vector.broadcast %16 : vector<1x256xf32> to vector<8x256xf32>
    %118 = arith.minimumf %116, %117 : vector<8x256xf32>
    %119 = vector.broadcast %108 : vector<8x1xf32> to vector<8x256xf32>
    %120 = vector.broadcast %10 : vector<1x256xf32> to vector<8x256xf32>
    %121 = arith.maximumf %119, %120 : vector<8x256xf32>
    %122 = arith.subf %118, %121 : vector<8x256xf32>
    %cst_27 = arith.constant 0.000000e+00 : f32
    %123 = vector.broadcast %cst_27 : f32 to vector<8x256xf32>
    %124 = arith.maximumf %122, %123 : vector<8x256xf32>
    %125 = vector.broadcast %111 : vector<8x1xf32> to vector<8x256xf32>
    %126 = vector.broadcast %19 : vector<1x256xf32> to vector<8x256xf32>
    %127 = arith.minimumf %125, %126 : vector<8x256xf32>
    %128 = vector.broadcast %109 : vector<8x1xf32> to vector<8x256xf32>
    %129 = vector.broadcast %13 : vector<1x256xf32> to vector<8x256xf32>
    %130 = arith.maximumf %128, %129 : vector<8x256xf32>
    %131 = arith.subf %127, %130 : vector<8x256xf32>
    %cst_28 = arith.constant 0.000000e+00 : f32
    %132 = vector.broadcast %cst_28 : f32 to vector<8x256xf32>
    %133 = arith.maximumf %131, %132 : vector<8x256xf32>
    %134 = arith.mulf %124, %133 : vector<8x256xf32>
    %135 = arith.subf %110, %108 : vector<8x1xf32>
    %136 = arith.subf %111, %109 : vector<8x1xf32>
    %137 = arith.mulf %135, %136 : vector<8x1xf32>
    %138 = vector.broadcast %137 : vector<8x1xf32> to vector<8x256xf32>
    %139 = vector.broadcast %22 : vector<1x256xf32> to vector<8x256xf32>
    %140 = arith.addf %138, %139 : vector<8x256xf32>
    %141 = arith.subf %140, %134 : vector<8x256xf32>
    %142 = tpu.reciprocal %141 {approx = true} : vector<8x256xf32> -> vector<8x256xf32>
    %143 = arith.mulf %134, %142 : vector<8x256xf32>
    %144 = vector.broadcast %115 : vector<8x1xi1> to vector<8x256xi1>
    %145 = vector.broadcast %7 : vector<1x256xi1> to vector<8x256xi1>
    %146 = arith.andi %144, %145 : vector<8x256xi1>
    %cst_29 = arith.constant -1.000000e+00 : f32
    %147 = vector.broadcast %cst_29 : f32 to vector<8x256xf32>
    %148 = arith.select %146, %143, %147 : vector<8x256xi1>, vector<8x256xf32>
    %149 = arith.cmpf ogt, %148, %75 : vector<8x256xf32>
    %c1_i32 = arith.constant 1 : i32
    %150 = vector.broadcast %c1_i32 : i32 to vector<8x256xi32>
    %151 = arith.select %149, %150, %74 : vector<8x256xi1>, vector<8x256xi32>
    %152 = arith.select %149, %148, %75 : vector<8x256xi1>, vector<8x256xf32>
    %cst_30 = arith.constant dense<0xFF800000> : vector<8xf32>
    %153 = vector.multi_reduction <maximumf>, %148, %cst_30 [1] : vector<8x256xf32> to vector<8xf32>
    %154 = vector.shape_cast %153 : vector<8xf32> to vector<8x1xf32>
    %155 = vector.broadcast %154 : vector<8x1xf32> to vector<8x256xf32>
    %156 = arith.cmpf oeq, %148, %155 : vector<8x256xf32>
    %c256_i32_31 = arith.constant 256 : i32
    %157 = vector.shape_cast %23 : vector<1x256xi32> to vector<1x256xi32>
    %158 = vector.broadcast %157 : vector<1x256xi32> to vector<8x256xi32>
    %159 = vector.broadcast %c256_i32_31 : i32 to vector<8x256xi32>
    %160 = arith.select %156, %158, %159 : vector<8x256xi1>, vector<8x256xi32>
    %cst_32 = arith.constant dense<2147483647> : vector<8xi32>
    %161 = vector.multi_reduction <minsi>, %160, %cst_32 [1] : vector<8x256xi32> to vector<8xi32>
    %162 = vector.shape_cast %161 : vector<8xi32> to vector<8x1xi32>
    %163 = vector.broadcast %23 : vector<1x256xi32> to vector<8x256xi32>
    %164 = vector.broadcast %162 : vector<8x1xi32> to vector<8x256xi32>
    %165 = arith.cmpi eq, %163, %164 : vector<8x256xi32>
    %cst_33 = arith.constant 2.000000e-01 : f32
    %166 = vector.broadcast %cst_33 : f32 to vector<8x1xf32>
    %167 = arith.cmpf oge, %154, %166 : vector<8x1xf32>
    %168 = arith.andi %115, %167 : vector<8x1xi1>
    %169 = vector.broadcast %168 : vector<8x1xi1> to vector<8x256xi1>
    %170 = arith.andi %165, %169 : vector<8x256xi1>
    %cst_34 = arith.constant 1.000000e+00 : f32
    %cst_35 = arith.constant 0.000000e+00 : f32
    %171 = vector.broadcast %cst_34 : f32 to vector<8x256xf32>
    %172 = vector.broadcast %cst_35 : f32 to vector<8x256xf32>
    %173 = arith.select %170, %171, %172 : vector<8x256xi1>, vector<8x256xf32>
    %174 = arith.maximumf %97, %173 : vector<8x256xf32>
    %175 = vector.broadcast %115 : vector<8x1xi1> to vector<8x256xi1>
    %176 = arith.andi %165, %175 : vector<8x256xi1>
    %c1_i32_36 = arith.constant 1 : i32
    %177 = vector.broadcast %c1_i32_36 : i32 to vector<8x256xi32>
    %178 = arith.select %176, %177, %101 : vector<8x256xi1>, vector<8x256xi32>
    %cst_37 = arith.constant 1.000000e+00 : f32
    %cst_38 = arith.constant 0.000000e+00 : f32
    %179 = vector.broadcast %cst_37 : f32 to vector<8x1xf32>
    %180 = vector.broadcast %cst_38 : f32 to vector<8x1xf32>
    %181 = arith.select %168, %179, %180 : vector<8x1xi1>, vector<8x1xf32>
    %182 = arith.addf %105, %181 : vector<8x1xf32>
    %c2 = arith.constant 2 : index
    %c0_39 = arith.constant 0 : index
    %c0_40 = arith.constant 0 : index
    %183 = vector.load %arg4[%c2, %c0_39, %c0_40] : memref<8x8x8xf32, #tpu.memory_space<vmem>>, vector<1x8x8xf32>
    %184 = vector.shape_cast %183 : vector<1x8x8xf32> to vector<8x8xf32>
    %185 = vector.extract_strided_slice %184 {offsets = [0, 0], sizes = [8, 1], strides = [1, 1]} : vector<8x8xf32> to vector<8x1xf32>
    %186 = vector.extract_strided_slice %184 {offsets = [0, 1], sizes = [8, 1], strides = [1, 1]} : vector<8x8xf32> to vector<8x1xf32>
    %187 = vector.extract_strided_slice %184 {offsets = [0, 2], sizes = [8, 1], strides = [1, 1]} : vector<8x8xf32> to vector<8x1xf32>
    %188 = vector.extract_strided_slice %184 {offsets = [0, 3], sizes = [8, 1], strides = [1, 1]} : vector<8x8xf32> to vector<8x1xf32>
    %189 = vector.extract_strided_slice %184 {offsets = [0, 4], sizes = [8, 1], strides = [1, 1]} : vector<8x8xf32> to vector<8x1xf32>
    %190 = vector.extract_strided_slice %184 {offsets = [0, 5], sizes = [8, 1], strides = [1, 1]} : vector<8x8xf32> to vector<8x1xf32>
    %cst_41 = arith.constant 0.000000e+00 : f32
    %191 = vector.broadcast %cst_41 : f32 to vector<8x1xf32>
    %192 = arith.cmpf ogt, %190, %191 : vector<8x1xf32>
    %193 = vector.broadcast %187 : vector<8x1xf32> to vector<8x256xf32>
    %194 = vector.broadcast %16 : vector<1x256xf32> to vector<8x256xf32>
    %195 = arith.minimumf %193, %194 : vector<8x256xf32>
    %196 = vector.broadcast %185 : vector<8x1xf32> to vector<8x256xf32>
    %197 = vector.broadcast %10 : vector<1x256xf32> to vector<8x256xf32>
    %198 = arith.maximumf %196, %197 : vector<8x256xf32>
    %199 = arith.subf %195, %198 : vector<8x256xf32>
    %cst_42 = arith.constant 0.000000e+00 : f32
    %200 = vector.broadcast %cst_42 : f32 to vector<8x256xf32>
    %201 = arith.maximumf %199, %200 : vector<8x256xf32>
    %202 = vector.broadcast %188 : vector<8x1xf32> to vector<8x256xf32>
    %203 = vector.broadcast %19 : vector<1x256xf32> to vector<8x256xf32>
    %204 = arith.minimumf %202, %203 : vector<8x256xf32>
    %205 = vector.broadcast %186 : vector<8x1xf32> to vector<8x256xf32>
    %206 = vector.broadcast %13 : vector<1x256xf32> to vector<8x256xf32>
    %207 = arith.maximumf %205, %206 : vector<8x256xf32>
    %208 = arith.subf %204, %207 : vector<8x256xf32>
    %cst_43 = arith.constant 0.000000e+00 : f32
    %209 = vector.broadcast %cst_43 : f32 to vector<8x256xf32>
    %210 = arith.maximumf %208, %209 : vector<8x256xf32>
    %211 = arith.mulf %201, %210 : vector<8x256xf32>
    %212 = arith.subf %187, %185 : vector<8x1xf32>
    %213 = arith.subf %188, %186 : vector<8x1xf32>
    %214 = arith.mulf %212, %213 : vector<8x1xf32>
    %215 = vector.broadcast %214 : vector<8x1xf32> to vector<8x256xf32>
    %216 = vector.broadcast %22 : vector<1x256xf32> to vector<8x256xf32>
    %217 = arith.addf %215, %216 : vector<8x256xf32>
    %218 = arith.subf %217, %211 : vector<8x256xf32>
    %219 = tpu.reciprocal %218 {approx = true} : vector<8x256xf32> -> vector<8x256xf32>
    %220 = arith.mulf %211, %219 : vector<8x256xf32>
    %221 = vector.broadcast %192 : vector<8x1xi1> to vector<8x256xi1>
    %222 = vector.broadcast %7 : vector<1x256xi1> to vector<8x256xi1>
    %223 = arith.andi %221, %222 : vector<8x256xi1>
    %cst_44 = arith.constant -1.000000e+00 : f32
    %224 = vector.broadcast %cst_44 : f32 to vector<8x256xf32>
    %225 = arith.select %223, %220, %224 : vector<8x256xi1>, vector<8x256xf32>
    %226 = arith.cmpf ogt, %225, %152 : vector<8x256xf32>
    %c2_i32 = arith.constant 2 : i32
    %227 = vector.broadcast %c2_i32 : i32 to vector<8x256xi32>
    %228 = arith.select %226, %227, %151 : vector<8x256xi1>, vector<8x256xi32>
    %229 = arith.select %226, %225, %152 : vector<8x256xi1>, vector<8x256xf32>
    %cst_45 = arith.constant dense<0xFF800000> : vector<8xf32>
    %230 = vector.multi_reduction <maximumf>, %225, %cst_45 [1] : vector<8x256xf32> to vector<8xf32>
    %231 = vector.shape_cast %230 : vector<8xf32> to vector<8x1xf32>
    %232 = vector.broadcast %231 : vector<8x1xf32> to vector<8x256xf32>
    %233 = arith.cmpf oeq, %225, %232 : vector<8x256xf32>
    %c256_i32_46 = arith.constant 256 : i32
    %234 = vector.shape_cast %23 : vector<1x256xi32> to vector<1x256xi32>
    %235 = vector.broadcast %234 : vector<1x256xi32> to vector<8x256xi32>
    %236 = vector.broadcast %c256_i32_46 : i32 to vector<8x256xi32>
    %237 = arith.select %233, %235, %236 : vector<8x256xi1>, vector<8x256xi32>
    %cst_47 = arith.constant dense<2147483647> : vector<8xi32>
    %238 = vector.multi_reduction <minsi>, %237, %cst_47 [1] : vector<8x256xi32> to vector<8xi32>
    %239 = vector.shape_cast %238 : vector<8xi32> to vector<8x1xi32>
    %240 = vector.broadcast %23 : vector<1x256xi32> to vector<8x256xi32>
    %241 = vector.broadcast %239 : vector<8x1xi32> to vector<8x256xi32>
    %242 = arith.cmpi eq, %240, %241 : vector<8x256xi32>
    %cst_48 = arith.constant 2.000000e-01 : f32
    %243 = vector.broadcast %cst_48 : f32 to vector<8x1xf32>
    %244 = arith.cmpf oge, %231, %243 : vector<8x1xf32>
    %245 = arith.andi %192, %244 : vector<8x1xi1>
    %246 = vector.broadcast %245 : vector<8x1xi1> to vector<8x256xi1>
    %247 = arith.andi %242, %246 : vector<8x256xi1>
    %cst_49 = arith.constant 1.000000e+00 : f32
    %cst_50 = arith.constant 0.000000e+00 : f32
    %248 = vector.broadcast %cst_49 : f32 to vector<8x256xf32>
    %249 = vector.broadcast %cst_50 : f32 to vector<8x256xf32>
    %250 = arith.select %247, %248, %249 : vector<8x256xi1>, vector<8x256xf32>
    %251 = arith.maximumf %174, %250 : vector<8x256xf32>
    %252 = vector.broadcast %192 : vector<8x1xi1> to vector<8x256xi1>
    %253 = arith.andi %242, %252 : vector<8x256xi1>
    %c2_i32_51 = arith.constant 2 : i32
    %254 = vector.broadcast %c2_i32_51 : i32 to vector<8x256xi32>
    %255 = arith.select %253, %254, %178 : vector<8x256xi1>, vector<8x256xi32>
    %cst_52 = arith.constant 1.000000e+00 : f32
    %cst_53 = arith.constant 0.000000e+00 : f32
    %256 = vector.broadcast %cst_52 : f32 to vector<8x1xf32>
    %257 = vector.broadcast %cst_53 : f32 to vector<8x1xf32>
    %258 = arith.select %245, %256, %257 : vector<8x1xi1>, vector<8x1xf32>
    %259 = arith.addf %182, %258 : vector<8x1xf32>
    %c3 = arith.constant 3 : index
    %c0_54 = arith.constant 0 : index
    %c0_55 = arith.constant 0 : index
    %260 = vector.load %arg4[%c3, %c0_54, %c0_55] : memref<8x8x8xf32, #tpu.memory_space<vmem>>, vector<1x8x8xf32>
    %261 = vector.shape_cast %260 : vector<1x8x8xf32> to vector<8x8xf32>
    %262 = vector.extract_strided_slice %261 {offsets = [0, 0], sizes = [8, 1], strides = [1, 1]} : vector<8x8xf32> to vector<8x1xf32>
    %263 = vector.extract_strided_slice %261 {offsets = [0, 1], sizes = [8, 1], strides = [1, 1]} : vector<8x8xf32> to vector<8x1xf32>
    %264 = vector.extract_strided_slice %261 {offsets = [0, 2], sizes = [8, 1], strides = [1, 1]} : vector<8x8xf32> to vector<8x1xf32>
    %265 = vector.extract_strided_slice %261 {offsets = [0, 3], sizes = [8, 1], strides = [1, 1]} : vector<8x8xf32> to vector<8x1xf32>
    %266 = vector.extract_strided_slice %261 {offsets = [0, 4], sizes = [8, 1], strides = [1, 1]} : vector<8x8xf32> to vector<8x1xf32>
    %267 = vector.extract_strided_slice %261 {offsets = [0, 5], sizes = [8, 1], strides = [1, 1]} : vector<8x8xf32> to vector<8x1xf32>
    %cst_56 = arith.constant 0.000000e+00 : f32
    %268 = vector.broadcast %cst_56 : f32 to vector<8x1xf32>
    %269 = arith.cmpf ogt, %267, %268 : vector<8x1xf32>
    %270 = vector.broadcast %264 : vector<8x1xf32> to vector<8x256xf32>
    %271 = vector.broadcast %16 : vector<1x256xf32> to vector<8x256xf32>
    %272 = arith.minimumf %270, %271 : vector<8x256xf32>
    %273 = vector.broadcast %262 : vector<8x1xf32> to vector<8x256xf32>
    %274 = vector.broadcast %10 : vector<1x256xf32> to vector<8x256xf32>
    %275 = arith.maximumf %273, %274 : vector<8x256xf32>
    %276 = arith.subf %272, %275 : vector<8x256xf32>
    %cst_57 = arith.constant 0.000000e+00 : f32
    %277 = vector.broadcast %cst_57 : f32 to vector<8x256xf32>
    %278 = arith.maximumf %276, %277 : vector<8x256xf32>
    %279 = vector.broadcast %265 : vector<8x1xf32> to vector<8x256xf32>
    %280 = vector.broadcast %19 : vector<1x256xf32> to vector<8x256xf32>
    %281 = arith.minimumf %279, %280 : vector<8x256xf32>
    %282 = vector.broadcast %263 : vector<8x1xf32> to vector<8x256xf32>
    %283 = vector.broadcast %13 : vector<1x256xf32> to vector<8x256xf32>
    %284 = arith.maximumf %282, %283 : vector<8x256xf32>
    %285 = arith.subf %281, %284 : vector<8x256xf32>
    %cst_58 = arith.constant 0.000000e+00 : f32
    %286 = vector.broadcast %cst_58 : f32 to vector<8x256xf32>
    %287 = arith.maximumf %285, %286 : vector<8x256xf32>
    %288 = arith.mulf %278, %287 : vector<8x256xf32>
    %289 = arith.subf %264, %262 : vector<8x1xf32>
    %290 = arith.subf %265, %263 : vector<8x1xf32>
    %291 = arith.mulf %289, %290 : vector<8x1xf32>
    %292 = vector.broadcast %291 : vector<8x1xf32> to vector<8x256xf32>
    %293 = vector.broadcast %22 : vector<1x256xf32> to vector<8x256xf32>
    %294 = arith.addf %292, %293 : vector<8x256xf32>
    %295 = arith.subf %294, %288 : vector<8x256xf32>
    %296 = tpu.reciprocal %295 {approx = true} : vector<8x256xf32> -> vector<8x256xf32>
    %297 = arith.mulf %288, %296 : vector<8x256xf32>
    %298 = vector.broadcast %269 : vector<8x1xi1> to vector<8x256xi1>
    %299 = vector.broadcast %7 : vector<1x256xi1> to vector<8x256xi1>
    %300 = arith.andi %298, %299 : vector<8x256xi1>
    %cst_59 = arith.constant -1.000000e+00 : f32
    %301 = vector.broadcast %cst_59 : f32 to vector<8x256xf32>
    %302 = arith.select %300, %297, %301 : vector<8x256xi1>, vector<8x256xf32>
    %303 = arith.cmpf ogt, %302, %229 : vector<8x256xf32>
    %c3_i32 = arith.constant 3 : i32
    %304 = vector.broadcast %c3_i32 : i32 to vector<8x256xi32>
    %305 = arith.select %303, %304, %228 : vector<8x256xi1>, vector<8x256xi32>
    %306 = arith.select %303, %302, %229 : vector<8x256xi1>, vector<8x256xf32>
    %cst_60 = arith.constant dense<0xFF800000> : vector<8xf32>
    %307 = vector.multi_reduction <maximumf>, %302, %cst_60 [1] : vector<8x256xf32> to vector<8xf32>
    %308 = vector.shape_cast %307 : vector<8xf32> to vector<8x1xf32>
    %309 = vector.broadcast %308 : vector<8x1xf32> to vector<8x256xf32>
    %310 = arith.cmpf oeq, %302, %309 : vector<8x256xf32>
    %c256_i32_61 = arith.constant 256 : i32
    %311 = vector.shape_cast %23 : vector<1x256xi32> to vector<1x256xi32>
    %312 = vector.broadcast %311 : vector<1x256xi32> to vector<8x256xi32>
    %313 = vector.broadcast %c256_i32_61 : i32 to vector<8x256xi32>
    %314 = arith.select %310, %312, %313 : vector<8x256xi1>, vector<8x256xi32>
    %cst_62 = arith.constant dense<2147483647> : vector<8xi32>
    %315 = vector.multi_reduction <minsi>, %314, %cst_62 [1] : vector<8x256xi32> to vector<8xi32>
    %316 = vector.shape_cast %315 : vector<8xi32> to vector<8x1xi32>
    %317 = vector.broadcast %23 : vector<1x256xi32> to vector<8x256xi32>
    %318 = vector.broadcast %316 : vector<8x1xi32> to vector<8x256xi32>
    %319 = arith.cmpi eq, %317, %318 : vector<8x256xi32>
    %cst_63 = arith.constant 2.000000e-01 : f32
    %320 = vector.broadcast %cst_63 : f32 to vector<8x1xf32>
    %321 = arith.cmpf oge, %308, %320 : vector<8x1xf32>
    %322 = arith.andi %269, %321 : vector<8x1xi1>
    %323 = vector.broadcast %322 : vector<8x1xi1> to vector<8x256xi1>
    %324 = arith.andi %319, %323 : vector<8x256xi1>
    %cst_64 = arith.constant 1.000000e+00 : f32
    %cst_65 = arith.constant 0.000000e+00 : f32
    %325 = vector.broadcast %cst_64 : f32 to vector<8x256xf32>
    %326 = vector.broadcast %cst_65 : f32 to vector<8x256xf32>
    %327 = arith.select %324, %325, %326 : vector<8x256xi1>, vector<8x256xf32>
    %328 = arith.maximumf %251, %327 : vector<8x256xf32>
    %329 = vector.broadcast %269 : vector<8x1xi1> to vector<8x256xi1>
    %330 = arith.andi %319, %329 : vector<8x256xi1>
    %c3_i32_66 = arith.constant 3 : i32
    %331 = vector.broadcast %c3_i32_66 : i32 to vector<8x256xi32>
    %332 = arith.select %330, %331, %255 : vector<8x256xi1>, vector<8x256xi32>
    %cst_67 = arith.constant 1.000000e+00 : f32
    %cst_68 = arith.constant 0.000000e+00 : f32
    %333 = vector.broadcast %cst_67 : f32 to vector<8x1xf32>
    %334 = vector.broadcast %cst_68 : f32 to vector<8x1xf32>
    %335 = arith.select %322, %333, %334 : vector<8x1xi1>, vector<8x1xf32>
    %336 = arith.addf %259, %335 : vector<8x1xf32>
    %c4 = arith.constant 4 : index
    %c0_69 = arith.constant 0 : index
    %c0_70 = arith.constant 0 : index
    %337 = vector.load %arg4[%c4, %c0_69, %c0_70] : memref<8x8x8xf32, #tpu.memory_space<vmem>>, vector<1x8x8xf32>
    %338 = vector.shape_cast %337 : vector<1x8x8xf32> to vector<8x8xf32>
    %339 = vector.extract_strided_slice %338 {offsets = [0, 0], sizes = [8, 1], strides = [1, 1]} : vector<8x8xf32> to vector<8x1xf32>
    %340 = vector.extract_strided_slice %338 {offsets = [0, 1], sizes = [8, 1], strides = [1, 1]} : vector<8x8xf32> to vector<8x1xf32>
    %341 = vector.extract_strided_slice %338 {offsets = [0, 2], sizes = [8, 1], strides = [1, 1]} : vector<8x8xf32> to vector<8x1xf32>
    %342 = vector.extract_strided_slice %338 {offsets = [0, 3], sizes = [8, 1], strides = [1, 1]} : vector<8x8xf32> to vector<8x1xf32>
    %343 = vector.extract_strided_slice %338 {offsets = [0, 4], sizes = [8, 1], strides = [1, 1]} : vector<8x8xf32> to vector<8x1xf32>
    %344 = vector.extract_strided_slice %338 {offsets = [0, 5], sizes = [8, 1], strides = [1, 1]} : vector<8x8xf32> to vector<8x1xf32>
    %cst_71 = arith.constant 0.000000e+00 : f32
    %345 = vector.broadcast %cst_71 : f32 to vector<8x1xf32>
    %346 = arith.cmpf ogt, %344, %345 : vector<8x1xf32>
    %347 = vector.broadcast %341 : vector<8x1xf32> to vector<8x256xf32>
    %348 = vector.broadcast %16 : vector<1x256xf32> to vector<8x256xf32>
    %349 = arith.minimumf %347, %348 : vector<8x256xf32>
    %350 = vector.broadcast %339 : vector<8x1xf32> to vector<8x256xf32>
    %351 = vector.broadcast %10 : vector<1x256xf32> to vector<8x256xf32>
    %352 = arith.maximumf %350, %351 : vector<8x256xf32>
    %353 = arith.subf %349, %352 : vector<8x256xf32>
    %cst_72 = arith.constant 0.000000e+00 : f32
    %354 = vector.broadcast %cst_72 : f32 to vector<8x256xf32>
    %355 = arith.maximumf %353, %354 : vector<8x256xf32>
    %356 = vector.broadcast %342 : vector<8x1xf32> to vector<8x256xf32>
    %357 = vector.broadcast %19 : vector<1x256xf32> to vector<8x256xf32>
    %358 = arith.minimumf %356, %357 : vector<8x256xf32>
    %359 = vector.broadcast %340 : vector<8x1xf32> to vector<8x256xf32>
    %360 = vector.broadcast %13 : vector<1x256xf32> to vector<8x256xf32>
    %361 = arith.maximumf %359, %360 : vector<8x256xf32>
    %362 = arith.subf %358, %361 : vector<8x256xf32>
    %cst_73 = arith.constant 0.000000e+00 : f32
    %363 = vector.broadcast %cst_73 : f32 to vector<8x256xf32>
    %364 = arith.maximumf %362, %363 : vector<8x256xf32>
    %365 = arith.mulf %355, %364 : vector<8x256xf32>
    %366 = arith.subf %341, %339 : vector<8x1xf32>
    %367 = arith.subf %342, %340 : vector<8x1xf32>
    %368 = arith.mulf %366, %367 : vector<8x1xf32>
    %369 = vector.broadcast %368 : vector<8x1xf32> to vector<8x256xf32>
    %370 = vector.broadcast %22 : vector<1x256xf32> to vector<8x256xf32>
    %371 = arith.addf %369, %370 : vector<8x256xf32>
    %372 = arith.subf %371, %365 : vector<8x256xf32>
    %373 = tpu.reciprocal %372 {approx = true} : vector<8x256xf32> -> vector<8x256xf32>
    %374 = arith.mulf %365, %373 : vector<8x256xf32>
    %375 = vector.broadcast %346 : vector<8x1xi1> to vector<8x256xi1>
    %376 = vector.broadcast %7 : vector<1x256xi1> to vector<8x256xi1>
    %377 = arith.andi %375, %376 : vector<8x256xi1>
    %cst_74 = arith.constant -1.000000e+00 : f32
    %378 = vector.broadcast %cst_74 : f32 to vector<8x256xf32>
    %379 = arith.select %377, %374, %378 : vector<8x256xi1>, vector<8x256xf32>
    %380 = arith.cmpf ogt, %379, %306 : vector<8x256xf32>
    %c4_i32 = arith.constant 4 : i32
    %381 = vector.broadcast %c4_i32 : i32 to vector<8x256xi32>
    %382 = arith.select %380, %381, %305 : vector<8x256xi1>, vector<8x256xi32>
    %383 = arith.select %380, %379, %306 : vector<8x256xi1>, vector<8x256xf32>
    %cst_75 = arith.constant dense<0xFF800000> : vector<8xf32>
    %384 = vector.multi_reduction <maximumf>, %379, %cst_75 [1] : vector<8x256xf32> to vector<8xf32>
    %385 = vector.shape_cast %384 : vector<8xf32> to vector<8x1xf32>
    %386 = vector.broadcast %385 : vector<8x1xf32> to vector<8x256xf32>
    %387 = arith.cmpf oeq, %379, %386 : vector<8x256xf32>
    %c256_i32_76 = arith.constant 256 : i32
    %388 = vector.shape_cast %23 : vector<1x256xi32> to vector<1x256xi32>
    %389 = vector.broadcast %388 : vector<1x256xi32> to vector<8x256xi32>
    %390 = vector.broadcast %c256_i32_76 : i32 to vector<8x256xi32>
    %391 = arith.select %387, %389, %390 : vector<8x256xi1>, vector<8x256xi32>
    %cst_77 = arith.constant dense<2147483647> : vector<8xi32>
    %392 = vector.multi_reduction <minsi>, %391, %cst_77 [1] : vector<8x256xi32> to vector<8xi32>
    %393 = vector.shape_cast %392 : vector<8xi32> to vector<8x1xi32>
    %394 = vector.broadcast %23 : vector<1x256xi32> to vector<8x256xi32>
    %395 = vector.broadcast %393 : vector<8x1xi32> to vector<8x256xi32>
    %396 = arith.cmpi eq, %394, %395 : vector<8x256xi32>
    %cst_78 = arith.constant 2.000000e-01 : f32
    %397 = vector.broadcast %cst_78 : f32 to vector<8x1xf32>
    %398 = arith.cmpf oge, %385, %397 : vector<8x1xf32>
    %399 = arith.andi %346, %398 : vector<8x1xi1>
    %400 = vector.broadcast %399 : vector<8x1xi1> to vector<8x256xi1>
    %401 = arith.andi %396, %400 : vector<8x256xi1>
    %cst_79 = arith.constant 1.000000e+00 : f32
    %cst_80 = arith.constant 0.000000e+00 : f32
    %402 = vector.broadcast %cst_79 : f32 to vector<8x256xf32>
    %403 = vector.broadcast %cst_80 : f32 to vector<8x256xf32>
    %404 = arith.select %401, %402, %403 : vector<8x256xi1>, vector<8x256xf32>
    %405 = arith.maximumf %328, %404 : vector<8x256xf32>
    %406 = vector.broadcast %346 : vector<8x1xi1> to vector<8x256xi1>
    %407 = arith.andi %396, %406 : vector<8x256xi1>
    %c4_i32_81 = arith.constant 4 : i32
    %408 = vector.broadcast %c4_i32_81 : i32 to vector<8x256xi32>
    %409 = arith.select %407, %408, %332 : vector<8x256xi1>, vector<8x256xi32>
    %cst_82 = arith.constant 1.000000e+00 : f32
    %cst_83 = arith.constant 0.000000e+00 : f32
    %410 = vector.broadcast %cst_82 : f32 to vector<8x1xf32>
    %411 = vector.broadcast %cst_83 : f32 to vector<8x1xf32>
    %412 = arith.select %399, %410, %411 : vector<8x1xi1>, vector<8x1xf32>
    %413 = arith.addf %336, %412 : vector<8x1xf32>
    %c5 = arith.constant 5 : index
    %c0_84 = arith.constant 0 : index
    %c0_85 = arith.constant 0 : index
    %414 = vector.load %arg4[%c5, %c0_84, %c0_85] : memref<8x8x8xf32, #tpu.memory_space<vmem>>, vector<1x8x8xf32>
    %415 = vector.shape_cast %414 : vector<1x8x8xf32> to vector<8x8xf32>
    %416 = vector.extract_strided_slice %415 {offsets = [0, 0], sizes = [8, 1], strides = [1, 1]} : vector<8x8xf32> to vector<8x1xf32>
    %417 = vector.extract_strided_slice %415 {offsets = [0, 1], sizes = [8, 1], strides = [1, 1]} : vector<8x8xf32> to vector<8x1xf32>
    %418 = vector.extract_strided_slice %415 {offsets = [0, 2], sizes = [8, 1], strides = [1, 1]} : vector<8x8xf32> to vector<8x1xf32>
    %419 = vector.extract_strided_slice %415 {offsets = [0, 3], sizes = [8, 1], strides = [1, 1]} : vector<8x8xf32> to vector<8x1xf32>
    %420 = vector.extract_strided_slice %415 {offsets = [0, 4], sizes = [8, 1], strides = [1, 1]} : vector<8x8xf32> to vector<8x1xf32>
    %421 = vector.extract_strided_slice %415 {offsets = [0, 5], sizes = [8, 1], strides = [1, 1]} : vector<8x8xf32> to vector<8x1xf32>
    %cst_86 = arith.constant 0.000000e+00 : f32
    %422 = vector.broadcast %cst_86 : f32 to vector<8x1xf32>
    %423 = arith.cmpf ogt, %421, %422 : vector<8x1xf32>
    %424 = vector.broadcast %418 : vector<8x1xf32> to vector<8x256xf32>
    %425 = vector.broadcast %16 : vector<1x256xf32> to vector<8x256xf32>
    %426 = arith.minimumf %424, %425 : vector<8x256xf32>
    %427 = vector.broadcast %416 : vector<8x1xf32> to vector<8x256xf32>
    %428 = vector.broadcast %10 : vector<1x256xf32> to vector<8x256xf32>
    %429 = arith.maximumf %427, %428 : vector<8x256xf32>
    %430 = arith.subf %426, %429 : vector<8x256xf32>
    %cst_87 = arith.constant 0.000000e+00 : f32
    %431 = vector.broadcast %cst_87 : f32 to vector<8x256xf32>
    %432 = arith.maximumf %430, %431 : vector<8x256xf32>
    %433 = vector.broadcast %419 : vector<8x1xf32> to vector<8x256xf32>
    %434 = vector.broadcast %19 : vector<1x256xf32> to vector<8x256xf32>
    %435 = arith.minimumf %433, %434 : vector<8x256xf32>
    %436 = vector.broadcast %417 : vector<8x1xf32> to vector<8x256xf32>
    %437 = vector.broadcast %13 : vector<1x256xf32> to vector<8x256xf32>
    %438 = arith.maximumf %436, %437 : vector<8x256xf32>
    %439 = arith.subf %435, %438 : vector<8x256xf32>
    %cst_88 = arith.constant 0.000000e+00 : f32
    %440 = vector.broadcast %cst_88 : f32 to vector<8x256xf32>
    %441 = arith.maximumf %439, %440 : vector<8x256xf32>
    %442 = arith.mulf %432, %441 : vector<8x256xf32>
    %443 = arith.subf %418, %416 : vector<8x1xf32>
    %444 = arith.subf %419, %417 : vector<8x1xf32>
    %445 = arith.mulf %443, %444 : vector<8x1xf32>
    %446 = vector.broadcast %445 : vector<8x1xf32> to vector<8x256xf32>
    %447 = vector.broadcast %22 : vector<1x256xf32> to vector<8x256xf32>
    %448 = arith.addf %446, %447 : vector<8x256xf32>
    %449 = arith.subf %448, %442 : vector<8x256xf32>
    %450 = tpu.reciprocal %449 {approx = true} : vector<8x256xf32> -> vector<8x256xf32>
    %451 = arith.mulf %442, %450 : vector<8x256xf32>
    %452 = vector.broadcast %423 : vector<8x1xi1> to vector<8x256xi1>
    %453 = vector.broadcast %7 : vector<1x256xi1> to vector<8x256xi1>
    %454 = arith.andi %452, %453 : vector<8x256xi1>
    %cst_89 = arith.constant -1.000000e+00 : f32
    %455 = vector.broadcast %cst_89 : f32 to vector<8x256xf32>
    %456 = arith.select %454, %451, %455 : vector<8x256xi1>, vector<8x256xf32>
    %457 = arith.cmpf ogt, %456, %383 : vector<8x256xf32>
    %c5_i32 = arith.constant 5 : i32
    %458 = vector.broadcast %c5_i32 : i32 to vector<8x256xi32>
    %459 = arith.select %457, %458, %382 : vector<8x256xi1>, vector<8x256xi32>
    %460 = arith.select %457, %456, %383 : vector<8x256xi1>, vector<8x256xf32>
    %cst_90 = arith.constant dense<0xFF800000> : vector<8xf32>
    %461 = vector.multi_reduction <maximumf>, %456, %cst_90 [1] : vector<8x256xf32> to vector<8xf32>
    %462 = vector.shape_cast %461 : vector<8xf32> to vector<8x1xf32>
    %463 = vector.broadcast %462 : vector<8x1xf32> to vector<8x256xf32>
    %464 = arith.cmpf oeq, %456, %463 : vector<8x256xf32>
    %c256_i32_91 = arith.constant 256 : i32
    %465 = vector.shape_cast %23 : vector<1x256xi32> to vector<1x256xi32>
    %466 = vector.broadcast %465 : vector<1x256xi32> to vector<8x256xi32>
    %467 = vector.broadcast %c256_i32_91 : i32 to vector<8x256xi32>
    %468 = arith.select %464, %466, %467 : vector<8x256xi1>, vector<8x256xi32>
    %cst_92 = arith.constant dense<2147483647> : vector<8xi32>
    %469 = vector.multi_reduction <minsi>, %468, %cst_92 [1] : vector<8x256xi32> to vector<8xi32>
    %470 = vector.shape_cast %469 : vector<8xi32> to vector<8x1xi32>
    %471 = vector.broadcast %23 : vector<1x256xi32> to vector<8x256xi32>
    %472 = vector.broadcast %470 : vector<8x1xi32> to vector<8x256xi32>
    %473 = arith.cmpi eq, %471, %472 : vector<8x256xi32>
    %cst_93 = arith.constant 2.000000e-01 : f32
    %474 = vector.broadcast %cst_93 : f32 to vector<8x1xf32>
    %475 = arith.cmpf oge, %462, %474 : vector<8x1xf32>
    %476 = arith.andi %423, %475 : vector<8x1xi1>
    %477 = vector.broadcast %476 : vector<8x1xi1> to vector<8x256xi1>
    %478 = arith.andi %473, %477 : vector<8x256xi1>
    %cst_94 = arith.constant 1.000000e+00 : f32
    %cst_95 = arith.constant 0.000000e+00 : f32
    %479 = vector.broadcast %cst_94 : f32 to vector<8x256xf32>
    %480 = vector.broadcast %cst_95 : f32 to vector<8x256xf32>
    %481 = arith.select %478, %479, %480 : vector<8x256xi1>, vector<8x256xf32>
    %482 = arith.maximumf %405, %481 : vector<8x256xf32>
    %483 = vector.broadcast %423 : vector<8x1xi1> to vector<8x256xi1>
    %484 = arith.andi %473, %483 : vector<8x256xi1>
    %c5_i32_96 = arith.constant 5 : i32
    %485 = vector.broadcast %c5_i32_96 : i32 to vector<8x256xi32>
    %486 = arith.select %484, %485, %409 : vector<8x256xi1>, vector<8x256xi32>
    %cst_97 = arith.constant 1.000000e+00 : f32
    %cst_98 = arith.constant 0.000000e+00 : f32
    %487 = vector.broadcast %cst_97 : f32 to vector<8x1xf32>
    %488 = vector.broadcast %cst_98 : f32 to vector<8x1xf32>
    %489 = arith.select %476, %487, %488 : vector<8x1xi1>, vector<8x1xf32>
    %490 = arith.addf %413, %489 : vector<8x1xf32>
    %c6 = arith.constant 6 : index
    %c0_99 = arith.constant 0 : index
    %c0_100 = arith.constant 0 : index
    %491 = vector.load %arg4[%c6, %c0_99, %c0_100] : memref<8x8x8xf32, #tpu.memory_space<vmem>>, vector<1x8x8xf32>
    %492 = vector.shape_cast %491 : vector<1x8x8xf32> to vector<8x8xf32>
    %493 = vector.extract_strided_slice %492 {offsets = [0, 0], sizes = [8, 1], strides = [1, 1]} : vector<8x8xf32> to vector<8x1xf32>
    %494 = vector.extract_strided_slice %492 {offsets = [0, 1], sizes = [8, 1], strides = [1, 1]} : vector<8x8xf32> to vector<8x1xf32>
    %495 = vector.extract_strided_slice %492 {offsets = [0, 2], sizes = [8, 1], strides = [1, 1]} : vector<8x8xf32> to vector<8x1xf32>
    %496 = vector.extract_strided_slice %492 {offsets = [0, 3], sizes = [8, 1], strides = [1, 1]} : vector<8x8xf32> to vector<8x1xf32>
    %497 = vector.extract_strided_slice %492 {offsets = [0, 4], sizes = [8, 1], strides = [1, 1]} : vector<8x8xf32> to vector<8x1xf32>
    %498 = vector.extract_strided_slice %492 {offsets = [0, 5], sizes = [8, 1], strides = [1, 1]} : vector<8x8xf32> to vector<8x1xf32>
    %cst_101 = arith.constant 0.000000e+00 : f32
    %499 = vector.broadcast %cst_101 : f32 to vector<8x1xf32>
    %500 = arith.cmpf ogt, %498, %499 : vector<8x1xf32>
    %501 = vector.broadcast %495 : vector<8x1xf32> to vector<8x256xf32>
    %502 = vector.broadcast %16 : vector<1x256xf32> to vector<8x256xf32>
    %503 = arith.minimumf %501, %502 : vector<8x256xf32>
    %504 = vector.broadcast %493 : vector<8x1xf32> to vector<8x256xf32>
    %505 = vector.broadcast %10 : vector<1x256xf32> to vector<8x256xf32>
    %506 = arith.maximumf %504, %505 : vector<8x256xf32>
    %507 = arith.subf %503, %506 : vector<8x256xf32>
    %cst_102 = arith.constant 0.000000e+00 : f32
    %508 = vector.broadcast %cst_102 : f32 to vector<8x256xf32>
    %509 = arith.maximumf %507, %508 : vector<8x256xf32>
    %510 = vector.broadcast %496 : vector<8x1xf32> to vector<8x256xf32>
    %511 = vector.broadcast %19 : vector<1x256xf32> to vector<8x256xf32>
    %512 = arith.minimumf %510, %511 : vector<8x256xf32>
    %513 = vector.broadcast %494 : vector<8x1xf32> to vector<8x256xf32>
    %514 = vector.broadcast %13 : vector<1x256xf32> to vector<8x256xf32>
    %515 = arith.maximumf %513, %514 : vector<8x256xf32>
    %516 = arith.subf %512, %515 : vector<8x256xf32>
    %cst_103 = arith.constant 0.000000e+00 : f32
    %517 = vector.broadcast %cst_103 : f32 to vector<8x256xf32>
    %518 = arith.maximumf %516, %517 : vector<8x256xf32>
    %519 = arith.mulf %509, %518 : vector<8x256xf32>
    %520 = arith.subf %495, %493 : vector<8x1xf32>
    %521 = arith.subf %496, %494 : vector<8x1xf32>
    %522 = arith.mulf %520, %521 : vector<8x1xf32>
    %523 = vector.broadcast %522 : vector<8x1xf32> to vector<8x256xf32>
    %524 = vector.broadcast %22 : vector<1x256xf32> to vector<8x256xf32>
    %525 = arith.addf %523, %524 : vector<8x256xf32>
    %526 = arith.subf %525, %519 : vector<8x256xf32>
    %527 = tpu.reciprocal %526 {approx = true} : vector<8x256xf32> -> vector<8x256xf32>
    %528 = arith.mulf %519, %527 : vector<8x256xf32>
    %529 = vector.broadcast %500 : vector<8x1xi1> to vector<8x256xi1>
    %530 = vector.broadcast %7 : vector<1x256xi1> to vector<8x256xi1>
    %531 = arith.andi %529, %530 : vector<8x256xi1>
    %cst_104 = arith.constant -1.000000e+00 : f32
    %532 = vector.broadcast %cst_104 : f32 to vector<8x256xf32>
    %533 = arith.select %531, %528, %532 : vector<8x256xi1>, vector<8x256xf32>
    %534 = arith.cmpf ogt, %533, %460 : vector<8x256xf32>
    %c6_i32 = arith.constant 6 : i32
    %535 = vector.broadcast %c6_i32 : i32 to vector<8x256xi32>
    %536 = arith.select %534, %535, %459 : vector<8x256xi1>, vector<8x256xi32>
    %537 = arith.select %534, %533, %460 : vector<8x256xi1>, vector<8x256xf32>
    %cst_105 = arith.constant dense<0xFF800000> : vector<8xf32>
    %538 = vector.multi_reduction <maximumf>, %533, %cst_105 [1] : vector<8x256xf32> to vector<8xf32>
    %539 = vector.shape_cast %538 : vector<8xf32> to vector<8x1xf32>
    %540 = vector.broadcast %539 : vector<8x1xf32> to vector<8x256xf32>
    %541 = arith.cmpf oeq, %533, %540 : vector<8x256xf32>
    %c256_i32_106 = arith.constant 256 : i32
    %542 = vector.shape_cast %23 : vector<1x256xi32> to vector<1x256xi32>
    %543 = vector.broadcast %542 : vector<1x256xi32> to vector<8x256xi32>
    %544 = vector.broadcast %c256_i32_106 : i32 to vector<8x256xi32>
    %545 = arith.select %541, %543, %544 : vector<8x256xi1>, vector<8x256xi32>
    %cst_107 = arith.constant dense<2147483647> : vector<8xi32>
    %546 = vector.multi_reduction <minsi>, %545, %cst_107 [1] : vector<8x256xi32> to vector<8xi32>
    %547 = vector.shape_cast %546 : vector<8xi32> to vector<8x1xi32>
    %548 = vector.broadcast %23 : vector<1x256xi32> to vector<8x256xi32>
    %549 = vector.broadcast %547 : vector<8x1xi32> to vector<8x256xi32>
    %550 = arith.cmpi eq, %548, %549 : vector<8x256xi32>
    %cst_108 = arith.constant 2.000000e-01 : f32
    %551 = vector.broadcast %cst_108 : f32 to vector<8x1xf32>
    %552 = arith.cmpf oge, %539, %551 : vector<8x1xf32>
    %553 = arith.andi %500, %552 : vector<8x1xi1>
    %554 = vector.broadcast %553 : vector<8x1xi1> to vector<8x256xi1>
    %555 = arith.andi %550, %554 : vector<8x256xi1>
    %cst_109 = arith.constant 1.000000e+00 : f32
    %cst_110 = arith.constant 0.000000e+00 : f32
    %556 = vector.broadcast %cst_109 : f32 to vector<8x256xf32>
    %557 = vector.broadcast %cst_110 : f32 to vector<8x256xf32>
    %558 = arith.select %555, %556, %557 : vector<8x256xi1>, vector<8x256xf32>
    %559 = arith.maximumf %482, %558 : vector<8x256xf32>
    %560 = vector.broadcast %500 : vector<8x1xi1> to vector<8x256xi1>
    %561 = arith.andi %550, %560 : vector<8x256xi1>
    %c6_i32_111 = arith.constant 6 : i32
    %562 = vector.broadcast %c6_i32_111 : i32 to vector<8x256xi32>
    %563 = arith.select %561, %562, %486 : vector<8x256xi1>, vector<8x256xi32>
    %cst_112 = arith.constant 1.000000e+00 : f32
    %cst_113 = arith.constant 0.000000e+00 : f32
    %564 = vector.broadcast %cst_112 : f32 to vector<8x1xf32>
    %565 = vector.broadcast %cst_113 : f32 to vector<8x1xf32>
    %566 = arith.select %553, %564, %565 : vector<8x1xi1>, vector<8x1xf32>
    %567 = arith.addf %490, %566 : vector<8x1xf32>
    %c7 = arith.constant 7 : index
    %c0_114 = arith.constant 0 : index
    %c0_115 = arith.constant 0 : index
    %568 = vector.load %arg4[%c7, %c0_114, %c0_115] : memref<8x8x8xf32, #tpu.memory_space<vmem>>, vector<1x8x8xf32>
    %569 = vector.shape_cast %568 : vector<1x8x8xf32> to vector<8x8xf32>
    %570 = vector.extract_strided_slice %569 {offsets = [0, 0], sizes = [8, 1], strides = [1, 1]} : vector<8x8xf32> to vector<8x1xf32>
    %571 = vector.extract_strided_slice %569 {offsets = [0, 1], sizes = [8, 1], strides = [1, 1]} : vector<8x8xf32> to vector<8x1xf32>
    %572 = vector.extract_strided_slice %569 {offsets = [0, 2], sizes = [8, 1], strides = [1, 1]} : vector<8x8xf32> to vector<8x1xf32>
    %573 = vector.extract_strided_slice %569 {offsets = [0, 3], sizes = [8, 1], strides = [1, 1]} : vector<8x8xf32> to vector<8x1xf32>
    %574 = vector.extract_strided_slice %569 {offsets = [0, 4], sizes = [8, 1], strides = [1, 1]} : vector<8x8xf32> to vector<8x1xf32>
    %575 = vector.extract_strided_slice %569 {offsets = [0, 5], sizes = [8, 1], strides = [1, 1]} : vector<8x8xf32> to vector<8x1xf32>
    %cst_116 = arith.constant 0.000000e+00 : f32
    %576 = vector.broadcast %cst_116 : f32 to vector<8x1xf32>
    %577 = arith.cmpf ogt, %575, %576 : vector<8x1xf32>
    %578 = vector.broadcast %572 : vector<8x1xf32> to vector<8x256xf32>
    %579 = vector.broadcast %16 : vector<1x256xf32> to vector<8x256xf32>
    %580 = arith.minimumf %578, %579 : vector<8x256xf32>
    %581 = vector.broadcast %570 : vector<8x1xf32> to vector<8x256xf32>
    %582 = vector.broadcast %10 : vector<1x256xf32> to vector<8x256xf32>
    %583 = arith.maximumf %581, %582 : vector<8x256xf32>
    %584 = arith.subf %580, %583 : vector<8x256xf32>
    %cst_117 = arith.constant 0.000000e+00 : f32
    %585 = vector.broadcast %cst_117 : f32 to vector<8x256xf32>
    %586 = arith.maximumf %584, %585 : vector<8x256xf32>
    %587 = vector.broadcast %573 : vector<8x1xf32> to vector<8x256xf32>
    %588 = vector.broadcast %19 : vector<1x256xf32> to vector<8x256xf32>
    %589 = arith.minimumf %587, %588 : vector<8x256xf32>
    %590 = vector.broadcast %571 : vector<8x1xf32> to vector<8x256xf32>
    %591 = vector.broadcast %13 : vector<1x256xf32> to vector<8x256xf32>
    %592 = arith.maximumf %590, %591 : vector<8x256xf32>
    %593 = arith.subf %589, %592 : vector<8x256xf32>
    %cst_118 = arith.constant 0.000000e+00 : f32
    %594 = vector.broadcast %cst_118 : f32 to vector<8x256xf32>
    %595 = arith.maximumf %593, %594 : vector<8x256xf32>
    %596 = arith.mulf %586, %595 : vector<8x256xf32>
    %597 = arith.subf %572, %570 : vector<8x1xf32>
    %598 = arith.subf %573, %571 : vector<8x1xf32>
    %599 = arith.mulf %597, %598 : vector<8x1xf32>
    %600 = vector.broadcast %599 : vector<8x1xf32> to vector<8x256xf32>
    %601 = vector.broadcast %22 : vector<1x256xf32> to vector<8x256xf32>
    %602 = arith.addf %600, %601 : vector<8x256xf32>
    %603 = arith.subf %602, %596 : vector<8x256xf32>
    %604 = tpu.reciprocal %603 {approx = true} : vector<8x256xf32> -> vector<8x256xf32>
    %605 = arith.mulf %596, %604 : vector<8x256xf32>
    %606 = vector.broadcast %577 : vector<8x1xi1> to vector<8x256xi1>
    %607 = vector.broadcast %7 : vector<1x256xi1> to vector<8x256xi1>
    %608 = arith.andi %606, %607 : vector<8x256xi1>
    %cst_119 = arith.constant -1.000000e+00 : f32
    %609 = vector.broadcast %cst_119 : f32 to vector<8x256xf32>
    %610 = arith.select %608, %605, %609 : vector<8x256xi1>, vector<8x256xf32>
    %611 = arith.cmpf ogt, %610, %537 : vector<8x256xf32>
    %c7_i32 = arith.constant 7 : i32
    %612 = vector.broadcast %c7_i32 : i32 to vector<8x256xi32>
    %613 = arith.select %611, %612, %536 : vector<8x256xi1>, vector<8x256xi32>
    %614 = arith.select %611, %610, %537 : vector<8x256xi1>, vector<8x256xf32>
    %cst_120 = arith.constant dense<0xFF800000> : vector<8xf32>
    %615 = vector.multi_reduction <maximumf>, %610, %cst_120 [1] : vector<8x256xf32> to vector<8xf32>
    %616 = vector.shape_cast %615 : vector<8xf32> to vector<8x1xf32>
    %617 = vector.broadcast %616 : vector<8x1xf32> to vector<8x256xf32>
    %618 = arith.cmpf oeq, %610, %617 : vector<8x256xf32>
    %c256_i32_121 = arith.constant 256 : i32
    %619 = vector.shape_cast %23 : vector<1x256xi32> to vector<1x256xi32>
    %620 = vector.broadcast %619 : vector<1x256xi32> to vector<8x256xi32>
    %621 = vector.broadcast %c256_i32_121 : i32 to vector<8x256xi32>
    %622 = arith.select %618, %620, %621 : vector<8x256xi1>, vector<8x256xi32>
    %cst_122 = arith.constant dense<2147483647> : vector<8xi32>
    %623 = vector.multi_reduction <minsi>, %622, %cst_122 [1] : vector<8x256xi32> to vector<8xi32>
    %624 = vector.shape_cast %623 : vector<8xi32> to vector<8x1xi32>
    %625 = vector.broadcast %23 : vector<1x256xi32> to vector<8x256xi32>
    %626 = vector.broadcast %624 : vector<8x1xi32> to vector<8x256xi32>
    %627 = arith.cmpi eq, %625, %626 : vector<8x256xi32>
    %cst_123 = arith.constant 2.000000e-01 : f32
    %628 = vector.broadcast %cst_123 : f32 to vector<8x1xf32>
    %629 = arith.cmpf oge, %616, %628 : vector<8x1xf32>
    %630 = arith.andi %577, %629 : vector<8x1xi1>
    %631 = vector.broadcast %630 : vector<8x1xi1> to vector<8x256xi1>
    %632 = arith.andi %627, %631 : vector<8x256xi1>
    %cst_124 = arith.constant 1.000000e+00 : f32
    %cst_125 = arith.constant 0.000000e+00 : f32
    %633 = vector.broadcast %cst_124 : f32 to vector<8x256xf32>
    %634 = vector.broadcast %cst_125 : f32 to vector<8x256xf32>
    %635 = arith.select %632, %633, %634 : vector<8x256xi1>, vector<8x256xf32>
    %636 = arith.maximumf %559, %635 : vector<8x256xf32>
    %637 = vector.broadcast %577 : vector<8x1xi1> to vector<8x256xi1>
    %638 = arith.andi %627, %637 : vector<8x256xi1>
    %c7_i32_126 = arith.constant 7 : i32
    %639 = vector.broadcast %c7_i32_126 : i32 to vector<8x256xi32>
    %640 = arith.select %638, %639, %563 : vector<8x256xi1>, vector<8x256xi32>
    %cst_127 = arith.constant 1.000000e+00 : f32
    %cst_128 = arith.constant 0.000000e+00 : f32
    %641 = vector.broadcast %cst_127 : f32 to vector<8x1xf32>
    %642 = vector.broadcast %cst_128 : f32 to vector<8x1xf32>
    %643 = arith.select %630, %641, %642 : vector<8x1xi1>, vector<8x1xf32>
    %644 = arith.addf %567, %643 : vector<8x1xf32>
    %cst_129 = arith.constant 5.000000e-01 : f32
    %645 = vector.broadcast %cst_129 : f32 to vector<8x256xf32>
    %646 = arith.cmpf ogt, %636, %645 : vector<8x256xf32>
    %cst_130 = arith.constant 2.000000e+00 : f32
    %647 = vector.broadcast %cst_130 : f32 to vector<8x256xf32>
    %648 = arith.select %646, %647, %614 : vector<8x256xi1>, vector<8x256xf32>
    %c0_i32_131 = arith.constant 0 : i32
    %649 = vector.broadcast %c0_i32_131 : i32 to vector<8x256xi32>
    %650 = arith.cmpi sge, %640, %649 : vector<8x256xi32>
    %651 = arith.select %650, %640, %613 : vector<8x256xi1>, vector<8x256xi32>
    %cst_132 = arith.constant 5.000000e-01 : f32
    %652 = vector.broadcast %cst_132 : f32 to vector<8x1xf32>
    %653 = arith.cmpf olt, %644, %652 : vector<8x1xf32>
    %cst_133 = arith.constant 0.000000e+00 : f32
    %654 = vector.broadcast %cst_133 : f32 to vector<8x256xf32>
    %cst_134 = arith.constant 0.000000e+00 : f32
    %655 = vector.broadcast %cst_134 : f32 to vector<8x256xf32>
    %cst_135 = arith.constant 0.000000e+00 : f32
    %656 = vector.broadcast %cst_135 : f32 to vector<8x256xf32>
    %cst_136 = arith.constant 0.000000e+00 : f32
    %657 = vector.broadcast %cst_136 : f32 to vector<8x256xf32>
    %cst_137 = arith.constant 0.000000e+00 : f32
    %658 = vector.broadcast %cst_137 : f32 to vector<8x256xf32>
    %c0_i32_138 = arith.constant 0 : i32
    %659 = vector.broadcast %c0_i32_138 : i32 to vector<8x256xi32>
    %660 = arith.cmpi eq, %651, %659 : vector<8x256xi32>
    %661 = vector.shape_cast %31 : vector<8x1xf32> to vector<8x1xf32>
    %662 = vector.broadcast %661 : vector<8x1xf32> to vector<8x256xf32>
    %663 = arith.select %660, %662, %654 : vector<8x256xi1>, vector<8x256xf32>
    %664 = vector.shape_cast %32 : vector<8x1xf32> to vector<8x1xf32>
    %665 = vector.broadcast %664 : vector<8x1xf32> to vector<8x256xf32>
    %666 = arith.select %660, %665, %655 : vector<8x256xi1>, vector<8x256xf32>
    %667 = vector.shape_cast %33 : vector<8x1xf32> to vector<8x1xf32>
    %668 = vector.broadcast %667 : vector<8x1xf32> to vector<8x256xf32>
    %669 = arith.select %660, %668, %656 : vector<8x256xi1>, vector<8x256xf32>
    %670 = vector.shape_cast %34 : vector<8x1xf32> to vector<8x1xf32>
    %671 = vector.broadcast %670 : vector<8x1xf32> to vector<8x256xf32>
    %672 = arith.select %660, %671, %657 : vector<8x256xi1>, vector<8x256xf32>
    %673 = vector.shape_cast %35 : vector<8x1xf32> to vector<8x1xf32>
    %674 = vector.broadcast %673 : vector<8x1xf32> to vector<8x256xf32>
    %675 = arith.select %660, %674, %658 : vector<8x256xi1>, vector<8x256xf32>
    %c1_i32_139 = arith.constant 1 : i32
    %676 = vector.broadcast %c1_i32_139 : i32 to vector<8x256xi32>
    %677 = arith.cmpi eq, %651, %676 : vector<8x256xi32>
    %678 = vector.shape_cast %108 : vector<8x1xf32> to vector<8x1xf32>
    %679 = vector.broadcast %678 : vector<8x1xf32> to vector<8x256xf32>
    %680 = arith.select %677, %679, %663 : vector<8x256xi1>, vector<8x256xf32>
    %681 = vector.shape_cast %109 : vector<8x1xf32> to vector<8x1xf32>
    %682 = vector.broadcast %681 : vector<8x1xf32> to vector<8x256xf32>
    %683 = arith.select %677, %682, %666 : vector<8x256xi1>, vector<8x256xf32>
    %684 = vector.shape_cast %110 : vector<8x1xf32> to vector<8x1xf32>
    %685 = vector.broadcast %684 : vector<8x1xf32> to vector<8x256xf32>
    %686 = arith.select %677, %685, %669 : vector<8x256xi1>, vector<8x256xf32>
    %687 = vector.shape_cast %111 : vector<8x1xf32> to vector<8x1xf32>
    %688 = vector.broadcast %687 : vector<8x1xf32> to vector<8x256xf32>
    %689 = arith.select %677, %688, %672 : vector<8x256xi1>, vector<8x256xf32>
    %690 = vector.shape_cast %112 : vector<8x1xf32> to vector<8x1xf32>
    %691 = vector.broadcast %690 : vector<8x1xf32> to vector<8x256xf32>
    %692 = arith.select %677, %691, %675 : vector<8x256xi1>, vector<8x256xf32>
    %c2_i32_140 = arith.constant 2 : i32
    %693 = vector.broadcast %c2_i32_140 : i32 to vector<8x256xi32>
    %694 = arith.cmpi eq, %651, %693 : vector<8x256xi32>
    %695 = vector.shape_cast %185 : vector<8x1xf32> to vector<8x1xf32>
    %696 = vector.broadcast %695 : vector<8x1xf32> to vector<8x256xf32>
    %697 = arith.select %694, %696, %680 : vector<8x256xi1>, vector<8x256xf32>
    %698 = vector.shape_cast %186 : vector<8x1xf32> to vector<8x1xf32>
    %699 = vector.broadcast %698 : vector<8x1xf32> to vector<8x256xf32>
    %700 = arith.select %694, %699, %683 : vector<8x256xi1>, vector<8x256xf32>
    %701 = vector.shape_cast %187 : vector<8x1xf32> to vector<8x1xf32>
    %702 = vector.broadcast %701 : vector<8x1xf32> to vector<8x256xf32>
    %703 = arith.select %694, %702, %686 : vector<8x256xi1>, vector<8x256xf32>
    %704 = vector.shape_cast %188 : vector<8x1xf32> to vector<8x1xf32>
    %705 = vector.broadcast %704 : vector<8x1xf32> to vector<8x256xf32>
    %706 = arith.select %694, %705, %689 : vector<8x256xi1>, vector<8x256xf32>
    %707 = vector.shape_cast %189 : vector<8x1xf32> to vector<8x1xf32>
    %708 = vector.broadcast %707 : vector<8x1xf32> to vector<8x256xf32>
    %709 = arith.select %694, %708, %692 : vector<8x256xi1>, vector<8x256xf32>
    %c3_i32_141 = arith.constant 3 : i32
    %710 = vector.broadcast %c3_i32_141 : i32 to vector<8x256xi32>
    %711 = arith.cmpi eq, %651, %710 : vector<8x256xi32>
    %712 = vector.shape_cast %262 : vector<8x1xf32> to vector<8x1xf32>
    %713 = vector.broadcast %712 : vector<8x1xf32> to vector<8x256xf32>
    %714 = arith.select %711, %713, %697 : vector<8x256xi1>, vector<8x256xf32>
    %715 = vector.shape_cast %263 : vector<8x1xf32> to vector<8x1xf32>
    %716 = vector.broadcast %715 : vector<8x1xf32> to vector<8x256xf32>
    %717 = arith.select %711, %716, %700 : vector<8x256xi1>, vector<8x256xf32>
    %718 = vector.shape_cast %264 : vector<8x1xf32> to vector<8x1xf32>
    %719 = vector.broadcast %718 : vector<8x1xf32> to vector<8x256xf32>
    %720 = arith.select %711, %719, %703 : vector<8x256xi1>, vector<8x256xf32>
    %721 = vector.shape_cast %265 : vector<8x1xf32> to vector<8x1xf32>
    %722 = vector.broadcast %721 : vector<8x1xf32> to vector<8x256xf32>
    %723 = arith.select %711, %722, %706 : vector<8x256xi1>, vector<8x256xf32>
    %724 = vector.shape_cast %266 : vector<8x1xf32> to vector<8x1xf32>
    %725 = vector.broadcast %724 : vector<8x1xf32> to vector<8x256xf32>
    %726 = arith.select %711, %725, %709 : vector<8x256xi1>, vector<8x256xf32>
    %c4_i32_142 = arith.constant 4 : i32
    %727 = vector.broadcast %c4_i32_142 : i32 to vector<8x256xi32>
    %728 = arith.cmpi eq, %651, %727 : vector<8x256xi32>
    %729 = vector.shape_cast %339 : vector<8x1xf32> to vector<8x1xf32>
    %730 = vector.broadcast %729 : vector<8x1xf32> to vector<8x256xf32>
    %731 = arith.select %728, %730, %714 : vector<8x256xi1>, vector<8x256xf32>
    %732 = vector.shape_cast %340 : vector<8x1xf32> to vector<8x1xf32>
    %733 = vector.broadcast %732 : vector<8x1xf32> to vector<8x256xf32>
    %734 = arith.select %728, %733, %717 : vector<8x256xi1>, vector<8x256xf32>
    %735 = vector.shape_cast %341 : vector<8x1xf32> to vector<8x1xf32>
    %736 = vector.broadcast %735 : vector<8x1xf32> to vector<8x256xf32>
    %737 = arith.select %728, %736, %720 : vector<8x256xi1>, vector<8x256xf32>
    %738 = vector.shape_cast %342 : vector<8x1xf32> to vector<8x1xf32>
    %739 = vector.broadcast %738 : vector<8x1xf32> to vector<8x256xf32>
    %740 = arith.select %728, %739, %723 : vector<8x256xi1>, vector<8x256xf32>
    %741 = vector.shape_cast %343 : vector<8x1xf32> to vector<8x1xf32>
    %742 = vector.broadcast %741 : vector<8x1xf32> to vector<8x256xf32>
    %743 = arith.select %728, %742, %726 : vector<8x256xi1>, vector<8x256xf32>
    %c5_i32_143 = arith.constant 5 : i32
    %744 = vector.broadcast %c5_i32_143 : i32 to vector<8x256xi32>
    %745 = arith.cmpi eq, %651, %744 : vector<8x256xi32>
    %746 = vector.shape_cast %416 : vector<8x1xf32> to vector<8x1xf32>
    %747 = vector.broadcast %746 : vector<8x1xf32> to vector<8x256xf32>
    %748 = arith.select %745, %747, %731 : vector<8x256xi1>, vector<8x256xf32>
    %749 = vector.shape_cast %417 : vector<8x1xf32> to vector<8x1xf32>
    %750 = vector.broadcast %749 : vector<8x1xf32> to vector<8x256xf32>
    %751 = arith.select %745, %750, %734 : vector<8x256xi1>, vector<8x256xf32>
    %752 = vector.shape_cast %418 : vector<8x1xf32> to vector<8x1xf32>
    %753 = vector.broadcast %752 : vector<8x1xf32> to vector<8x256xf32>
    %754 = arith.select %745, %753, %737 : vector<8x256xi1>, vector<8x256xf32>
    %755 = vector.shape_cast %419 : vector<8x1xf32> to vector<8x1xf32>
    %756 = vector.broadcast %755 : vector<8x1xf32> to vector<8x256xf32>
    %757 = arith.select %745, %756, %740 : vector<8x256xi1>, vector<8x256xf32>
    %758 = vector.shape_cast %420 : vector<8x1xf32> to vector<8x1xf32>
    %759 = vector.broadcast %758 : vector<8x1xf32> to vector<8x256xf32>
    %760 = arith.select %745, %759, %743 : vector<8x256xi1>, vector<8x256xf32>
    %c6_i32_144 = arith.constant 6 : i32
    %761 = vector.broadcast %c6_i32_144 : i32 to vector<8x256xi32>
    %762 = arith.cmpi eq, %651, %761 : vector<8x256xi32>
    %763 = vector.shape_cast %493 : vector<8x1xf32> to vector<8x1xf32>
    %764 = vector.broadcast %763 : vector<8x1xf32> to vector<8x256xf32>
    %765 = arith.select %762, %764, %748 : vector<8x256xi1>, vector<8x256xf32>
    %766 = vector.shape_cast %494 : vector<8x1xf32> to vector<8x1xf32>
    %767 = vector.broadcast %766 : vector<8x1xf32> to vector<8x256xf32>
    %768 = arith.select %762, %767, %751 : vector<8x256xi1>, vector<8x256xf32>
    %769 = vector.shape_cast %495 : vector<8x1xf32> to vector<8x1xf32>
    %770 = vector.broadcast %769 : vector<8x1xf32> to vector<8x256xf32>
    %771 = arith.select %762, %770, %754 : vector<8x256xi1>, vector<8x256xf32>
    %772 = vector.shape_cast %496 : vector<8x1xf32> to vector<8x1xf32>
    %773 = vector.broadcast %772 : vector<8x1xf32> to vector<8x256xf32>
    %774 = arith.select %762, %773, %757 : vector<8x256xi1>, vector<8x256xf32>
    %775 = vector.shape_cast %497 : vector<8x1xf32> to vector<8x1xf32>
    %776 = vector.broadcast %775 : vector<8x1xf32> to vector<8x256xf32>
    %777 = arith.select %762, %776, %760 : vector<8x256xi1>, vector<8x256xf32>
    %c7_i32_145 = arith.constant 7 : i32
    %778 = vector.broadcast %c7_i32_145 : i32 to vector<8x256xi32>
    %779 = arith.cmpi eq, %651, %778 : vector<8x256xi32>
    %780 = vector.shape_cast %570 : vector<8x1xf32> to vector<8x1xf32>
    %781 = vector.broadcast %780 : vector<8x1xf32> to vector<8x256xf32>
    %782 = arith.select %779, %781, %765 : vector<8x256xi1>, vector<8x256xf32>
    %783 = vector.shape_cast %571 : vector<8x1xf32> to vector<8x1xf32>
    %784 = vector.broadcast %783 : vector<8x1xf32> to vector<8x256xf32>
    %785 = arith.select %779, %784, %768 : vector<8x256xi1>, vector<8x256xf32>
    %786 = vector.shape_cast %572 : vector<8x1xf32> to vector<8x1xf32>
    %787 = vector.broadcast %786 : vector<8x1xf32> to vector<8x256xf32>
    %788 = arith.select %779, %787, %771 : vector<8x256xi1>, vector<8x256xf32>
    %789 = vector.shape_cast %573 : vector<8x1xf32> to vector<8x1xf32>
    %790 = vector.broadcast %789 : vector<8x1xf32> to vector<8x256xf32>
    %791 = arith.select %779, %790, %774 : vector<8x256xi1>, vector<8x256xf32>
    %792 = vector.shape_cast %574 : vector<8x1xf32> to vector<8x1xf32>
    %793 = vector.broadcast %792 : vector<8x1xf32> to vector<8x256xf32>
    %794 = arith.select %779, %793, %777 : vector<8x256xi1>, vector<8x256xf32>
    %cst_146 = arith.constant 4.500000e-01 : f32
    %795 = vector.broadcast %cst_146 : f32 to vector<8x256xf32>
    %796 = arith.cmpf olt, %648, %795 : vector<8x256xf32>
    %cst_147 = arith.constant 0.000000e+00 : f32
    %797 = vector.broadcast %cst_147 : f32 to vector<8x256xf32>
    %798 = arith.select %796, %797, %794 : vector<8x256xi1>, vector<8x256xf32>
    %cst_148 = arith.constant 0.000000e+00 : f32
    %799 = vector.shape_cast %653 : vector<8x1xi1> to vector<8x1xi1>
    %800 = vector.broadcast %799 : vector<8x1xi1> to vector<8x256xi1>
    %801 = vector.broadcast %cst_148 : f32 to vector<8x256xf32>
    %802 = arith.select %800, %801, %798 : vector<8x256xi1>, vector<8x256xf32>
    %cst_149 = arith.constant 0.000000e+00 : f32
    %803 = vector.shape_cast %7 : vector<1x256xi1> to vector<1x256xi1>
    %804 = vector.broadcast %803 : vector<1x256xi1> to vector<8x256xi1>
    %805 = vector.broadcast %cst_149 : f32 to vector<8x256xf32>
    %806 = arith.select %804, %802, %805 : vector<8x256xi1>, vector<8x256xf32>
    %cst_150 = arith.constant 0.000000e+00 : f32
    %807 = vector.broadcast %cst_150 : f32 to vector<8x256xf32>
    %808 = arith.cmpf one, %806, %807 : vector<8x256xf32>
    %809 = arith.addf %782, %788 : vector<8x256xf32>
    %cst_151 = arith.constant 5.000000e-01 : f32
    %810 = vector.broadcast %cst_151 : f32 to vector<8x256xf32>
    %811 = arith.mulf %809, %810 : vector<8x256xf32>
    %812 = vector.broadcast %1 : vector<1x256xf32> to vector<8x256xf32>
    %813 = arith.subf %811, %812 : vector<8x256xf32>
    %cst_152 = arith.constant 1.000000e-01 : f32
    %814 = vector.broadcast %cst_152 : f32 to vector<1x256xf32>
    %815 = arith.mulf %814, %3 : vector<1x256xf32>
    %816 = vector.broadcast %815 : vector<1x256xf32> to vector<8x256xf32>
    %817 = arith.divf %813, %816 : vector<8x256xf32>
    %818 = arith.addf %785, %791 : vector<8x256xf32>
    %cst_153 = arith.constant 5.000000e-01 : f32
    %819 = vector.broadcast %cst_153 : f32 to vector<8x256xf32>
    %820 = arith.mulf %818, %819 : vector<8x256xf32>
    %821 = vector.broadcast %2 : vector<1x256xf32> to vector<8x256xf32>
    %822 = arith.subf %820, %821 : vector<8x256xf32>
    %cst_154 = arith.constant 1.000000e-01 : f32
    %823 = vector.broadcast %cst_154 : f32 to vector<1x256xf32>
    %824 = arith.mulf %823, %4 : vector<1x256xf32>
    %825 = vector.broadcast %824 : vector<1x256xf32> to vector<8x256xf32>
    %826 = arith.divf %822, %825 : vector<8x256xf32>
    %827 = arith.subf %788, %782 : vector<8x256xf32>
    %828 = vector.broadcast %3 : vector<1x256xf32> to vector<8x256xf32>
    %829 = arith.divf %827, %828 : vector<8x256xf32>
    %cst_155 = arith.constant 9.99999996E-13 : f32
    %830 = vector.broadcast %cst_155 : f32 to vector<8x256xf32>
    %831 = arith.maximumf %829, %830 : vector<8x256xf32>
    %832 = math.log %831 : vector<8x256xf32>
    %cst_156 = arith.constant 2.000000e-01 : f32
    %833 = vector.broadcast %cst_156 : f32 to vector<8x256xf32>
    %834 = arith.divf %832, %833 : vector<8x256xf32>
    %835 = arith.subf %791, %785 : vector<8x256xf32>
    %836 = vector.broadcast %4 : vector<1x256xf32> to vector<8x256xf32>
    %837 = arith.divf %835, %836 : vector<8x256xf32>
    %cst_157 = arith.constant 9.99999996E-13 : f32
    %838 = vector.broadcast %cst_157 : f32 to vector<8x256xf32>
    %839 = arith.maximumf %837, %838 : vector<8x256xf32>
    %840 = math.log %839 : vector<8x256xf32>
    %cst_158 = arith.constant 2.000000e-01 : f32
    %841 = vector.broadcast %cst_158 : f32 to vector<8x256xf32>
    %842 = arith.divf %840, %841 : vector<8x256xf32>
    %c0_159 = arith.constant 0 : index
    %c0_160 = arith.constant 0 : index
    %c0_161 = arith.constant 0 : index
    %843 = vector.load %arg2[%c0_159, %c0_160, %c0_161] : memref<4x8x256xf32, #tpu.memory_space<vmem>>, vector<1x8x256xf32>
    %844 = vector.shape_cast %843 : vector<1x8x256xf32> to vector<8x256xf32>
    %c1_162 = arith.constant 1 : index
    %c0_163 = arith.constant 0 : index
    %c0_164 = arith.constant 0 : index
    %845 = vector.load %arg2[%c1_162, %c0_163, %c0_164] : memref<4x8x256xf32, #tpu.memory_space<vmem>>, vector<1x8x256xf32>
    %846 = vector.shape_cast %845 : vector<1x8x256xf32> to vector<8x256xf32>
    %c2_165 = arith.constant 2 : index
    %c0_166 = arith.constant 0 : index
    %c0_167 = arith.constant 0 : index
    %847 = vector.load %arg2[%c2_165, %c0_166, %c0_167] : memref<4x8x256xf32, #tpu.memory_space<vmem>>, vector<1x8x256xf32>
    %848 = vector.shape_cast %847 : vector<1x8x256xf32> to vector<8x256xf32>
    %c3_168 = arith.constant 3 : index
    %c0_169 = arith.constant 0 : index
    %c0_170 = arith.constant 0 : index
    %849 = vector.load %arg2[%c3_168, %c0_169, %c0_170] : memref<4x8x256xf32, #tpu.memory_space<vmem>>, vector<1x8x256xf32>
    %850 = vector.shape_cast %849 : vector<1x8x256xf32> to vector<8x256xf32>
    %851 = arith.subf %844, %817 : vector<8x256xf32>
    %852 = math.absf %851 : vector<8x256xf32>
    %cst_171 = arith.constant 1.000000e+00 : f32
    %853 = vector.broadcast %cst_171 : f32 to vector<8x256xf32>
    %854 = arith.cmpf olt, %852, %853 : vector<8x256xf32>
    %cst_172 = arith.constant 5.000000e-01 : f32
    %855 = vector.broadcast %cst_172 : f32 to vector<8x256xf32>
    %856 = arith.mulf %855, %852 : vector<8x256xf32>
    %857 = arith.mulf %856, %852 : vector<8x256xf32>
    %cst_173 = arith.constant 5.000000e-01 : f32
    %858 = vector.broadcast %cst_173 : f32 to vector<8x256xf32>
    %859 = arith.subf %852, %858 : vector<8x256xf32>
    %860 = arith.select %854, %857, %859 : vector<8x256xi1>, vector<8x256xf32>
    %861 = arith.subf %846, %826 : vector<8x256xf32>
    %862 = math.absf %861 : vector<8x256xf32>
    %cst_174 = arith.constant 1.000000e+00 : f32
    %863 = vector.broadcast %cst_174 : f32 to vector<8x256xf32>
    %864 = arith.cmpf olt, %862, %863 : vector<8x256xf32>
    %cst_175 = arith.constant 5.000000e-01 : f32
    %865 = vector.broadcast %cst_175 : f32 to vector<8x256xf32>
    %866 = arith.mulf %865, %862 : vector<8x256xf32>
    %867 = arith.mulf %866, %862 : vector<8x256xf32>
    %cst_176 = arith.constant 5.000000e-01 : f32
    %868 = vector.broadcast %cst_176 : f32 to vector<8x256xf32>
    %869 = arith.subf %862, %868 : vector<8x256xf32>
    %870 = arith.select %864, %867, %869 : vector<8x256xi1>, vector<8x256xf32>
    %871 = arith.addf %860, %870 : vector<8x256xf32>
    %872 = arith.subf %848, %834 : vector<8x256xf32>
    %873 = math.absf %872 : vector<8x256xf32>
    %cst_177 = arith.constant 1.000000e+00 : f32
    %874 = vector.broadcast %cst_177 : f32 to vector<8x256xf32>
    %875 = arith.cmpf olt, %873, %874 : vector<8x256xf32>
    %cst_178 = arith.constant 5.000000e-01 : f32
    %876 = vector.broadcast %cst_178 : f32 to vector<8x256xf32>
    %877 = arith.mulf %876, %873 : vector<8x256xf32>
    %878 = arith.mulf %877, %873 : vector<8x256xf32>
    %cst_179 = arith.constant 5.000000e-01 : f32
    %879 = vector.broadcast %cst_179 : f32 to vector<8x256xf32>
    %880 = arith.subf %873, %879 : vector<8x256xf32>
    %881 = arith.select %875, %878, %880 : vector<8x256xi1>, vector<8x256xf32>
    %882 = arith.addf %871, %881 : vector<8x256xf32>
    %883 = arith.subf %850, %842 : vector<8x256xf32>
    %884 = math.absf %883 : vector<8x256xf32>
    %cst_180 = arith.constant 1.000000e+00 : f32
    %885 = vector.broadcast %cst_180 : f32 to vector<8x256xf32>
    %886 = arith.cmpf olt, %884, %885 : vector<8x256xf32>
    %cst_181 = arith.constant 5.000000e-01 : f32
    %887 = vector.broadcast %cst_181 : f32 to vector<8x256xf32>
    %888 = arith.mulf %887, %884 : vector<8x256xf32>
    %889 = arith.mulf %888, %884 : vector<8x256xf32>
    %cst_182 = arith.constant 5.000000e-01 : f32
    %890 = vector.broadcast %cst_182 : f32 to vector<8x256xf32>
    %891 = arith.subf %884, %890 : vector<8x256xf32>
    %892 = arith.select %886, %889, %891 : vector<8x256xi1>, vector<8x256xf32>
    %893 = arith.addf %882, %892 : vector<8x256xf32>
    %cst_183 = arith.constant 0.000000e+00 : f32
    %894 = vector.broadcast %cst_183 : f32 to vector<8x256xf32>
    %895 = arith.select %808, %893, %894 : vector<8x256xi1>, vector<8x256xf32>
    %cst_184 = arith.constant dense<0.000000e+00> : vector<8xf32>
    %896 = vector.multi_reduction <add>, %895, %cst_184 [1] : vector<8x256xf32> to vector<8xf32>
    %897 = vector.shape_cast %896 : vector<8xf32> to vector<8x1xf32>
    %c0_185 = arith.constant 0 : index
    %c0_186 = arith.constant 0 : index
    %c0_187 = arith.constant 0 : index
    %898 = vector.load %arg3[%c0_185, %c0_186, %c0_187] : memref<2x8x256xf32, #tpu.memory_space<vmem>>, vector<1x8x256xf32>
    %899 = vector.shape_cast %898 : vector<1x8x256xf32> to vector<8x256xf32>
    %c1_188 = arith.constant 1 : index
    %c0_189 = arith.constant 0 : index
    %c0_190 = arith.constant 0 : index
    %900 = vector.load %arg3[%c1_188, %c0_189, %c0_190] : memref<2x8x256xf32, #tpu.memory_space<vmem>>, vector<1x8x256xf32>
    %901 = vector.shape_cast %900 : vector<1x8x256xf32> to vector<8x256xf32>
    %902 = arith.maximumf %899, %901 : vector<8x256xf32>
    %903 = arith.subf %899, %902 : vector<8x256xf32>
    %904 = math.exp %903 : vector<8x256xf32>
    %905 = arith.subf %901, %902 : vector<8x256xf32>
    %906 = math.exp %905 : vector<8x256xf32>
    %907 = arith.addf %904, %906 : vector<8x256xf32>
    %908 = math.log %907 : vector<8x256xf32>
    %909 = arith.addf %908, %902 : vector<8x256xf32>
    %910 = arith.select %808, %901, %899 : vector<8x256xi1>, vector<8x256xf32>
    %911 = arith.subf %909, %910 : vector<8x256xf32>
    %cst_191 = arith.constant 0.000000e+00 : f32
    %912 = vector.broadcast %cst_191 : f32 to vector<8x256xf32>
    %913 = arith.select %808, %912, %911 : vector<8x256xi1>, vector<8x256xf32>
    %cst_192 = arith.constant -1.000000e+00 : f32
    %914 = vector.shape_cast %7 : vector<1x256xi1> to vector<1x256xi1>
    %915 = vector.broadcast %914 : vector<1x256xi1> to vector<8x256xi1>
    %916 = vector.broadcast %cst_192 : f32 to vector<8x256xf32>
    %917 = arith.select %915, %913, %916 : vector<8x256xi1>, vector<8x256xf32>
    %918 = tpu.bitcast %917 : vector<8x256xf32> -> vector<8x256xi32>
    %cst_193 = arith.constant 1.000000e+00 : f32
    %cst_194 = arith.constant 0.000000e+00 : f32
    %919 = vector.broadcast %cst_193 : f32 to vector<8x256xf32>
    %920 = vector.broadcast %cst_194 : f32 to vector<8x256xf32>
    %921 = arith.select %808, %919, %920 : vector<8x256xi1>, vector<8x256xf32>
    %cst_195 = arith.constant dense<0.000000e+00> : vector<8xf32>
    %922 = vector.multi_reduction <add>, %921, %cst_195 [1] : vector<8x256xf32> to vector<8xf32>
    %923 = vector.shape_cast %922 : vector<8xf32> to vector<8x1xf32>
    %cst_196 = arith.constant 7.000000e+00 : f32
    %924 = vector.broadcast %cst_196 : f32 to vector<8x1xf32>
    %925 = arith.mulf %924, %923 : vector<8x1xf32>
    %cst_197 = arith.constant 1.670000e+02 : f32
    %926 = vector.broadcast %cst_197 : f32 to vector<8x1xf32>
    %927 = arith.minimumf %925, %926 : vector<8x1xf32>
    %c0_i32_198 = arith.constant 0 : i32
    %928 = vector.broadcast %c0_i32_198 : i32 to vector<8x1xi32>
    %c2130706432_i32 = arith.constant 2130706432 : i32
    %929 = vector.broadcast %c2130706432_i32 : i32 to vector<8x1xi32>
    %c0_i32_199 = arith.constant 0 : i32
    %c32_i32 = arith.constant 32 : i32
    %930 = arith.addi %c0_i32_199, %c32_i32 : i32
    %c1_i32_200 = arith.constant 1 : i32
    %931:2 = scf.for %arg6 = %c0_i32_199 to %930 step %c1_i32_200 iter_args(%arg7 = %928, %arg8 = %929) -> (vector<8x1xi32>, vector<8x1xi32>)  : i32 {
      %973 = arith.subi %arg8, %arg7 : vector<8x1xi32>
      %c1_i32_214 = arith.constant 1 : i32
      %974 = vector.broadcast %c1_i32_214 : i32 to vector<8x1xi32>
      %975 = arith.shrsi %973, %974 : vector<8x1xi32>
      %976 = arith.addi %arg7, %975 : vector<8x1xi32>
      %977 = vector.broadcast %976 : vector<8x1xi32> to vector<8x256xi32>
      %978 = arith.cmpi sge, %918, %977 : vector<8x256xi32>
      %979 = arith.extui %978 : vector<8x256xi1> to vector<8x256xi32>
      %980 = arith.sitofp %979 : vector<8x256xi32> to vector<8x256xf32>
      %cst_215 = arith.constant dense<0.000000e+00> : vector<8xf32>
      %981 = vector.multi_reduction <add>, %980, %cst_215 [1] : vector<8x256xf32> to vector<8xf32>
      %982 = vector.shape_cast %981 : vector<8xf32> to vector<8x1xf32>
      %983 = arith.cmpf oge, %982, %927 : vector<8x1xf32>
      %984 = arith.select %983, %976, %arg7 : vector<8x1xi1>, vector<8x1xi32>
      %985 = arith.select %983, %arg8, %976 : vector<8x1xi1>, vector<8x1xi32>
      scf.yield %984, %985 : vector<8x1xi32>, vector<8x1xi32>
    }
    %932 = tpu.bitcast %931#0 : vector<8x1xi32> -> vector<8x1xf32>
    %933 = vector.broadcast %932 : vector<8x1xf32> to vector<8x256xf32>
    %934 = arith.cmpf ogt, %917, %933 : vector<8x256xf32>
    %935 = arith.extui %934 : vector<8x256xi1> to vector<8x256xi32>
    %936 = arith.sitofp %935 : vector<8x256xi32> to vector<8x256xf32>
    %cst_201 = arith.constant dense<0.000000e+00> : vector<8xf32>
    %937 = vector.multi_reduction <add>, %936, %cst_201 [1] : vector<8x256xf32> to vector<8xf32>
    %938 = vector.shape_cast %937 : vector<8xf32> to vector<8x1xf32>
    %cst_202 = arith.constant 0.000000e+00 : f32
    %939 = vector.broadcast %cst_202 : f32 to vector<8x256xf32>
    %940 = arith.select %934, %917, %939 : vector<8x256xi1>, vector<8x256xf32>
    %cst_203 = arith.constant dense<0.000000e+00> : vector<8xf32>
    %941 = vector.multi_reduction <add>, %940, %cst_203 [1] : vector<8x256xf32> to vector<8xf32>
    %942 = vector.shape_cast %941 : vector<8xf32> to vector<8x1xf32>
    %943 = arith.subf %927, %938 : vector<8x1xf32>
    %944 = arith.mulf %943, %932 : vector<8x1xf32>
    %945 = arith.addf %942, %944 : vector<8x1xf32>
    %cst_204 = arith.constant 0.000000e+00 : f32
    %946 = vector.broadcast %cst_204 : f32 to vector<8x256xf32>
    %947 = arith.select %808, %911, %946 : vector<8x256xi1>, vector<8x256xf32>
    %cst_205 = arith.constant dense<0.000000e+00> : vector<8xf32>
    %948 = vector.multi_reduction <add>, %947, %cst_205 [1] : vector<8x256xf32> to vector<8xf32>
    %949 = vector.shape_cast %948 : vector<8xf32> to vector<8x1xf32>
    %950 = arith.addf %949, %945 : vector<8x1xf32>
    %951 = tpu.iota {dimensions = array<i32: 1>} : vector<8x128xi32>
    %c0_i32_206 = arith.constant 0 : i32
    %952 = vector.broadcast %c0_i32_206 : i32 to vector<8x128xi32>
    %953 = arith.cmpi eq, %951, %952 : vector<8x128xi32>
    %cst_207 = arith.constant 0.000000e+00 : f32
    %954 = vector.shape_cast %897 : vector<8x1xf32> to vector<8x1xf32>
    %955 = vector.broadcast %954 : vector<8x1xf32> to vector<8x128xf32>
    %956 = vector.broadcast %cst_207 : f32 to vector<8x128xf32>
    %957 = arith.select %953, %955, %956 : vector<8x128xi1>, vector<8x128xf32>
    %c1_i32_208 = arith.constant 1 : i32
    %958 = vector.broadcast %c1_i32_208 : i32 to vector<8x128xi32>
    %959 = arith.cmpi eq, %951, %958 : vector<8x128xi32>
    %cst_209 = arith.constant 0.000000e+00 : f32
    %960 = vector.shape_cast %950 : vector<8x1xf32> to vector<8x1xf32>
    %961 = vector.broadcast %960 : vector<8x1xf32> to vector<8x128xf32>
    %962 = vector.broadcast %cst_209 : f32 to vector<8x128xf32>
    %963 = arith.select %959, %961, %962 : vector<8x128xi1>, vector<8x128xf32>
    %964 = arith.addf %957, %963 : vector<8x128xf32>
    %c2_i32_210 = arith.constant 2 : i32
    %965 = vector.broadcast %c2_i32_210 : i32 to vector<8x128xi32>
    %966 = arith.cmpi eq, %951, %965 : vector<8x128xi32>
    %cst_211 = arith.constant 0.000000e+00 : f32
    %967 = vector.shape_cast %923 : vector<8x1xf32> to vector<8x1xf32>
    %968 = vector.broadcast %967 : vector<8x1xf32> to vector<8x128xf32>
    %969 = vector.broadcast %cst_211 : f32 to vector<8x128xf32>
    %970 = arith.select %966, %968, %969 : vector<8x128xi1>, vector<8x128xf32>
    %971 = arith.addf %964, %970 : vector<8x128xf32>
    %c0_212 = arith.constant 0 : index
    %c0_213 = arith.constant 0 : index
    %972 = vector.load %arg5[%c0_212, %c0_213] : memref<8x128xf32, #tpu.memory_space<vmem>>, vector<8x128xf32>
    tpu.vector_store %arg5[%c0_212, %c0_213], %971 {strides = array<i32>} : memref<8x128xf32, #tpu.memory_space<vmem>>, vector<8x128xf32>,
    return
  }
  func.func @transform_0(%arg0: i32) -> (i32, i32) {
    %c0_i32 = arith.constant 0 : i32
    %c0_i32_0 = arith.constant 0 : i32
    %c0_i32_1 = arith.constant 0 : i32
    return %c0_i32, %c0_i32_0 : i32, i32
  }
  func.func @transform_1(%arg0: i32) -> (i32, i32, i32) {
    %c0_i32 = arith.constant 0 : i32
    %c0_i32_0 = arith.constant 0 : i32
    %c0_i32_1 = arith.constant 0 : i32
    return %c0_i32, %arg0, %c0_i32_0 : i32, i32, i32
  }
  func.func @transform_2(%arg0: i32) -> (i32, i32, i32) {
    %c0_i32 = arith.constant 0 : i32
    %c0_i32_0 = arith.constant 0 : i32
    %c0_i32_1 = arith.constant 0 : i32
    return %c0_i32, %arg0, %c0_i32_0 : i32, i32, i32
  }
  func.func @transform_3(%arg0: i32) -> (i32, i32, i32) {
    %c0_i32 = arith.constant 0 : i32
    %c0_i32_0 = arith.constant 0 : i32
    %c0_i32_1 = arith.constant 0 : i32
    return %c0_i32, %arg0, %c0_i32_0 : i32, i32, i32
  }
  func.func @transform_4(%arg0: i32) -> (i32, i32) {
    %c0_i32 = arith.constant 0 : i32
    %c0_i32_0 = arith.constant 0 : i32
    return %arg0, %c0_i32 : i32, i32
  }
}

</mosaic_0001>

<llo_original>
// kernel: tpu_custom_call.1
$region0: #{tpu_custom_call.1}
  #allocation0 [shape = 'u32[]', space=smem, size = 0x4, offset = 0x4, fixed_abs, tag = 'smem constant byte address 0x4 - core index']
  #allocation1 [shape = 'u32[144,128]{1,0:T(1,128)}', space=vmem, size = 0x12000, scoped, tag = 'internal scratch']
  %s0 = inlined_call_operand.hbm [shape: f32[8,256], index: 0, kind: input, shape index: {}]
  %s1 = inlined_call_operand.hbm [shape: f32[4,8,256], index: 1, kind: input, shape index: {}]
  %s2 = inlined_call_operand.hbm [shape: f32[2,8,256], index: 2, kind: input, shape index: {}]
  %s3 = inlined_call_operand.hbm [shape: f32[8,8,8], index: 3, kind: input, shape index: {}]
  %s4 = inlined_call_operand.hbm [shape: f32[8,128], index: 4, kind: output, shape index: {}]
  %s5 = sld [smem:[#allocation0]]
  $region49: #{tpu_custom_call.1} parent=0
    _
  %s7 = ssub.s32 1, %s5
  %s8 = scalar_select 0, %s7, %s5
  $region1: #{tpu_custom_call.1} parent=0
    #allocation2 [shape = 'u8[8192]{0}', space=vmem, size = 0x2000, scoped, tag = 'input window, operand 0, single buffered']
    #allocation3 [shape = 's32[1]{0}', space=sflag, size = 0x4, scoped, tag = 'scoped memory for tpu_custom_call.1']
    #allocation4 [shape = 's32[1]{0}', space=sflag, size = 0x4, scoped, tag = 'scoped memory for tpu_custom_call.1']
    #allocation5 [shape = 'u8[32768]{0}', space=vmem, size = 0x8000, scoped, tag = 'input window, operand 1, single buffered']
    #allocation6 [shape = 's32[1]{0}', space=sflag, size = 0x4, scoped, tag = 'scoped memory for tpu_custom_call.1']
    #allocation7 [shape = 'u8[16384]{0}', space=vmem, size = 0x4000, scoped, tag = 'input window, operand 2, single buffered']
    #allocation8 [shape = 'u8[32768]{0}', space=vmem, size = 0x8000, scoped, tag = 'input window, operand 3, single buffered']
    #allocation9 [shape = 's32[1]{0}', space=sflag, size = 0x4, scoped, tag = 'scoped memory for tpu_custom_call.1']
    #allocation10 [shape = 'u8[4096]{0}', space=vmem, size = 0x1000, scoped, tag = 'output window, operand 0, single buffered']
    %9 = vsyncpa [#allocation3], 0
    %10 = vsyncpa [#allocation6], 0
    %11 = vsyncpa [#allocation9], 0
    %12 = vsyncpa [#allocation4], 0
    // Predicated region
    $region2: #{tpu_custom_call.1} parent=1 // pred_check
      _
    $region3: #{tpu_custom_call.1} parent=1 // pred_check_branch
      %14 = sbr.rel (0) target = $region5
    $region4: #{tpu_custom_call.1} parent=1 // pred_region
      %s16 = ssub.s32 256, 256
      %17 = vsyncadd [#allocation3], %s16
      %s19 = sshll.u32 [#allocation2], 4
      %s20 = int_to_ptr.vmem [resolvable:$true] %s19
      %22 = dma.hbm_to_vmem [thread:$0]  %s0, 256, %s20, [#allocation3]
    $region5: #{tpu_custom_call.1} parent=1 // pred_fallthru
      _
    // Predicated region
    $region6: #{tpu_custom_call.1} parent=1 // pred_check
      _
    $region7: #{tpu_custom_call.1} parent=1 // pred_check_branch
      %24 = sbr.rel (0) target = $region9
    $region8: #{tpu_custom_call.1} parent=1 // pred_region
      %s26 = ssub.s32 1024, 1024
      %27 = vsyncadd [#allocation6], %s26
      %s28 = sshll.u32 [#allocation5], 4
      %s29 = int_to_ptr.vmem [resolvable:$true] %s28
      %34 = dma.hbm_to_vmem [thread:$0]  %s1, 1024, %s29, [#allocation6], 256, 256, 16
    $region9: #{tpu_custom_call.1} parent=1 // pred_fallthru
      _
    // Predicated region
    $region10: #{tpu_custom_call.1} parent=1 // pred_check
      _
    $region11: #{tpu_custom_call.1} parent=1 // pred_check_branch
      %36 = sbr.rel (0) target = $region13
    $region12: #{tpu_custom_call.1} parent=1 // pred_region
      %s38 = ssub.s32 512, 512
      %39 = vsyncadd [#allocation6], %s38
      %s40 = sshll.u32 [#allocation7], 4
      %s41 = int_to_ptr.vmem [resolvable:$true] %s40
      %46 = dma.hbm_to_vmem [thread:$0]  %s2, 512, %s41, [#allocation6], 256, 256, 16
    $region13: #{tpu_custom_call.1} parent=1 // pred_fallthru
      _
    // Predicated region
    $region14: #{tpu_custom_call.1} parent=1 // pred_check
      _
    $region15: #{tpu_custom_call.1} parent=1 // pred_check_branch
      %48 = sbr.rel (0) target = $region17
    $region16: #{tpu_custom_call.1} parent=1 // pred_region
      %s50 = ssub.s32 1024, 1024
      %51 = vsyncadd [#allocation9], %s50
      %s52 = sshll.u32 [#allocation8], 4
      %s53 = int_to_ptr.vmem [resolvable:$true] %s52
      %58 = dma.hbm_to_vmem [thread:$0]  %s3, 1024, %s53, [#allocation9], 128, 128, 8
    $region17: #{tpu_custom_call.1} parent=1 // pred_fallthru
      _
    // Predicated region
    $region18: #{tpu_custom_call.1} parent=1 // pred_check
      _
    $region19: #{tpu_custom_call.1} parent=1 // pred_check_branch
      %60 = sbr.rel (0) target = $region21
    $region20: #{tpu_custom_call.1} parent=1 // pred_region
      %61 = dma.done [#allocation3], 256
    $region21: #{tpu_custom_call.1} parent=1 // pred_fallthru
      _
    // Predicated region
    $region22: #{tpu_custom_call.1} parent=1 // pred_check
      _
    $region23: #{tpu_custom_call.1} parent=1 // pred_check_branch
      %63 = sbr.rel (0) target = $region25
    $region24: #{tpu_custom_call.1} parent=1 // pred_region
      %64 = dma.done [#allocation6], 1024
    $region25: #{tpu_custom_call.1} parent=1 // pred_fallthru
      _
    // Predicated region
    $region26: #{tpu_custom_call.1} parent=1 // pred_check
      _
    $region27: #{tpu_custom_call.1} parent=1 // pred_check_branch
      %66 = sbr.rel (0) target = $region29
    $region28: #{tpu_custom_call.1} parent=1 // pred_region
      %67 = dma.done [#allocation6], 512
    $region29: #{tpu_custom_call.1} parent=1 // pred_fallthru
      _
    // Predicated region
    $region30: #{tpu_custom_call.1} parent=1 // pred_check
      _
    $region31: #{tpu_custom_call.1} parent=1 // pred_check_branch
      %69 = sbr.rel (0) target = $region33
    $region32: #{tpu_custom_call.1} parent=1 // pred_region
      %70 = dma.done [#allocation9], 1024
    $region33: #{tpu_custom_call.1} parent=1 // pred_fallthru
      _
    %v71 = vld [vmem:[#allocation2] sm:$0xff]
    %v72 = vld [vmem:[#allocation2 + $0x8] sm:$0xff]
    %vm73 = vcmp.gt.f32.partialorder %v71, 0.0
    %vm74 = vcmp.gt.f32.partialorder %v72, 0.0
    %v75 = vmul.f32 %v71, 0.5
    %v76 = vmul.f32 %v72, 0.5
    %v79 = vrot.slane %v75, 2
    %v80 = vrot.slane %v76, 2
    %v83 = vsub.f32 %v71, %v79
    %v84 = vsub.f32 %v72, %v80
    %v85 = vadd.f32 %v71, %v79
    %v86 = vadd.f32 %v72, %v80
    %v87 = vsub.f32 %v85, %v83
    %v88 = vsub.f32 %v86, %v84
    %v91 = vrot.slane %v87, 1
    %v92 = vrot.slane %v88, 1
    %v95 = vmul.f32 %v87, %v91
    %v96 = vmul.f32 %v88, %v92
    %v97 = vlaneseq
    %v98 = vand.u32 %v97, 127
    %v99 = vadd.s32 %v98, 128
    %v100 = vld [vmem:[#allocation8] sm:$0xff]
    %vm101 = vcmp.gt.f32.partialorder %v100, 0.0
    %103 = vset.pattern.permute.xlu0 2
    %104 = vperm.xlu0 %103, %v100
    %v105 = vpop.permute.xlu0 %104
    %v107 = vlaneseq
    %v108 = vshrl.u32 %v107, 7
    %v109 = vsub.s32 0, %v108
    %v110 = vrot.slane %v85, %v109
    %v111 = vlaneseq
    %v112 = vshrl.u32 %v111, 7
    %v113 = vsub.s32 0, %v112
    %v114 = vrot.slane %v86, %v113
    %v115 = vmin.f32 %v105, %v110
    %v116 = vmin.f32 %v105, %v114
    %117 = vset.pattern.permute.xlu0 0
    %118 = vperm.xlu0 %117, %v100
    %v119 = vpop.permute.xlu0 %118
    %v121 = vlaneseq
    %v122 = vshrl.u32 %v121, 7
    %v123 = vsub.s32 0, %v122
    %v124 = vrot.slane %v83, %v123
    %v125 = vlaneseq
    %v126 = vshrl.u32 %v125, 7
    %v127 = vsub.s32 0, %v126
    %v128 = vrot.slane %v84, %v127
    %v129 = vmax.f32 %v119, %v124
    %v130 = vmax.f32 %v119, %v128
    %v131 = vsub.f32 %v115, %v129
    %v132 = vsub.f32 %v116, %v130
    %v133 = vmax.f32 %v131, 0.0
    %v134 = vmax.f32 %v132, 0.0
    %135 = vset.pattern.permute.xlu0 3
    %136 = vperm.xlu0 %135, %v100
    %v137 = vpop.permute.xlu0 %136
    %v139 = vlaneseq
    %v140 = vshrl.u32 %v139, 7
    %v141 = vsub.s32 1, %v140
    %v142 = vrot.slane %v85, %v141
    %v143 = vlaneseq
    %v144 = vshrl.u32 %v143, 7
    %v145 = vsub.s32 1, %v144
    %v146 = vrot.slane %v86, %v145
    %v147 = vmin.f32 %v137, %v142
    %v148 = vmin.f32 %v137, %v146
    %149 = vset.pattern.permute.xlu0 1
    %150 = vperm.xlu0 %149, %v100
    %v151 = vpop.permute.xlu0 %150
    %v153 = vlaneseq
    %v154 = vshrl.u32 %v153, 7
    %v155 = vsub.s32 1, %v154
    %v156 = vrot.slane %v83, %v155
    %v157 = vlaneseq
    %v158 = vshrl.u32 %v157, 7
    %v159 = vsub.s32 1, %v158
    %v160 = vrot.slane %v84, %v159
    %v161 = vmax.f32 %v151, %v156
    %v162 = vmax.f32 %v151, %v160
    %v163 = vsub.f32 %v147, %v161
    %v164 = vsub.f32 %v148, %v162
    %v165 = vmax.f32 %v163, 0.0
    %v166 = vmax.f32 %v164, 0.0
    %v167 = vmul.f32 %v133, %v165
    %v168 = vmul.f32 %v134, %v166
    %169 = vrot.lane.b32.xlu0 %v100, 2
    %v170 = vpop.permute.xlu0 %169
    %v172 = vsub.f32 %v100, %v170
    %174 = vrot.lane.b32.xlu0 %v172, 127
    %v175 = vpop.permute.xlu0 %174
    %v177 = vmul.f32 %v172, %v175
    %179 = vset.pattern.permute.xlu0 2
    %180 = vperm.xlu0 %179, %v177
    %v181 = vpop.permute.xlu0 %180
    %v183 = vlaneseq
    %v184 = vshrl.u32 %v183, 7
    %v185 = vsub.s32 0, %v184
    %v186 = vrot.slane %v95, %v185
    %v187 = vlaneseq
    %v188 = vshrl.u32 %v187, 7
    %v189 = vsub.s32 0, %v188
    %v190 = vrot.slane %v96, %v189
    %v191 = vadd.f32 %v181, %v186
    %v192 = vadd.f32 %v181, %v190
    %v193 = vsub.f32 %v191, %v167
    %v194 = vsub.f32 %v192, %v168
    %v195 = vrcp.pop %v193
    %v196 = vrcp.pop %v194
    %v197 = vmul.f32 %v167, %v195
    %v198 = vmul.f32 %v168, %v196
    %v199 = vsel %vm101, 1, 0
    %200 = vset.pattern.permute.xlu0 5
    %201 = vperm.xlu0 %200, %v199
    %v202 = vpop.permute.xlu0 %201
    %vm203 = vcmp.eq.s32.totalorder %v202, 1
    %v204 = vsel %vm73, 1, 0
    %v205 = vsel %vm74, 1, 0
    %v206 = vlaneseq
    %v207 = vshrl.u32 %v206, 7
    %v208 = vsub.s32 4, %v207
    %v209 = vrot.slane %v204, %v208
    %v210 = vlaneseq
    %v211 = vshrl.u32 %v210, 7
    %v212 = vsub.s32 4, %v211
    %v213 = vrot.slane %v205, %v212
    %vm214 = vcmp.eq.s32.totalorder %v209, 1
    %vm215 = vcmp.eq.s32.totalorder %v213, 1
    %vm216 = vmand %vm203, %vm214
    %vm217 = vmand %vm203, %vm215
    %v218 = vsel %vm216, %v197, -1.0
    %v219 = vsel %vm217, %v198, -1.0
    %vm220 = vcmp.gt.f32.partialorder %v218, -2.0
    %vm221 = vcmp.gt.f32.partialorder %v219, -2.0
    %v222 = vsel %vm220, %v218, -2.0
    %v223 = vsel %vm221, %v219, -2.0
    %v224 = vmax.f32 %v218, %v219
    %225 = vmax.xlane.f32.xlu0 %v224
    %v226 = vpop.xlane.xlu0 %225
    %vm227 = vcmp.eq.f32.partialorder %v218, %v226
    %vm228 = vcmp.eq.f32.partialorder %v219, %v226
    %v229 = vsel %vm227, %v98, 256
    %v230 = vsel %vm228, %v99, 256
    %vm231 = vcmp.lt.s32.totalorder %v229, %v230
    %v232 = vsel %vm231, %v229, %v230
    %v233 = vand.u32 %v232, 65535
    %v234 = vshra.s32 %v232, 16
    %v235 = vcvt.s32.f32 %v233
    %v236 = vcvt.s32.f32 %v234
    %237 = vmin.xlane.f32.xlu0 %v236
    %v238 = vpop.xlane.xlu0 %237
    %vm239 = vcmp.eq.f32.partialorder %v236, %v238
    %v240 = vsel %vm239, %v235, inf
    %241 = vmin.xlane.f32.xlu0 %v240
    %v242 = vpop.xlane.xlu0 %241
    %v243 = vcvt.f32.s32 %v242
    %v244 = vcvt.f32.s32 %v238
    %v245 = vshll.u32 %v244, 16
    %v246 = vadd.s32 %v245, %v243
    %vm247 = vcmp.eq.s32.totalorder %v98, %v246
    %vm248 = vcmp.eq.s32.totalorder %v99, %v246
    %vm249 = vcmp.ge.f32.partialorder %v226, 0.2
    %vm250 = vmand %vm101, %vm249
    %v251 = vsel %vm250, 1, 0
    %252 = vset.pattern.permute.xlu0 5
    %253 = vperm.xlu0 %252, %v251
    %v254 = vpop.permute.xlu0 %253
    %vm255 = vcmp.eq.s32.totalorder %v254, 1
    %vm256 = vmand %vm247, %vm255
    %vm257 = vmand %vm248, %vm255
    %v258 = vsel %vm256, 1.0, 0.0
    %v259 = vsel %vm257, 1.0, 0.0
    %v260 = vmax.f32 %v258, 0.0
    %v261 = vmax.f32 %v259, 0.0
    %vm262 = vmand %vm247, %vm203
    %vm263 = vmand %vm248, %vm203
    %v264 = vsel %vm262, 0, 4294967295
    %v265 = vsel %vm263, 0, 4294967295
    %v266 = vsel %vm250, 1.0, 0.0
    %v267 = vadd.f32 %v266, 0.0
    %s268 = scalar_lea.vmem [#allocation8], 8
    %v269 = vld [vmem:[%s268] sm:$0xff]
    %vm270 = vcmp.gt.f32.partialorder %v269, 0.0
    %272 = vset.pattern.permute.xlu0 2
    %273 = vperm.xlu0 %272, %v269
    %v274 = vpop.permute.xlu0 %273
    %v276 = vmin.f32 %v274, %v110
    %v277 = vmin.f32 %v274, %v114
    %278 = vset.pattern.permute.xlu0 0
    %279 = vperm.xlu0 %278, %v269
    %v280 = vpop.permute.xlu0 %279
    %v282 = vmax.f32 %v280, %v124
    %v283 = vmax.f32 %v280, %v128
    %v284 = vsub.f32 %v276, %v282
    %v285 = vsub.f32 %v277, %v283
    %v286 = vmax.f32 %v284, 0.0
    %v287 = vmax.f32 %v285, 0.0
    %288 = vset.pattern.permute.xlu0 3
    %289 = vperm.xlu0 %288, %v269
    %v290 = vpop.permute.xlu0 %289
    %v292 = vmin.f32 %v290, %v142
    %v293 = vmin.f32 %v290, %v146
    %294 = vset.pattern.permute.xlu0 1
    %295 = vperm.xlu0 %294, %v269
    %v296 = vpop.permute.xlu0 %295
    %v298 = vmax.f32 %v296, %v156
    %v299 = vmax.f32 %v296, %v160
    %v300 = vsub.f32 %v292, %v298
    %v301 = vsub.f32 %v293, %v299
    %v302 = vmax.f32 %v300, 0.0
    %v303 = vmax.f32 %v301, 0.0
    %v304 = vmul.f32 %v286, %v302
    %v305 = vmul.f32 %v287, %v303
    %306 = vrot.lane.b32.xlu0 %v269, 2
    %v307 = vpop.permute.xlu0 %306
    %v309 = vsub.f32 %v269, %v307
    %311 = vrot.lane.b32.xlu0 %v309, 127
    %v312 = vpop.permute.xlu0 %311
    %v314 = vmul.f32 %v309, %v312
    %316 = vset.pattern.permute.xlu0 2
    %317 = vperm.xlu0 %316, %v314
    %v318 = vpop.permute.xlu0 %317
    %v320 = vadd.f32 %v318, %v186
    %v321 = vadd.f32 %v318, %v190
    %v322 = vsub.f32 %v320, %v304
    %v323 = vsub.f32 %v321, %v305
    %v324 = vrcp.pop %v322
    %v325 = vrcp.pop %v323
    %v326 = vmul.f32 %v304, %v324
    %v327 = vmul.f32 %v305, %v325
    %v328 = vsel %vm270, 1, 0
    %329 = vset.pattern.permute.xlu0 5
    %330 = vperm.xlu0 %329, %v328
    %v331 = vpop.permute.xlu0 %330
    %vm332 = vcmp.eq.s32.totalorder %v331, 1
    %vm333 = vmand %vm332, %vm214
    %vm334 = vmand %vm332, %vm215
    %v335 = vsel %vm333, %v326, -1.0
    %v336 = vsel %vm334, %v327, -1.0
    %vm337 = vcmp.gt.f32.partialorder %v335, %v222
    %vm338 = vcmp.gt.f32.partialorder %v336, %v223
    %v339 = vsel %vm337, 1, 0
    %v340 = vsel %vm338, 1, 0
    %v341 = vsel %vm337, %v335, %v222
    %v342 = vsel %vm338, %v336, %v223
    %v343 = vmax.f32 %v335, %v336
    %344 = vmax.xlane.f32.xlu0 %v343
    %v345 = vpop.xlane.xlu0 %344
    %vm346 = vcmp.eq.f32.partialorder %v335, %v345
    %vm347 = vcmp.eq.f32.partialorder %v336, %v345
    %v348 = vsel %vm346, %v98, 256
    %v349 = vsel %vm347, %v99, 256
    %vm350 = vcmp.lt.s32.totalorder %v348, %v349
    %v351 = vsel %vm350, %v348, %v349
    %v352 = vand.u32 %v351, 65535
    %v353 = vshra.s32 %v351, 16
    %v354 = vcvt.s32.f32 %v352
    %v355 = vcvt.s32.f32 %v353
    %356 = vmin.xlane.f32.xlu0 %v355
    %v357 = vpop.xlane.xlu0 %356
    %vm358 = vcmp.eq.f32.partialorder %v355, %v357
    %v359 = vsel %vm358, %v354, inf
    %360 = vmin.xlane.f32.xlu0 %v359
    %v361 = vpop.xlane.xlu0 %360
    %v362 = vcvt.f32.s32 %v361
    %v363 = vcvt.f32.s32 %v357
    %v364 = vshll.u32 %v363, 16
    %v365 = vadd.s32 %v364, %v362
    %vm366 = vcmp.eq.s32.totalorder %v98, %v365
    %vm367 = vcmp.eq.s32.totalorder %v99, %v365
    %vm368 = vcmp.ge.f32.partialorder %v345, 0.2
    %vm369 = vmand %vm270, %vm368
    %v370 = vsel %vm369, 1, 0
    %371 = vset.pattern.permute.xlu0 5
    %372 = vperm.xlu0 %371, %v370
    %v373 = vpop.permute.xlu0 %372
    %vm374 = vcmp.eq.s32.totalorder %v373, 1
    %vm375 = vmand %vm366, %vm374
    %vm376 = vmand %vm367, %vm374
    %v377 = vsel %vm375, 1.0, 0.0
    %v378 = vsel %vm376, 1.0, 0.0
    %v379 = vmax.f32 %v260, %v377
    %v380 = vmax.f32 %v261, %v378
    %vm381 = vmand %vm366, %vm332
    %vm382 = vmand %vm367, %vm332
    %v383 = vsel %vm381, 1, %v264
    %v384 = vsel %vm382, 1, %v265
    %v385 = vsel %vm369, 1.0, 0.0
    %v386 = vadd.f32 %v267, %v385
    %s387 = scalar_lea.vmem [#allocation8], 16
    %v388 = vld [vmem:[%s387] sm:$0xff]
    %vm389 = vcmp.gt.f32.partialorder %v388, 0.0
    %391 = vset.pattern.permute.xlu0 2
    %392 = vperm.xlu0 %391, %v388
    %v393 = vpop.permute.xlu0 %392
    %v395 = vmin.f32 %v393, %v110
    %v396 = vmin.f32 %v393, %v114
    %397 = vset.pattern.permute.xlu0 0
    %398 = vperm.xlu0 %397, %v388
    %v399 = vpop.permute.xlu0 %398
    %v401 = vmax.f32 %v399, %v124
    %v402 = vmax.f32 %v399, %v128
    %v403 = vsub.f32 %v395, %v401
    %v404 = vsub.f32 %v396, %v402
    %v405 = vmax.f32 %v403, 0.0
    %v406 = vmax.f32 %v404, 0.0
    %407 = vset.pattern.permute.xlu0 3
    %408 = vperm.xlu0 %407, %v388
    %v409 = vpop.permute.xlu0 %408
    %v411 = vmin.f32 %v409, %v142
    %v412 = vmin.f32 %v409, %v146
    %413 = vset.pattern.permute.xlu0 1
    %414 = vperm.xlu0 %413, %v388
    %v415 = vpop.permute.xlu0 %414
    %v417 = vmax.f32 %v415, %v156
    %v418 = vmax.f32 %v415, %v160
    %v419 = vsub.f32 %v411, %v417
    %v420 = vsub.f32 %v412, %v418
    %v421 = vmax.f32 %v419, 0.0
    %v422 = vmax.f32 %v420, 0.0
    %v423 = vmul.f32 %v405, %v421
    %v424 = vmul.f32 %v406, %v422
    %425 = vrot.lane.b32.xlu0 %v388, 2
    %v426 = vpop.permute.xlu0 %425
    %v428 = vsub.f32 %v388, %v426
    %430 = vrot.lane.b32.xlu0 %v428, 127
    %v431 = vpop.permute.xlu0 %430
    %v433 = vmul.f32 %v428, %v431
    %435 = vset.pattern.permute.xlu0 2
    %436 = vperm.xlu0 %435, %v433
    %v437 = vpop.permute.xlu0 %436
    %v439 = vadd.f32 %v437, %v186
    %v440 = vadd.f32 %v437, %v190
    %v441 = vsub.f32 %v439, %v423
    %v442 = vsub.f32 %v440, %v424
    %v443 = vrcp.pop %v441
    %v444 = vrcp.pop %v442
    %v445 = vmul.f32 %v423, %v443
    %v446 = vmul.f32 %v424, %v444
    %v447 = vsel %vm389, 1, 0
    %448 = vset.pattern.permute.xlu0 5
    %449 = vperm.xlu0 %448, %v447
    %v450 = vpop.permute.xlu0 %449
    %vm451 = vcmp.eq.s32.totalorder %v450, 1
    %vm452 = vmand %vm451, %vm214
    %vm453 = vmand %vm451, %vm215
    %v454 = vsel %vm452, %v445, -1.0
    %v455 = vsel %vm453, %v446, -1.0
    %vm456 = vcmp.gt.f32.partialorder %v454, %v341
    %vm457 = vcmp.gt.f32.partialorder %v455, %v342
    %v458 = vsel %vm456, 2, %v339
    %v459 = vsel %vm457, 2, %v340
    %v460 = vsel %vm456, %v454, %v341
    %v461 = vsel %vm457, %v455, %v342
    %v462 = vmax.f32 %v454, %v455
    %463 = vmax.xlane.f32.xlu0 %v462
    %v464 = vpop.xlane.xlu0 %463
    %vm465 = vcmp.eq.f32.partialorder %v454, %v464
    %vm466 = vcmp.eq.f32.partialorder %v455, %v464
    %v467 = vsel %vm465, %v98, 256
    %v468 = vsel %vm466, %v99, 256
    %vm469 = vcmp.lt.s32.totalorder %v467, %v468
    %v470 = vsel %vm469, %v467, %v468
    %v471 = vand.u32 %v470, 65535
    %v472 = vshra.s32 %v470, 16
    %v473 = vcvt.s32.f32 %v471
    %v474 = vcvt.s32.f32 %v472
    %475 = vmin.xlane.f32.xlu0 %v474
    %v476 = vpop.xlane.xlu0 %475
    %vm477 = vcmp.eq.f32.partialorder %v474, %v476
    %v478 = vsel %vm477, %v473, inf
    %479 = vmin.xlane.f32.xlu0 %v478
    %v480 = vpop.xlane.xlu0 %479
    %v481 = vcvt.f32.s32 %v480
    %v482 = vcvt.f32.s32 %v476
    %v483 = vshll.u32 %v482, 16
    %v484 = vadd.s32 %v483, %v481
    %vm485 = vcmp.eq.s32.totalorder %v98, %v484
    %vm486 = vcmp.eq.s32.totalorder %v99, %v484
    %vm487 = vcmp.ge.f32.partialorder %v464, 0.2
    %vm488 = vmand %vm389, %vm487
    %v489 = vsel %vm488, 1, 0
    %490 = vset.pattern.permute.xlu0 5
    %491 = vperm.xlu0 %490, %v489
    %v492 = vpop.permute.xlu0 %491
    %vm493 = vcmp.eq.s32.totalorder %v492, 1
    %vm494 = vmand %vm485, %vm493
    %vm495 = vmand %vm486, %vm493
    %v496 = vsel %vm494, 1.0, 0.0
    %v497 = vsel %vm495, 1.0, 0.0
    %v498 = vmax.f32 %v379, %v496
    %v499 = vmax.f32 %v380, %v497
    %vm500 = vmand %vm485, %vm451
    %vm501 = vmand %vm486, %vm451
    %v502 = vsel %vm500, 2, %v383
    %v503 = vsel %vm501, 2, %v384
    %v504 = vsel %vm488, 1.0, 0.0
    %v505 = vadd.f32 %v386, %v504
    %s506 = scalar_lea.vmem [#allocation8], 24
    %v507 = vld [vmem:[%s506] sm:$0xff]
    %vm508 = vcmp.gt.f32.partialorder %v507, 0.0
    %510 = vset.pattern.permute.xlu0 2
    %511 = vperm.xlu0 %510, %v507
    %v512 = vpop.permute.xlu0 %511
    %v514 = vmin.f32 %v512, %v110
    %v515 = vmin.f32 %v512, %v114
    %516 = vset.pattern.permute.xlu0 0
    %517 = vperm.xlu0 %516, %v507
    %v518 = vpop.permute.xlu0 %517
    %v520 = vmax.f32 %v518, %v124
    %v521 = vmax.f32 %v518, %v128
    %v522 = vsub.f32 %v514, %v520
    %v523 = vsub.f32 %v515, %v521
    %v524 = vmax.f32 %v522, 0.0
    %v525 = vmax.f32 %v523, 0.0
    %526 = vset.pattern.permute.xlu0 3
    %527 = vperm.xlu0 %526, %v507
    %v528 = vpop.permute.xlu0 %527
    %v530 = vmin.f32 %v528, %v142
    %v531 = vmin.f32 %v528, %v146
    %532 = vset.pattern.permute.xlu0 1
    %533 = vperm.xlu0 %532, %v507
    %v534 = vpop.permute.xlu0 %533
    %v536 = vmax.f32 %v534, %v156
    %v537 = vmax.f32 %v534, %v160
    %v538 = vsub.f32 %v530, %v536
    %v539 = vsub.f32 %v531, %v537
    %v540 = vmax.f32 %v538, 0.0
    %v541 = vmax.f32 %v539, 0.0
    %v542 = vmul.f32 %v524, %v540
    %v543 = vmul.f32 %v525, %v541
    %544 = vrot.lane.b32.xlu0 %v507, 2
    %v545 = vpop.permute.xlu0 %544
    %v547 = vsub.f32 %v507, %v545
    %549 = vrot.lane.b32.xlu0 %v547, 127
    %v550 = vpop.permute.xlu0 %549
    %v552 = vmul.f32 %v547, %v550
    %554 = vset.pattern.permute.xlu0 2
    %555 = vperm.xlu0 %554, %v552
    %v556 = vpop.permute.xlu0 %555
    %v558 = vadd.f32 %v556, %v186
    %v559 = vadd.f32 %v556, %v190
    %v560 = vsub.f32 %v558, %v542
    %v561 = vsub.f32 %v559, %v543
    %v562 = vrcp.pop %v560
    %v563 = vrcp.pop %v561
    %v564 = vmul.f32 %v542, %v562
    %v565 = vmul.f32 %v543, %v563
    %v566 = vsel %vm508, 1, 0
    %567 = vset.pattern.permute.xlu0 5
    %568 = vperm.xlu0 %567, %v566
    %v569 = vpop.permute.xlu0 %568
    %vm570 = vcmp.eq.s32.totalorder %v569, 1
    %vm571 = vmand %vm570, %vm214
    %vm572 = vmand %vm570, %vm215
    %v573 = vsel %vm571, %v564, -1.0
    %v574 = vsel %vm572, %v565, -1.0
    %vm575 = vcmp.gt.f32.partialorder %v573, %v460
    %vm576 = vcmp.gt.f32.partialorder %v574, %v461
    %v577 = vsel %vm575, 3, %v458
    %v578 = vsel %vm576, 3, %v459
    %v579 = vsel %vm575, %v573, %v460
    %v580 = vsel %vm576, %v574, %v461
    %v581 = vmax.f32 %v573, %v574
    %582 = vmax.xlane.f32.xlu0 %v581
    %v583 = vpop.xlane.xlu0 %582
    %vm584 = vcmp.eq.f32.partialorder %v573, %v583
    %vm585 = vcmp.eq.f32.partialorder %v574, %v583
    %v586 = vsel %vm584, %v98, 256
    %v587 = vsel %vm585, %v99, 256
    %vm588 = vcmp.lt.s32.totalorder %v586, %v587
    %v589 = vsel %vm588, %v586, %v587
    %v590 = vand.u32 %v589, 65535
    %v591 = vshra.s32 %v589, 16
    %v592 = vcvt.s32.f32 %v590
    %v593 = vcvt.s32.f32 %v591
    %594 = vmin.xlane.f32.xlu0 %v593
    %v595 = vpop.xlane.xlu0 %594
    %vm596 = vcmp.eq.f32.partialorder %v593, %v595
    %v597 = vsel %vm596, %v592, inf
    %598 = vmin.xlane.f32.xlu0 %v597
    %v599 = vpop.xlane.xlu0 %598
    %v600 = vcvt.f32.s32 %v599
    %v601 = vcvt.f32.s32 %v595
    %v602 = vshll.u32 %v601, 16
    %v603 = vadd.s32 %v602, %v600
    %vm604 = vcmp.eq.s32.totalorder %v98, %v603
    %vm605 = vcmp.eq.s32.totalorder %v99, %v603
    %vm606 = vcmp.ge.f32.partialorder %v583, 0.2
    %vm607 = vmand %vm508, %vm606
    %v608 = vsel %vm607, 1, 0
    %609 = vset.pattern.permute.xlu0 5
    %610 = vperm.xlu0 %609, %v608
    %v611 = vpop.permute.xlu0 %610
    %vm612 = vcmp.eq.s32.totalorder %v611, 1
    %vm613 = vmand %vm604, %vm612
    %vm614 = vmand %vm605, %vm612
    %v615 = vsel %vm613, 1.0, 0.0
    %v616 = vsel %vm614, 1.0, 0.0
    %v617 = vmax.f32 %v498, %v615
    %v618 = vmax.f32 %v499, %v616
    %vm619 = vmand %vm604, %vm570
    %vm620 = vmand %vm605, %vm570
    %v621 = vsel %vm619, 3, %v502
    %v622 = vsel %vm620, 3, %v503
    %v623 = vsel %vm607, 1.0, 0.0
    %v624 = vadd.f32 %v505, %v623
    %s625 = scalar_lea.vmem [#allocation8], 32
    %v626 = vld [vmem:[%s625] sm:$0xff]
    %vm627 = vcmp.gt.f32.partialorder %v626, 0.0
    %629 = vset.pattern.permute.xlu0 2
    %630 = vperm.xlu0 %629, %v626
    %v631 = vpop.permute.xlu0 %630
    %v633 = vmin.f32 %v631, %v110
    %v634 = vmin.f32 %v631, %v114
    %635 = vset.pattern.permute.xlu0 0
    %636 = vperm.xlu0 %635, %v626
    %v637 = vpop.permute.xlu0 %636
    %v639 = vmax.f32 %v637, %v124
    %v640 = vmax.f32 %v637, %v128
    %v641 = vsub.f32 %v633, %v639
    %v642 = vsub.f32 %v634, %v640
    %v643 = vmax.f32 %v641, 0.0
    %v644 = vmax.f32 %v642, 0.0
    %645 = vset.pattern.permute.xlu0 3
    %646 = vperm.xlu0 %645, %v626
    %v647 = vpop.permute.xlu0 %646
    %v649 = vmin.f32 %v647, %v142
    %v650 = vmin.f32 %v647, %v146
    %651 = vset.pattern.permute.xlu0 1
    %652 = vperm.xlu0 %651, %v626
    %v653 = vpop.permute.xlu0 %652
    %v655 = vmax.f32 %v653, %v156
    %v656 = vmax.f32 %v653, %v160
    %v657 = vsub.f32 %v649, %v655
    %v658 = vsub.f32 %v650, %v656
    %v659 = vmax.f32 %v657, 0.0
    %v660 = vmax.f32 %v658, 0.0
    %v661 = vmul.f32 %v643, %v659
    %v662 = vmul.f32 %v644, %v660
    %663 = vrot.lane.b32.xlu0 %v626, 2
    %v664 = vpop.permute.xlu0 %663
    %v666 = vsub.f32 %v626, %v664
    %668 = vrot.lane.b32.xlu0 %v666, 127
    %v669 = vpop.permute.xlu0 %668
    %v671 = vmul.f32 %v666, %v669
    %673 = vset.pattern.permute.xlu0 2
    %674 = vperm.xlu0 %673, %v671
    %v675 = vpop.permute.xlu0 %674
    %v677 = vadd.f32 %v675, %v186
    %v678 = vadd.f32 %v675, %v190
    %v679 = vsub.f32 %v677, %v661
    %v680 = vsub.f32 %v678, %v662
    %v681 = vrcp.pop %v679
    %v682 = vrcp.pop %v680
    %v683 = vmul.f32 %v661, %v681
    %v684 = vmul.f32 %v662, %v682
    %v685 = vsel %vm627, 1, 0
    %686 = vset.pattern.permute.xlu0 5
    %687 = vperm.xlu0 %686, %v685
    %v688 = vpop.permute.xlu0 %687
    %vm689 = vcmp.eq.s32.totalorder %v688, 1
    %vm690 = vmand %vm689, %vm214
    %vm691 = vmand %vm689, %vm215
    %v692 = vsel %vm690, %v683, -1.0
    %v693 = vsel %vm691, %v684, -1.0
    %vm694 = vcmp.gt.f32.partialorder %v692, %v579
    %vm695 = vcmp.gt.f32.partialorder %v693, %v580
    %v696 = vsel %vm694, 4, %v577
    %v697 = vsel %vm695, 4, %v578
    %v698 = vsel %vm694, %v692, %v579
    %v699 = vsel %vm695, %v693, %v580
    %v700 = vmax.f32 %v692, %v693
    %701 = vmax.xlane.f32.xlu0 %v700
    %v702 = vpop.xlane.xlu0 %701
    %vm703 = vcmp.eq.f32.partialorder %v692, %v702
    %vm704 = vcmp.eq.f32.partialorder %v693, %v702
    %v705 = vsel %vm703, %v98, 256
    %v706 = vsel %vm704, %v99, 256
    %vm707 = vcmp.lt.s32.totalorder %v705, %v706
    %v708 = vsel %vm707, %v705, %v706
    %v709 = vand.u32 %v708, 65535
    %v710 = vshra.s32 %v708, 16
    %v711 = vcvt.s32.f32 %v709
    %v712 = vcvt.s32.f32 %v710
    %713 = vmin.xlane.f32.xlu0 %v712
    %v714 = vpop.xlane.xlu0 %713
    %vm715 = vcmp.eq.f32.partialorder %v712, %v714
    %v716 = vsel %vm715, %v711, inf
    %717 = vmin.xlane.f32.xlu0 %v716
    %v718 = vpop.xlane.xlu0 %717
    %v719 = vcvt.f32.s32 %v718
    %v720 = vcvt.f32.s32 %v714
    %v721 = vshll.u32 %v720, 16
    %v722 = vadd.s32 %v721, %v719
    %vm723 = vcmp.eq.s32.totalorder %v98, %v722
    %vm724 = vcmp.eq.s32.totalorder %v99, %v722
    %vm725 = vcmp.ge.f32.partialorder %v702, 0.2
    %vm726 = vmand %vm627, %vm725
    %v727 = vsel %vm726, 1, 0
    %728 = vset.pattern.permute.xlu0 5
    %729 = vperm.xlu0 %728, %v727
    %v730 = vpop.permute.xlu0 %729
    %vm731 = vcmp.eq.s32.totalorder %v730, 1
    %vm732 = vmand %vm723, %vm731
    %vm733 = vmand %vm724, %vm731
    %v734 = vsel %vm732, 1.0, 0.0
    %v735 = vsel %vm733, 1.0, 0.0
    %v736 = vmax.f32 %v617, %v734
    %v737 = vmax.f32 %v618, %v735
    %vm738 = vmand %vm723, %vm689
    %vm739 = vmand %vm724, %vm689
    %v740 = vsel %vm738, 4, %v621
    %v741 = vsel %vm739, 4, %v622
    %v742 = vsel %vm726, 1.0, 0.0
    %v743 = vadd.f32 %v624, %v742
    %s744 = scalar_lea.vmem [#allocation8], 40
    %v745 = vld [vmem:[%s744] sm:$0xff]
    %vm746 = vcmp.gt.f32.partialorder %v745, 0.0
    %748 = vset.pattern.permute.xlu0 2
    %749 = vperm.xlu0 %748, %v745
    %v750 = vpop.permute.xlu0 %749
    %v752 = vmin.f32 %v750, %v110
    %v753 = vmin.f32 %v750, %v114
    %754 = vset.pattern.permute.xlu0 0
    %755 = vperm.xlu0 %754, %v745
    %v756 = vpop.permute.xlu0 %755
    %v758 = vmax.f32 %v756, %v124
    %v759 = vmax.f32 %v756, %v128
    %v760 = vsub.f32 %v752, %v758
    %v761 = vsub.f32 %v753, %v759
    %v762 = vmax.f32 %v760, 0.0
    %v763 = vmax.f32 %v761, 0.0
    %764 = vset.pattern.permute.xlu0 3
    %765 = vperm.xlu0 %764, %v745
    %v766 = vpop.permute.xlu0 %765
    %v768 = vmin.f32 %v766, %v142
    %v769 = vmin.f32 %v766, %v146
    %770 = vset.pattern.permute.xlu0 1
    %771 = vperm.xlu0 %770, %v745
    %v772 = vpop.permute.xlu0 %771
    %v774 = vmax.f32 %v772, %v156
    %v775 = vmax.f32 %v772, %v160
    %v776 = vsub.f32 %v768, %v774
    %v777 = vsub.f32 %v769, %v775
    %v778 = vmax.f32 %v776, 0.0
    %v779 = vmax.f32 %v777, 0.0
    %v780 = vmul.f32 %v762, %v778
    %v781 = vmul.f32 %v763, %v779
    %782 = vrot.lane.b32.xlu0 %v745, 2
    %v783 = vpop.permute.xlu0 %782
    %v785 = vsub.f32 %v745, %v783
    %787 = vrot.lane.b32.xlu0 %v785, 127
    %v788 = vpop.permute.xlu0 %787
    %v790 = vmul.f32 %v785, %v788
    %792 = vset.pattern.permute.xlu0 2
    %793 = vperm.xlu0 %792, %v790
    %v794 = vpop.permute.xlu0 %793
    %v796 = vadd.f32 %v794, %v186
    %v797 = vadd.f32 %v794, %v190
    %v798 = vsub.f32 %v796, %v780
    %v799 = vsub.f32 %v797, %v781
    %v800 = vrcp.pop %v798
    %v801 = vrcp.pop %v799
    %v802 = vmul.f32 %v780, %v800
    %v803 = vmul.f32 %v781, %v801
    %v804 = vsel %vm746, 1, 0
    %805 = vset.pattern.permute.xlu0 5
    %806 = vperm.xlu0 %805, %v804
    %v807 = vpop.permute.xlu0 %806
    %vm808 = vcmp.eq.s32.totalorder %v807, 1
    %vm809 = vmand %vm808, %vm214
    %vm810 = vmand %vm808, %vm215
    %v811 = vsel %vm809, %v802, -1.0
    %v812 = vsel %vm810, %v803, -1.0
    %vm813 = vcmp.gt.f32.partialorder %v811, %v698
    %vm814 = vcmp.gt.f32.partialorder %v812, %v699
    %v815 = vsel %vm813, 5, %v696
    %v816 = vsel %vm814, 5, %v697
    %v817 = vsel %vm813, %v811, %v698
    %v818 = vsel %vm814, %v812, %v699
    %v819 = vmax.f32 %v811, %v812
    %820 = vmax.xlane.f32.xlu0 %v819
    %v821 = vpop.xlane.xlu0 %820
    %vm822 = vcmp.eq.f32.partialorder %v811, %v821
    %vm823 = vcmp.eq.f32.partialorder %v812, %v821
    %v824 = vsel %vm822, %v98, 256
    %v825 = vsel %vm823, %v99, 256
    %vm826 = vcmp.lt.s32.totalorder %v824, %v825
    %v827 = vsel %vm826, %v824, %v825
    %v828 = vand.u32 %v827, 65535
    %v829 = vshra.s32 %v827, 16
    %v830 = vcvt.s32.f32 %v828
    %v831 = vcvt.s32.f32 %v829
    %832 = vmin.xlane.f32.xlu0 %v831
    %v833 = vpop.xlane.xlu0 %832
    %vm834 = vcmp.eq.f32.partialorder %v831, %v833
    %v835 = vsel %vm834, %v830, inf
    %836 = vmin.xlane.f32.xlu0 %v835
    %v837 = vpop.xlane.xlu0 %836
    %v838 = vcvt.f32.s32 %v837
    %v839 = vcvt.f32.s32 %v833
    %v840 = vshll.u32 %v839, 16
    %v841 = vadd.s32 %v840, %v838
    %vm842 = vcmp.eq.s32.totalorder %v98, %v841
    %vm843 = vcmp.eq.s32.totalorder %v99, %v841
    %vm844 = vcmp.ge.f32.partialorder %v821, 0.2
    %vm845 = vmand %vm746, %vm844
    %v846 = vsel %vm845, 1, 0
    %847 = vset.pattern.permute.xlu0 5
    %848 = vperm.xlu0 %847, %v846
    %v849 = vpop.permute.xlu0 %848
    %vm850 = vcmp.eq.s32.totalorder %v849, 1
    %vm851 = vmand %vm842, %vm850
    %vm852 = vmand %vm843, %vm850
    %v853 = vsel %vm851, 1.0, 0.0
    %v854 = vsel %vm852, 1.0, 0.0
    %v855 = vmax.f32 %v736, %v853
    %v856 = vmax.f32 %v737, %v854
    %vm857 = vmand %vm842, %vm808
    %vm858 = vmand %vm843, %vm808
    %v859 = vsel %vm857, 5, %v740
    %v860 = vsel %vm858, 5, %v741
    %v861 = vsel %vm845, 1.0, 0.0
    %v862 = vadd.f32 %v743, %v861
    %s863 = scalar_lea.vmem [#allocation8], 48
    %v864 = vld [vmem:[%s863] sm:$0xff]
    %vm865 = vcmp.gt.f32.partialorder %v864, 0.0
    %867 = vset.pattern.permute.xlu0 2
    %868 = vperm.xlu0 %867, %v864
    %v869 = vpop.permute.xlu0 %868
    %v871 = vmin.f32 %v869, %v110
    %v872 = vmin.f32 %v869, %v114
    %873 = vset.pattern.permute.xlu0 0
    %874 = vperm.xlu0 %873, %v864
    %v875 = vpop.permute.xlu0 %874
    %v877 = vmax.f32 %v875, %v124
    %v878 = vmax.f32 %v875, %v128
    %v879 = vsub.f32 %v871, %v877
    %v880 = vsub.f32 %v872, %v878
    %v881 = vmax.f32 %v879, 0.0
    %v882 = vmax.f32 %v880, 0.0
    %883 = vset.pattern.permute.xlu0 3
    %884 = vperm.xlu0 %883, %v864
    %v885 = vpop.permute.xlu0 %884
    %v887 = vmin.f32 %v885, %v142
    %v888 = vmin.f32 %v885, %v146
    %889 = vset.pattern.permute.xlu0 1
    %890 = vperm.xlu0 %889, %v864
    %v891 = vpop.permute.xlu0 %890
    %v893 = vmax.f32 %v891, %v156
    %v894 = vmax.f32 %v891, %v160
    %v895 = vsub.f32 %v887, %v893
    %v896 = vsub.f32 %v888, %v894
    %v897 = vmax.f32 %v895, 0.0
    %v898 = vmax.f32 %v896, 0.0
    %v899 = vmul.f32 %v881, %v897
    %v900 = vmul.f32 %v882, %v898
    %901 = vrot.lane.b32.xlu0 %v864, 2
    %v902 = vpop.permute.xlu0 %901
    %v904 = vsub.f32 %v864, %v902
    %906 = vrot.lane.b32.xlu0 %v904, 127
    %v907 = vpop.permute.xlu0 %906
    %v909 = vmul.f32 %v904, %v907
    %911 = vset.pattern.permute.xlu0 2
    %912 = vperm.xlu0 %911, %v909
    %v913 = vpop.permute.xlu0 %912
    %v915 = vadd.f32 %v913, %v186
    %v916 = vadd.f32 %v913, %v190
    %v917 = vsub.f32 %v915, %v899
    %v918 = vsub.f32 %v916, %v900
    %v919 = vrcp.pop %v917
    %v920 = vrcp.pop %v918
    %v921 = vmul.f32 %v899, %v919
    %v922 = vmul.f32 %v900, %v920
    %v923 = vsel %vm865, 1, 0
    %924 = vset.pattern.permute.xlu0 5
    %925 = vperm.xlu0 %924, %v923
    %v926 = vpop.permute.xlu0 %925
    %vm927 = vcmp.eq.s32.totalorder %v926, 1
    %vm928 = vmand %vm927, %vm214
    %vm929 = vmand %vm927, %vm215
    %v930 = vsel %vm928, %v921, -1.0
    %v931 = vsel %vm929, %v922, -1.0
    %vm932 = vcmp.gt.f32.partialorder %v930, %v817
    %vm933 = vcmp.gt.f32.partialorder %v931, %v818
    %v934 = vsel %vm932, 6, %v815
    %v935 = vsel %vm933, 6, %v816
    %v936 = vsel %vm932, %v930, %v817
    %v937 = vsel %vm933, %v931, %v818
    %v938 = vmax.f32 %v930, %v931
    %939 = vmax.xlane.f32.xlu0 %v938
    %v940 = vpop.xlane.xlu0 %939
    %vm941 = vcmp.eq.f32.partialorder %v930, %v940
    %vm942 = vcmp.eq.f32.partialorder %v931, %v940
    %v943 = vsel %vm941, %v98, 256
    %v944 = vsel %vm942, %v99, 256
    %vm945 = vcmp.lt.s32.totalorder %v943, %v944
    %v946 = vsel %vm945, %v943, %v944
    %v947 = vand.u32 %v946, 65535
    %v948 = vshra.s32 %v946, 16
    %v949 = vcvt.s32.f32 %v947
    %v950 = vcvt.s32.f32 %v948
    %951 = vmin.xlane.f32.xlu0 %v950
    %v952 = vpop.xlane.xlu0 %951
    %vm953 = vcmp.eq.f32.partialorder %v950, %v952
    %v954 = vsel %vm953, %v949, inf
    %955 = vmin.xlane.f32.xlu0 %v954
    %v956 = vpop.xlane.xlu0 %955
    %v957 = vcvt.f32.s32 %v956
    %v958 = vcvt.f32.s32 %v952
    %v959 = vshll.u32 %v958, 16
    %v960 = vadd.s32 %v959, %v957
    %vm961 = vcmp.eq.s32.totalorder %v98, %v960
    %vm962 = vcmp.eq.s32.totalorder %v99, %v960
    %vm963 = vcmp.ge.f32.partialorder %v940, 0.2
    %vm964 = vmand %vm865, %vm963
    %v965 = vsel %vm964, 1, 0
    %966 = vset.pattern.permute.xlu0 5
    %967 = vperm.xlu0 %966, %v965
    %v968 = vpop.permute.xlu0 %967
    %vm969 = vcmp.eq.s32.totalorder %v968, 1
    %vm970 = vmand %vm961, %vm969
    %vm971 = vmand %vm962, %vm969
    %v972 = vsel %vm970, 1.0, 0.0
    %v973 = vsel %vm971, 1.0, 0.0
    %v974 = vmax.f32 %v855, %v972
    %v975 = vmax.f32 %v856, %v973
    %vm976 = vmand %vm961, %vm927
    %vm977 = vmand %vm962, %vm927
    %v978 = vsel %vm976, 6, %v859
    %v979 = vsel %vm977, 6, %v860
    %v980 = vsel %vm964, 1.0, 0.0
    %v981 = vadd.f32 %v862, %v980
    %s982 = scalar_lea.vmem [#allocation8], 56
    %v983 = vld [vmem:[%s982] sm:$0xff]
    %vm984 = vcmp.gt.f32.partialorder %v983, 0.0
    %986 = vset.pattern.permute.xlu0 2
    %987 = vperm.xlu0 %986, %v983
    %v988 = vpop.permute.xlu0 %987
    %v990 = vmin.f32 %v988, %v110
    %v991 = vmin.f32 %v988, %v114
    %992 = vset.pattern.permute.xlu0 0
    %993 = vperm.xlu0 %992, %v983
    %v994 = vpop.permute.xlu0 %993
    %v996 = vmax.f32 %v994, %v124
    %v997 = vmax.f32 %v994, %v128
    %v998 = vsub.f32 %v990, %v996
    %v999 = vsub.f32 %v991, %v997
    %v1000 = vmax.f32 %v998, 0.0
    %v1001 = vmax.f32 %v999, 0.0
    %1002 = vset.pattern.permute.xlu0 3
    %1003 = vperm.xlu0 %1002, %v983
    %v1004 = vpop.permute.xlu0 %1003
    %v1006 = vmin.f32 %v1004, %v142
    %v1007 = vmin.f32 %v1004, %v146
    %1008 = vset.pattern.permute.xlu0 1
    %1009 = vperm.xlu0 %1008, %v983
    %v1010 = vpop.permute.xlu0 %1009
    %v1012 = vmax.f32 %v1010, %v156
    %v1013 = vmax.f32 %v1010, %v160
    %v1014 = vsub.f32 %v1006, %v1012
    %v1015 = vsub.f32 %v1007, %v1013
    %v1016 = vmax.f32 %v1014, 0.0
    %v1017 = vmax.f32 %v1015, 0.0
    %v1018 = vmul.f32 %v1000, %v1016
    %v1019 = vmul.f32 %v1001, %v1017
    %1020 = vrot.lane.b32.xlu0 %v983, 2
    %v1021 = vpop.permute.xlu0 %1020
    %v1023 = vsub.f32 %v983, %v1021
    %1025 = vrot.lane.b32.xlu0 %v1023, 127
    %v1026 = vpop.permute.xlu0 %1025
    %v1028 = vmul.f32 %v1023, %v1026
    %1030 = vset.pattern.permute.xlu0 2
    %1031 = vperm.xlu0 %1030, %v1028
    %v1032 = vpop.permute.xlu0 %1031
    %v1034 = vadd.f32 %v1032, %v186
    %v1035 = vadd.f32 %v1032, %v190
    %v1036 = vsub.f32 %v1034, %v1018
    %v1037 = vsub.f32 %v1035, %v1019
    %v1038 = vrcp.pop %v1036
    %v1039 = vrcp.pop %v1037
    %v1040 = vmul.f32 %v1018, %v1038
    %v1041 = vmul.f32 %v1019, %v1039
    %v1042 = vsel %vm984, 1, 0
    %1043 = vset.pattern.permute.xlu0 5
    %1044 = vperm.xlu0 %1043, %v1042
    %v1045 = vpop.permute.xlu0 %1044
    %vm1046 = vcmp.eq.s32.totalorder %v1045, 1
    %vm1047 = vmand %vm1046, %vm214
    %vm1048 = vmand %vm1046, %vm215
    %v1049 = vsel %vm1047, %v1040, -1.0
    %v1050 = vsel %vm1048, %v1041, -1.0
    %vm1051 = vcmp.gt.f32.partialorder %v1049, %v936
    %vm1052 = vcmp.gt.f32.partialorder %v1050, %v937
    %v1053 = vsel %vm1051, 7, %v934
    %v1054 = vsel %vm1052, 7, %v935
    %v1055 = vsel %vm1051, %v1049, %v936
    %v1056 = vsel %vm1052, %v1050, %v937
    %v1057 = vmax.f32 %v1049, %v1050
    %1058 = vmax.xlane.f32.xlu0 %v1057
    %v1059 = vpop.xlane.xlu0 %1058
    %vm1060 = vcmp.eq.f32.partialorder %v1049, %v1059
    %vm1061 = vcmp.eq.f32.partialorder %v1050, %v1059
    %v1062 = vsel %vm1060, %v98, 256
    %v1063 = vsel %vm1061, %v99, 256
    %vm1064 = vcmp.lt.s32.totalorder %v1062, %v1063
    %v1065 = vsel %vm1064, %v1062, %v1063
    %v1066 = vand.u32 %v1065, 65535
    %v1067 = vshra.s32 %v1065, 16
    %v1068 = vcvt.s32.f32 %v1066
    %v1069 = vcvt.s32.f32 %v1067
    %1070 = vmin.xlane.f32.xlu0 %v1069
    %v1071 = vpop.xlane.xlu0 %1070
    %vm1072 = vcmp.eq.f32.partialorder %v1069, %v1071
    %v1073 = vsel %vm1072, %v1068, inf
    %1074 = vmin.xlane.f32.xlu0 %v1073
    %v1075 = vpop.xlane.xlu0 %1074
    %v1076 = vcvt.f32.s32 %v1075
    %v1077 = vcvt.f32.s32 %v1071
    %v1078 = vshll.u32 %v1077, 16
    %v1079 = vadd.s32 %v1078, %v1076
    %vm1080 = vcmp.eq.s32.totalorder %v98, %v1079
    %vm1081 = vcmp.eq.s32.totalorder %v99, %v1079
    %vm1082 = vcmp.ge.f32.partialorder %v1059, 0.2
    %vm1083 = vmand %vm984, %vm1082
    %v1084 = vsel %vm1083, 1, 0
    %1085 = vset.pattern.permute.xlu0 5
    %1086 = vperm.xlu0 %1085, %v1084
    %v1087 = vpop.permute.xlu0 %1086
    %vm1088 = vcmp.eq.s32.totalorder %v1087, 1
    %vm1089 = vmand %vm1080, %vm1088
    %vm1090 = vmand %vm1081, %vm1088
    %v1091 = vsel %vm1089, 1.0, 0.0
    %v1092 = vsel %vm1090, 1.0, 0.0
    %v1093 = vmax.f32 %v974, %v1091
    %v1094 = vmax.f32 %v975, %v1092
    %vm1095 = vmand %vm1080, %vm1046
    %vm1096 = vmand %vm1081, %vm1046
    %v1097 = vsel %vm1095, 7, %v978
    %v1098 = vsel %vm1096, 7, %v979
    %v1099 = vsel %vm1083, 1.0, 0.0
    %v1100 = vadd.f32 %v981, %v1099
    %vm1101 = vcmp.gt.f32.partialorder %v1093, 0.5
    %vm1102 = vcmp.gt.f32.partialorder %v1094, 0.5
    %v1103 = vsel %vm1101, 2.0, %v1055
    %v1104 = vsel %vm1102, 2.0, %v1056
    %vm1105 = vcmp.ge.s32.totalorder %v1097, 0
    %vm1106 = vcmp.ge.s32.totalorder %v1098, 0
    %v1107 = vsel %vm1105, %v1097, %v1053
    %v1108 = vsel %vm1106, %v1098, %v1054
    %vm1109 = vcmp.lt.f32.partialorder %v1100, 0.5
    %vm1110 = vcmp.eq.s32.totalorder %v1107, 0
    %vm1111 = vcmp.eq.s32.totalorder %v1108, 0
    %v1112 = vsel %vm1110, %v119, 0.0
    %v1113 = vsel %vm1111, %v119, 0.0
    %v1114 = vsel %vm1110, %v151, 0.0
    %v1115 = vsel %vm1111, %v151, 0.0
    %v1116 = vsel %vm1110, %v105, 0.0
    %v1117 = vsel %vm1111, %v105, 0.0
    %v1118 = vsel %vm1110, %v137, 0.0
    %v1119 = vsel %vm1111, %v137, 0.0
    %1120 = vset.pattern.permute.xlu0 4
    %1121 = vperm.xlu0 %1120, %v100
    %v1122 = vpop.permute.xlu0 %1121
    %v1124 = vsel %vm1110, %v1122, 0.0
    %v1125 = vsel %vm1111, %v1122, 0.0
    %vm1126 = vcmp.eq.s32.totalorder %v1107, 1
    %vm1127 = vcmp.eq.s32.totalorder %v1108, 1
    %v1128 = vsel %vm1126, %v280, %v1112
    %v1129 = vsel %vm1127, %v280, %v1113
    %v1130 = vsel %vm1126, %v296, %v1114
    %v1131 = vsel %vm1127, %v296, %v1115
    %v1132 = vsel %vm1126, %v274, %v1116
    %v1133 = vsel %vm1127, %v274, %v1117
    %v1134 = vsel %vm1126, %v290, %v1118
    %v1135 = vsel %vm1127, %v290, %v1119
    %1136 = vset.pattern.permute.xlu0 4
    %1137 = vperm.xlu0 %1136, %v269
    %v1138 = vpop.permute.xlu0 %1137
    %v1140 = vsel %vm1126, %v1138, %v1124
    %v1141 = vsel %vm1127, %v1138, %v1125
    %vm1142 = vcmp.eq.s32.totalorder %v1107, 2
    %vm1143 = vcmp.eq.s32.totalorder %v1108, 2
    %v1144 = vsel %vm1142, %v399, %v1128
    %v1145 = vsel %vm1143, %v399, %v1129
    %v1146 = vsel %vm1142, %v415, %v1130
    %v1147 = vsel %vm1143, %v415, %v1131
    %v1148 = vsel %vm1142, %v393, %v1132
    %v1149 = vsel %vm1143, %v393, %v1133
    %v1150 = vsel %vm1142, %v409, %v1134
    %v1151 = vsel %vm1143, %v409, %v1135
    %1152 = vset.pattern.permute.xlu0 4
    %1153 = vperm.xlu0 %1152, %v388
    %v1154 = vpop.permute.xlu0 %1153
    %v1156 = vsel %vm1142, %v1154, %v1140
    %v1157 = vsel %vm1143, %v1154, %v1141
    %vm1158 = vcmp.eq.s32.totalorder %v1107, 3
    %vm1159 = vcmp.eq.s32.totalorder %v1108, 3
    %v1160 = vsel %vm1158, %v518, %v1144
    %v1161 = vsel %vm1159, %v518, %v1145
    %v1162 = vsel %vm1158, %v534, %v1146
    %v1163 = vsel %vm1159, %v534, %v1147
    %v1164 = vsel %vm1158, %v512, %v1148
    %v1165 = vsel %vm1159, %v512, %v1149
    %v1166 = vsel %vm1158, %v528, %v1150
    %v1167 = vsel %vm1159, %v528, %v1151
    %1168 = vset.pattern.permute.xlu0 4
    %1169 = vperm.xlu0 %1168, %v507
    %v1170 = vpop.permute.xlu0 %1169
    %v1172 = vsel %vm1158, %v1170, %v1156
    %v1173 = vsel %vm1159, %v1170, %v1157
    %vm1174 = vcmp.eq.s32.totalorder %v1107, 4
    %vm1175 = vcmp.eq.s32.totalorder %v1108, 4
    %v1176 = vsel %vm1174, %v637, %v1160
    %v1177 = vsel %vm1175, %v637, %v1161
    %v1178 = vsel %vm1174, %v653, %v1162
    %v1179 = vsel %vm1175, %v653, %v1163
    %v1180 = vsel %vm1174, %v631, %v1164
    %v1181 = vsel %vm1175, %v631, %v1165
    %v1182 = vsel %vm1174, %v647, %v1166
    %v1183 = vsel %vm1175, %v647, %v1167
    %1184 = vset.pattern.permute.xlu0 4
    %1185 = vperm.xlu0 %1184, %v626
    %v1186 = vpop.permute.xlu0 %1185
    %v1188 = vsel %vm1174, %v1186, %v1172
    %v1189 = vsel %vm1175, %v1186, %v1173
    %vm1190 = vcmp.eq.s32.totalorder %v1107, 5
    %vm1191 = vcmp.eq.s32.totalorder %v1108, 5
    %v1192 = vsel %vm1190, %v756, %v1176
    %v1193 = vsel %vm1191, %v756, %v1177
    %v1194 = vsel %vm1190, %v772, %v1178
    %v1195 = vsel %vm1191, %v772, %v1179
    %v1196 = vsel %vm1190, %v750, %v1180
    %v1197 = vsel %vm1191, %v750, %v1181
    %v1198 = vsel %vm1190, %v766, %v1182
    %v1199 = vsel %vm1191, %v766, %v1183
    %1200 = vset.pattern.permute.xlu0 4
    %1201 = vperm.xlu0 %1200, %v745
    %v1202 = vpop.permute.xlu0 %1201
    %v1204 = vsel %vm1190, %v1202, %v1188
    %v1205 = vsel %vm1191, %v1202, %v1189
    %vm1206 = vcmp.eq.s32.totalorder %v1107, 6
    %vm1207 = vcmp.eq.s32.totalorder %v1108, 6
    %v1208 = vsel %vm1206, %v875, %v1192
    %v1209 = vsel %vm1207, %v875, %v1193
    %v1210 = vsel %vm1206, %v891, %v1194
    %v1211 = vsel %vm1207, %v891, %v1195
    %v1212 = vsel %vm1206, %v869, %v1196
    %v1213 = vsel %vm1207, %v869, %v1197
    %v1214 = vsel %vm1206, %v885, %v1198
    %v1215 = vsel %vm1207, %v885, %v1199
    %1216 = vset.pattern.permute.xlu0 4
    %1217 = vperm.xlu0 %1216, %v864
    %v1218 = vpop.permute.xlu0 %1217
    %v1220 = vsel %vm1206, %v1218, %v1204
    %v1221 = vsel %vm1207, %v1218, %v1205
    %vm1222 = vcmp.eq.s32.totalorder %v1107, 7
    %vm1223 = vcmp.eq.s32.totalorder %v1108, 7
    %v1224 = vsel %vm1222, %v994, %v1208
    %v1225 = vsel %vm1223, %v994, %v1209
    %v1226 = vsel %vm1222, %v1010, %v1210
    %v1227 = vsel %vm1223, %v1010, %v1211
    %v1228 = vsel %vm1222, %v988, %v1212
    %v1229 = vsel %vm1223, %v988, %v1213
    %v1230 = vsel %vm1222, %v1004, %v1214
    %v1231 = vsel %vm1223, %v1004, %v1215
    %1232 = vset.pattern.permute.xlu0 4
    %1233 = vperm.xlu0 %1232, %v983
    %v1234 = vpop.permute.xlu0 %1233
    %v1236 = vsel %vm1222, %v1234, %v1220
    %v1237 = vsel %vm1223, %v1234, %v1221
    %vm1238 = vcmp.lt.f32.partialorder %v1103, 0.45
    %vm1239 = vcmp.lt.f32.partialorder %v1104, 0.45
    %v1240 = vsel %vm1238, 0.0, %v1236
    %v1241 = vsel %vm1239, 0.0, %v1237
    %v1242 = vsel %vm1109, 1, 0
    %1243 = vset.pattern.permute.xlu0 5
    %1244 = vperm.xlu0 %1243, %v1242
    %v1245 = vpop.permute.xlu0 %1244
    %vm1246 = vcmp.eq.s32.totalorder %v1245, 1
    %v1247 = vsel %vm1246, 0.0, %v1240
    %v1248 = vsel %vm1246, 0.0, %v1241
    %v1249 = vsel %vm214, %v1247, 0.0
    %v1250 = vsel %vm215, %v1248, 0.0
    %vm1251 = vcmp.ne.f32.partialorder %v1249, 0.0
    %vm1252 = vcmp.ne.f32.partialorder %v1250, 0.0
    %v1253 = vadd.f32 %v1224, %v1228
    %v1254 = vadd.f32 %v1225, %v1229
    %v1255 = vmul.f32 %v1253, 0.5
    %v1256 = vmul.f32 %v1254, 0.5
    %v1257 = vlaneseq
    %v1258 = vshrl.u32 %v1257, 7
    %v1259 = vsub.s32 0, %v1258
    %v1260 = vrot.slane %v71, %v1259
    %v1261 = vlaneseq
    %v1262 = vshrl.u32 %v1261, 7
    %v1263 = vsub.s32 0, %v1262
    %v1264 = vrot.slane %v72, %v1263
    %v1265 = vsub.f32 %v1255, %v1260
    %v1266 = vsub.f32 %v1256, %v1264
    %v1267 = vmul.f32 %v71, 0.1
    %v1268 = vmul.f32 %v72, 0.1
    %v1269 = vlaneseq
    %v1270 = vshrl.u32 %v1269, 7
    %v1271 = vsub.s32 2, %v1270
    %v1272 = vrot.slane %v1267, %v1271
    %v1273 = vlaneseq
    %v1274 = vshrl.u32 %v1273, 7
    %v1275 = vsub.s32 2, %v1274
    %v1276 = vrot.slane %v1268, %v1275
    %v1277 = vrcp.pop %v1272
    %v1278 = vmul.f32 %v1265, %v1277
    %v1279 = vrcp.pop %v1276
    %v1280 = vmul.f32 %v1266, %v1279
    %v1281 = vadd.f32 %v1226, %v1230
    %v1282 = vadd.f32 %v1227, %v1231
    %v1283 = vmul.f32 %v1281, 0.5
    %v1284 = vmul.f32 %v1282, 0.5
    %v1285 = vlaneseq
    %v1286 = vshrl.u32 %v1285, 7
    %v1287 = vsub.s32 1, %v1286
    %v1288 = vrot.slane %v71, %v1287
    %v1289 = vlaneseq
    %v1290 = vshrl.u32 %v1289, 7
    %v1291 = vsub.s32 1, %v1290
    %v1292 = vrot.slane %v72, %v1291
    %v1293 = vsub.f32 %v1283, %v1288
    %v1294 = vsub.f32 %v1284, %v1292
    %v1295 = vlaneseq
    %v1296 = vshrl.u32 %v1295, 7
    %v1297 = vsub.s32 3, %v1296
    %v1298 = vrot.slane %v1267, %v1297
    %v1299 = vlaneseq
    %v1300 = vshrl.u32 %v1299, 7
    %v1301 = vsub.s32 3, %v1300
    %v1302 = vrot.slane %v1268, %v1301
    %v1303 = vrcp.pop %v1298
    %v1304 = vmul.f32 %v1293, %v1303
    %v1305 = vrcp.pop %v1302
    %v1306 = vmul.f32 %v1294, %v1305
    %v1307 = vsub.f32 %v1228, %v1224
    %v1308 = vsub.f32 %v1229, %v1225
    %v1309 = vlaneseq
    %v1310 = vshrl.u32 %v1309, 7
    %v1311 = vsub.s32 2, %v1310
    %v1312 = vrot.slane %v71, %v1311
    %v1313 = vlaneseq
    %v1314 = vshrl.u32 %v1313, 7
    %v1315 = vsub.s32 2, %v1314
    %v1316 = vrot.slane %v72, %v1315
    %v1317 = vrcp.pop %v1312
    %v1318 = vmul.f32 %v1307, %v1317
    %v1319 = vrcp.pop %v1316
    %v1320 = vmul.f32 %v1308, %v1319
    %v1321 = vmax.f32 %v1318, 1e-12
    %v1322 = vmax.f32 %v1320, 1e-12
    %v1323 = vlog2.pop %v1321
    %v1324 = vmul.f32 %v1323, 0.6931472
    %v1325 = vlog2.pop %v1322
    %v1326 = vmul.f32 %v1325, 0.6931472
    %v1327 = vrcp.pop 0.2
    %v1328 = vmul.f32 %v1324, %v1327
    %v1329 = vmul.f32 %v1326, %v1327
    %v1330 = vsub.f32 %v1230, %v1226
    %v1331 = vsub.f32 %v1231, %v1227
    %v1332 = vlaneseq
    %v1333 = vshrl.u32 %v1332, 7
    %v1334 = vsub.s32 3, %v1333
    %v1335 = vrot.slane %v71, %v1334
    %v1336 = vlaneseq
    %v1337 = vshrl.u32 %v1336, 7
    %v1338 = vsub.s32 3, %v1337
    %v1339 = vrot.slane %v72, %v1338
    %v1340 = vrcp.pop %v1335
    %v1341 = vmul.f32 %v1330, %v1340
    %v1342 = vrcp.pop %v1339
    %v1343 = vmul.f32 %v1331, %v1342
    %v1344 = vmax.f32 %v1341, 1e-12
    %v1345 = vmax.f32 %v1343, 1e-12
    %v1346 = vlog2.pop %v1344
    %v1347 = vmul.f32 %v1346, 0.6931472
    %v1348 = vlog2.pop %v1345
    %v1349 = vmul.f32 %v1348, 0.6931472
    %v1350 = vmul.f32 %v1347, %v1327
    %v1351 = vmul.f32 %v1349, %v1327
    %v1352 = vld [vmem:[#allocation5] sm:$0xff]
    %v1353 = vld [vmem:[#allocation5 + $0x8] sm:$0xff]
    %s1354 = scalar_lea.vmem [#allocation5], 16
    %v1355 = vld [vmem:[%s1354] sm:$0xff]
    %v1356 = vld [vmem:[%s1354 + $0x8] sm:$0xff]
    %s1357 = scalar_lea.vmem [#allocation5], 32
    %v1358 = vld [vmem:[%s1357] sm:$0xff]
    %v1359 = vld [vmem:[%s1357 + $0x8] sm:$0xff]
    %s1360 = scalar_lea.vmem [#allocation5], 48
    %v1361 = vld [vmem:[%s1360] sm:$0xff]
    %v1362 = vld [vmem:[%s1360 + $0x8] sm:$0xff]
    %v1363 = vsub.f32 %v1352, %v1278
    %v1364 = vsub.f32 %v1353, %v1280
    %v1365 = vand.u32 2147483647, %v1363
    %v1366 = vand.u32 2147483647, %v1364
    %vm1367 = vcmp.lt.f32.partialorder %v1365, 1.0
    %vm1368 = vcmp.lt.f32.partialorder %v1366, 1.0
    %v1369 = vmul.f32 %v1365, 0.5
    %v1370 = vmul.f32 %v1366, 0.5
    %v1371 = vmul.f32 %v1369, %v1365
    %v1372 = vmul.f32 %v1370, %v1366
    %v1373 = vsub.f32 %v1365, 0.5
    %v1374 = vsub.f32 %v1366, 0.5
    %v1375 = vsel %vm1367, %v1371, %v1373
    %v1376 = vsel %vm1368, %v1372, %v1374
    %v1377 = vsub.f32 %v1355, %v1304
    %v1378 = vsub.f32 %v1356, %v1306
    %v1379 = vand.u32 2147483647, %v1377
    %v1380 = vand.u32 2147483647, %v1378
    %vm1381 = vcmp.lt.f32.partialorder %v1379, 1.0
    %vm1382 = vcmp.lt.f32.partialorder %v1380, 1.0
    %v1383 = vmul.f32 %v1379, 0.5
    %v1384 = vmul.f32 %v1380, 0.5
    %v1385 = vmul.f32 %v1383, %v1379
    %v1386 = vmul.f32 %v1384, %v1380
    %v1387 = vsub.f32 %v1379, 0.5
    %v1388 = vsub.f32 %v1380, 0.5
    %v1389 = vsel %vm1381, %v1385, %v1387
    %v1390 = vsel %vm1382, %v1386, %v1388
    %v1391 = vadd.f32 %v1375, %v1389
    %v1392 = vadd.f32 %v1376, %v1390
    %v1393 = vsub.f32 %v1358, %v1328
    %v1394 = vsub.f32 %v1359, %v1329
    %v1395 = vand.u32 2147483647, %v1393
    %v1396 = vand.u32 2147483647, %v1394
    %vm1397 = vcmp.lt.f32.partialorder %v1395, 1.0
    %vm1398 = vcmp.lt.f32.partialorder %v1396, 1.0
    %v1399 = vmul.f32 %v1395, 0.5
    %v1400 = vmul.f32 %v1396, 0.5
    %v1401 = vmul.f32 %v1399, %v1395
    %v1402 = vmul.f32 %v1400, %v1396
    %v1403 = vsub.f32 %v1395, 0.5
    %v1404 = vsub.f32 %v1396, 0.5
    %v1405 = vsel %vm1397, %v1401, %v1403
    %v1406 = vsel %vm1398, %v1402, %v1404
    %v1407 = vadd.f32 %v1391, %v1405
    %v1408 = vadd.f32 %v1392, %v1406
    %v1409 = vsub.f32 %v1361, %v1350
    %v1410 = vsub.f32 %v1362, %v1351
    %v1411 = vand.u32 2147483647, %v1409
    %v1412 = vand.u32 2147483647, %v1410
    %vm1413 = vcmp.lt.f32.partialorder %v1411, 1.0
    %vm1414 = vcmp.lt.f32.partialorder %v1412, 1.0
    %v1415 = vmul.f32 %v1411, 0.5
    %v1416 = vmul.f32 %v1412, 0.5
    %v1417 = vmul.f32 %v1415, %v1411
    %v1418 = vmul.f32 %v1416, %v1412
    %v1419 = vsub.f32 %v1411, 0.5
    %v1420 = vsub.f32 %v1412, 0.5
    %v1421 = vsel %vm1413, %v1417, %v1419
    %v1422 = vsel %vm1414, %v1418, %v1420
    %v1423 = vadd.f32 %v1407, %v1421
    %v1424 = vadd.f32 %v1408, %v1422
    %v1425 = vsel %vm1251, %v1423, 0.0
    %v1426 = vsel %vm1252, %v1424, 0.0
    %v1427 = vadd.f32 %v1425, %v1426
    %1428 = vadd.xlane.f32.xlu0 %v1427
    %v1429 = vpop.xlane.xlu0 %1428
    %v1430 = vld [vmem:[#allocation7] sm:$0xff]
    %v1431 = vld [vmem:[#allocation7 + $0x8] sm:$0xff]
    %s1432 = scalar_lea.vmem [#allocation7], 16
    %v1433 = vld [vmem:[%s1432] sm:$0xff]
    %v1434 = vld [vmem:[%s1432 + $0x8] sm:$0xff]
    %v1435 = vmax.f32 %v1430, %v1433
    %v1436 = vmax.f32 %v1431, %v1434
    %v1437 = vsub.f32 %v1430, %v1435
    %v1438 = vsub.f32 %v1431, %v1436
    %v1439 = vmul.f32 %v1437, 1.442695
    %v1440 = vpow.pop %v1439
    %v1441 = vmul.f32 %v1438, 1.442695
    %v1442 = vpow.pop %v1441
    %v1443 = vsub.f32 %v1433, %v1435
    %v1444 = vsub.f32 %v1434, %v1436
    %v1445 = vmul.f32 %v1443, 1.442695
    %v1446 = vpow.pop %v1445
    %v1447 = vmul.f32 %v1444, 1.442695
    %v1448 = vpow.pop %v1447
    %v1449 = vadd.f32 %v1440, %v1446
    %v1450 = vadd.f32 %v1442, %v1448
    %v1451 = vlog2.pop %v1449
    %v1452 = vmul.f32 %v1451, 0.6931472
    %v1453 = vlog2.pop %v1450
    %v1454 = vmul.f32 %v1453, 0.6931472
    %v1455 = vadd.f32 %v1452, %v1435
    %v1456 = vadd.f32 %v1454, %v1436
    %v1457 = vsel %vm1251, %v1433, %v1430
    %v1458 = vsel %vm1252, %v1434, %v1431
    %v1459 = vsub.f32 %v1455, %v1457
    %v1460 = vsub.f32 %v1456, %v1458
    %v1461 = vsel %vm1251, 0.0, %v1459
    %v1462 = vsel %vm1252, 0.0, %v1460
    %v1463 = vsel %vm214, %v1461, -1.0
    %v1464 = vsel %vm215, %v1462, -1.0
    %v1467 = vsel %vm1251, 1.0, 0.0
    %v1468 = vsel %vm1252, 1.0, 0.0
    %v1469 = vadd.f32 %v1467, %v1468
    %1470 = vadd.xlane.f32.xlu0 %v1469
    %v1471 = vpop.xlane.xlu0 %1470
    %v1472 = vmul.f32 %v1471, 7.0
    %v1473 = vmin.f32 %v1472, 167.0
    loop: start=0, step=1, limit=32
    $region34: #{tpu_custom_call.1} parent=1 // loop_pre_header
      _
    $region35: #{tpu_custom_call.1} parent=1 // loop_header
      %s1475 = sphi 0, %s1479
      %p1476 = scmp.ge.s32.totalorder %s1475, 32
      %v1480 = vphi 0, %v1495
      %v1481 = vphi 2130706432, %v1496
    $region36: #{tpu_custom_call.1} parent=1 // loop_header_branch
      %1478 = sbr.rel (%p1476) target = $region40
    $region37: #{tpu_custom_call.1} parent=1 // loop_body
      %v1482 = vsub.s32 %v1481, %v1480
      %v1483 = vshra.s32 %v1482, 1
      %v1484 = vadd.s32 %v1480, %v1483
      %vm1485 = vcmp.ge.s32.totalorder %v1463, %v1484
      %vm1486 = vcmp.ge.s32.totalorder %v1464, %v1484
      %v1487 = vsel %vm1485, 1, 0
      %v1488 = vsel %vm1486, 1, 0
      %v1489 = vcvt.s32.f32 %v1487
      %v1490 = vcvt.s32.f32 %v1488
      %v1491 = vadd.f32 %v1489, %v1490
      %1492 = vadd.xlane.f32.xlu0 %v1491
      %v1493 = vpop.xlane.xlu0 %1492
      %vm1494 = vcmp.ge.f32.partialorder %v1493, %v1473
      %v1495 = vsel %vm1494, %v1484, %v1480
      %v1496 = vsel %vm1494, %v1481, %v1484
    $region38: #{tpu_custom_call.1} parent=1 // loop_footer
      %s1479 = sadd.s32 1, %s1475
    $region39: #{tpu_custom_call.1} parent=1 // loop_footer_branch
      %1474 = sbr.rel target = $region35
    $region40: #{tpu_custom_call.1} parent=1 // loop_exit
      _
    %vm1498 = vcmp.gt.f32.partialorder %v1463, %v1480
    %vm1499 = vcmp.gt.f32.partialorder %v1464, %v1480
    %v1500 = vsel %vm1498, 1, 0
    %v1501 = vsel %vm1499, 1, 0
    %v1502 = vcvt.s32.f32 %v1500
    %v1503 = vcvt.s32.f32 %v1501
    %v1504 = vadd.f32 %v1502, %v1503
    %1505 = vadd.xlane.f32.xlu0 %v1504
    %v1506 = vpop.xlane.xlu0 %1505
    %v1507 = vsel %vm1498, %v1463, 0.0
    %v1508 = vsel %vm1499, %v1464, 0.0
    %v1509 = vadd.f32 %v1507, %v1508
    %1510 = vadd.xlane.f32.xlu0 %v1509
    %v1511 = vpop.xlane.xlu0 %1510
    %v1512 = vsub.f32 %v1473, %v1506
    %v1513 = vmul.f32 %v1512, %v1480
    %v1514 = vadd.f32 %v1511, %v1513
    %v1515 = vsel %vm1251, %v1459, 0.0
    %v1516 = vsel %vm1252, %v1460, 0.0
    %v1517 = vadd.f32 %v1515, %v1516
    %1518 = vadd.xlane.f32.xlu0 %v1517
    %v1519 = vpop.xlane.xlu0 %1518
    %v1520 = vadd.f32 %v1519, %v1514
    %vm1521 = vcmp.eq.s32.totalorder %v98, 0
    %v1522 = vsel %vm1521, %v1429, 0.0
    %vm1523 = vcmp.eq.s32.totalorder %v98, 1
    %v1524 = vsel %vm1523, %v1520, 0.0
    %v1525 = vadd.f32 %v1522, %v1524
    %vm1526 = vcmp.eq.s32.totalorder %v98, 2
    %v1527 = vsel %vm1526, %v1471, 0.0
    %v1528 = vadd.f32 %v1525, %v1527
    %1529 = vst [vmem:[#allocation10] sm:$0xff] %v1528
    // Predicated region
    $region41: #{tpu_custom_call.1} parent=1 // pred_check
      _
    $region42: #{tpu_custom_call.1} parent=1 // pred_check_branch
      %1531 = sbr.rel (0) target = $region44
    $region43: #{tpu_custom_call.1} parent=1 // pred_region
      %s1533 = ssub.s32 128, 128
      %1534 = vsyncadd [#allocation4], %s1533
      %s1536 = sshll.u32 [#allocation10], 4
      %s1537 = int_to_ptr.vmem [resolvable:$true] %s1536
      %1539 = dma.vmem_to_hbm [thread:$0]  %s1537, 128, %s4, [#allocation4]
    $region44: #{tpu_custom_call.1} parent=1 // pred_fallthru
      _
    // Predicated region
    $region45: #{tpu_custom_call.1} parent=1 // pred_check
      _
    $region46: #{tpu_custom_call.1} parent=1 // pred_check_branch
      %1541 = sbr.rel (0) target = $region48
    $region47: #{tpu_custom_call.1} parent=1 // pred_region
      %1542 = dma.done [#allocation4], 128
    $region48: #{tpu_custom_call.1} parent=1 // pred_fallthru
      _
    %1543 = vsyncpa [#allocation3], 1
    %1544 = vsyncpa [#allocation6], 1
    %1545 = vsyncpa [#allocation9], 1
    %1546 = vsyncpa [#allocation4], 1

</llo_original>
